<compile_context>
chip_gen: v7x
topology: tpu7x:2x2x1
jax: 0.10.0
libtpu: 0.0.40
codegen_flags: <defaults>
</compile_context>

<pallas_src>
import functools

import jax
import jax.numpy as jnp
from jax import lax
from jax.experimental import pallas as pl
from jax.experimental.pallas import tpu as pltpu


def _fused_bidir_lstm_kernel(gx_ref, wh_ref, h0_ref, c0_ref, out_ref, hf_ref,
                             *, seq_len, hidden_size):
    """Both directions of one LSTM layer over the whole sequence, fused.

    gx_ref : (T, B, 8H) bf16  precomputed x @ Wx + b; column layout is
                              gate-major / direction-minor:
                              [i_f,i_b | f_f,f_b | 2*g_f,2*g_b | o_f,o_b].
                              The *_b columns were computed from time-reversed
                              input, so loop index i addresses forward time i
                              and backward time T-1-i simultaneously.
    wh_ref : (2H, 8H) bf16    block-diagonal recurrent weight (rows [h_f|h_b]).
    h0_ref, c0_ref : (B, 2H)  f32 initial states, [fwd | bwd] stacked on lanes.
    out_ref: (T, B, 2H) f32   h_t per timestep, natural time order, [fwd|bwd].
    hf_ref : (B, 2H) f32      final hidden states [h_fwd(T-1) | h_bwd(0)].
    """
    T, H = seq_len, hidden_size

    def step(i, carry):
        h, c = carry                                     # (B, 2H) f32 each
        # One MXU matmul per step covers both directions (block-diagonal Wh);
        # bf16 inputs, f32 accumulation. Wh is read from VMEM by the dot.
        gates = gx_ref[i].astype(jnp.float32) + jnp.dot(
            h.astype(jnp.bfloat16), wh_ref[...],
            preferred_element_type=jnp.float32)          # (B, 8H)
        # Single EUP sigmoid over the whole lane-dense slab; g columns were
        # pre-scaled by 2, so tanh(g) = 2*sigmoid(2g) - 1 is one fma.
        s = jax.nn.sigmoid(gates)
        i_g = s[:, 0 * 2 * H:1 * 2 * H]
        f_g = s[:, 1 * 2 * H:2 * 2 * H]
        g_g = 2.0 * s[:, 2 * 2 * H:3 * 2 * H] - 1.0
        o_g = s[:, 3 * 2 * H:4 * 2 * H]
        c_new = f_g * c + i_g * g_g
        h_new = o_g * jnp.tanh(c_new)
        # Forward half -> time i, backward half -> time T-1-i: the output is
        # already in natural time order, no wrapper-side flip or concat.
        out_ref[i, :, pl.ds(0, H)] = h_new[:, :H].astype(out_ref.dtype)
        out_ref[T - 1 - i, :, pl.ds(H, H)] = h_new[:, H:].astype(out_ref.dtype)
        return h_new, c_new

    h0 = h0_ref[...].astype(jnp.float32)
    c0 = c0_ref[...].astype(jnp.float32)
    h_final, _ = lax.fori_loop(0, T, step, (h0, c0),
                               unroll=True if T <= 16 else 4)
    # Final hidden state written once, after the recurrence.
    hf_ref[...] = h_final.astype(hf_ref.dtype)


def _bidir_lstm_layer(layer_in, wx, wh, b, h0, c0):
    """One bidirectional LSTM layer.

    layer_in: (T, B, I) time-major.
    wx: (I, 8H) bf16 fused column layout, wh: (2H, 8H) bf16 block-diagonal,
    b: (8H,) f32 (b_ih + b_hh, fused layout), h0/c0: (B, 2H) f32 ([fwd|bwd]).
    Returns (out (T, B, 2H) f32, hf (B, 2H) f32).
    """
    T, B, in_sz = layer_in.shape
    H = h0.shape[-1] // 2

    # Hoisted input projection: one bf16 matmul over the whole sequence for
    # BOTH directions. The backward direction consumes time-reversed input so
    # the kernel's single fused loop indexes everything by the same i.
    xs = jnp.stack([layer_in, layer_in[::-1]], axis=0).astype(jnp.bfloat16)
    gx = jnp.einsum('dtbi,ifdh->tbfdh', xs, wx.reshape(in_sz, 4, 2, H),
                    preferred_element_type=jnp.float32)         # (T,B,4,2,H)
    gx = (gx + b.reshape(4, 2, H)).reshape(T, B, 8 * H).astype(jnp.bfloat16)

    # Everything (gx, Wh, states, outputs) is VMEM-resident for the
    # whole-sequence recurrence -> size the scoped-VMEM limit explicitly.
    resident = (gx.size * 2 + wh.size * 2                     # bf16 inputs
                + (h0.size + c0.size) * 4                     # f32 states
                + (T * B * 2 * H + B * 2 * H) * 4)            # f32 outputs
    try:
        phys = pltpu.get_tpu_info().vmem_capacity_bytes
    except Exception:  # pragma: no cover - fallback if the query is missing
        phys = 64 * 1024 * 1024
    vmem_limit = int(min(phys - (4 << 20), max(32 << 20, 2 * resident)))

    kernel = functools.partial(_fused_bidir_lstm_kernel,
                               seq_len=T, hidden_size=H)
    out, hf = pl.pallas_call(
        kernel,
        out_shape=(
            jax.ShapeDtypeStruct((T, B, 2 * H), jnp.float32),
            jax.ShapeDtypeStruct((B, 2 * H), jnp.float32),
        ),
        compiler_params=pltpu.CompilerParams(vmem_limit_bytes=vmem_limit),
    )(gx, wh, h0, c0)
    return out, hf


def init_lstm_params(key, input_size, hidden_size, num_layers):
    """PyTorch-style bidirectional LSTM params, packed for the fused kernel.

    Per layer returns:
      wx (I_l, 8H) bf16 : input weights, column layout gate-major /
                          direction-minor [i_f,i_b|f_f,f_b|g_f,g_b|o_f,o_b],
                          g columns pre-scaled by 2.
      wh (2H, 8H) bf16  : block-diagonal recurrent weights (rows [h_f|h_b]),
                          same column layout / g pre-scale.
      b  (8H,) f32      : b_ih + b_hh folded, same layout / g pre-scale.
    I_l = input_size for layer 0 else 2*hidden_size (matches nn.LSTM).
    """
    params = []
    H = hidden_size
    bound = 1.0 / float(H) ** 0.5
    # Pre-scale of the g-gate columns so tanh(g) = 2*sigmoid(2g) - 1 in-kernel.
    gate_scale = jnp.concatenate([jnp.ones((2 * H,)),
                                  jnp.full((H,), 2.0),
                                  jnp.ones((H,))])                # (4H,)
    for layer in range(num_layers):
        in_sz = input_size if layer == 0 else 2 * H
        wx_d, wh_d, b_d = [], [], []
        for _ in range(2):  # forward, backward
            key, k1, k2, k3, k4 = jax.random.split(key, 5)
            w_ih = jax.random.uniform(k1, (4 * H, in_sz), jnp.float32, -bound, bound)
            w_hh = jax.random.uniform(k2, (4 * H, H), jnp.float32, -bound, bound)
            b_ih = jax.random.uniform(k3, (4 * H,), jnp.float32, -bound, bound)
            b_hh = jax.random.uniform(k4, (4 * H,), jnp.float32, -bound, bound)
            wx_d.append(w_ih.T * gate_scale)       # (I_l, 4H), gates [i,f,g,o]
            wh_d.append(w_hh.T * gate_scale)       # (H, 4H)
            b_d.append((b_ih + b_hh) * gate_scale)  # (4H,)

        # Fused input weights: (2, I, 4H) -> (I, 4, 2, H) -> (I, 8H).
        wx = jnp.stack(wx_d, axis=0).reshape(2, in_sz, 4, H)
        wx = wx.transpose(1, 2, 0, 3).reshape(in_sz, 8 * H)

        # Fused recurrent weights: block-diagonal over the direction axis.
        wh = jnp.stack(wh_d, axis=0).reshape(2, H, 4, H)
        wh_full = jnp.zeros((2, H, 4, 2, H), jnp.float32)
        wh_full = wh_full.at[0, :, :, 0, :].set(wh[0])
        wh_full = wh_full.at[1, :, :, 1, :].set(wh[1])
        wh_full = wh_full.reshape(2 * H, 8 * H)

        # Fused bias: (2, 4H) -> (4, 2, H) -> (8H,).
        b = jnp.stack(b_d, axis=0).reshape(2, 4, H).transpose(1, 0, 2).reshape(8 * H)

        params.append((wx.astype(jnp.bfloat16),
                       wh_full.astype(jnp.bfloat16),
                       b))
    return params


def lstm_cell_forward(x, params, h0, c0, num_layers, hidden_size):
    """Replicates LSTMCell.forward.

    x: (B, T, input_size) batch-first.
    h0, c0: (num_layers*2, B, H). The PyTorch module draws these with
            torch.randn on every forward call; here deterministic draws of the
            same shape are supplied by the caller.
    Returns (output (B, T, 2H), cat([h_n[-1], h_n[-2]], -1) of shape (B, 2H)).
    """
    H = hidden_size
    layer_in = jnp.transpose(x, (1, 0, 2)).astype(jnp.float32)   # (T, B, I)
    hf = None
    for layer in range(num_layers):
        wx, wh, b = params[layer]
        h0_l = jnp.concatenate([h0[2 * layer], h0[2 * layer + 1]], axis=-1)
        c0_l = jnp.concatenate([c0[2 * layer], c0[2 * layer + 1]], axis=-1)
        # Only the last layer's final hidden state is consumed below; earlier
        # layers' (B, 2H) hf outputs are negligible.
        layer_in, hf = _bidir_lstm_layer(layer_in, wx, wh, b, h0_l, c0_l)

    output = jnp.transpose(layer_in, (1, 0, 2))                  # (B, T, 2H)
    # PyTorch: torch.cat([h_n[-1], h_n[-2]], -1) = [bwd final | fwd final].
    hidden_cat = jnp.concatenate([hf[:, H:], hf[:, :H]], axis=-1)
    return output, hidden_cat


if __name__ == "__main__":
    INPUT_SIZE = 16
    HIDDEN_SIZE = 32
    NUM_LAYERS = 2
    BATCH = 2
    SEQ = 8

    key = jax.random.PRNGKey(0)
    k_x, k_h, k_c, k_p = jax.random.split(key, 4)

    x = jax.random.normal(k_x, (BATCH, SEQ, INPUT_SIZE), jnp.float32)
    # init_hidden(batch) in the module uses torch.randn each forward call;
    # here: deterministic standard-normal draws of the same shape.
    h0 = jax.random.normal(k_h, (NUM_LAYERS * 2, BATCH, HIDDEN_SIZE), jnp.float32)
    c0 = jax.random.normal(k_c, (NUM_LAYERS * 2, BATCH, HIDDEN_SIZE), jnp.float32)

    params = init_lstm_params(k_p, INPUT_SIZE, HIDDEN_SIZE, NUM_LAYERS)

    forward = jax.jit(functools.partial(lstm_cell_forward,
                                        num_layers=NUM_LAYERS,
                                        hidden_size=HIDDEN_SIZE))
    output, hidden_cat = forward(x, params, h0, c0)
    jax.block_until_ready((output, hidden_cat))

    assert output.shape == (BATCH, SEQ, 2 * HIDDEN_SIZE), output.shape
    assert hidden_cat.shape == (BATCH, 2 * HIDDEN_SIZE), hidden_cat.shape
    print("KERNEL_OK")
</pallas_src>

<mosaic_0001>
module attributes {stable_mosaic.version = 11 : i64} {
  func.func @_fused_bidir_lstm_kernel(%arg0: memref<8x2x256xbf16, #tpu.memory_space<vmem>>, %arg1: memref<64x256xbf16, #tpu.memory_space<vmem>>, %arg2: memref<2x64xf32, #tpu.memory_space<vmem>>, %arg3: memref<2x64xf32, #tpu.memory_space<vmem>>, %arg4: memref<8x2x64xf32, #tpu.memory_space<vmem>>, %arg5: memref<2x64xf32, #tpu.memory_space<vmem>>) attributes {dimension_semantics = [], scalar_prefetch = 0 : i64, scratch_operands = 0 : i64, tpu.core_type = #tpu.core_type<tc>} {
    %c0 = arith.constant 0 : index
    %c0_0 = arith.constant 0 : index
    %0 = vector.load %arg2[%c0, %c0_0] : memref<2x64xf32, #tpu.memory_space<vmem>>, vector<2x64xf32>
    %c0_1 = arith.constant 0 : index
    %c0_2 = arith.constant 0 : index
    %1 = vector.load %arg3[%c0_1, %c0_2] : memref<2x64xf32, #tpu.memory_space<vmem>>, vector<2x64xf32>
    %c0_i32 = arith.constant 0 : i32
    %2 = arith.index_cast %c0_i32 : i32 to index
    %c0_3 = arith.constant 0 : index
    %c0_4 = arith.constant 0 : index
    %3 = vector.load %arg0[%2, %c0_3, %c0_4] : memref<8x2x256xbf16, #tpu.memory_space<vmem>>, vector<1x2x256xbf16>
    %4 = vector.shape_cast %3 : vector<1x2x256xbf16> to vector<2x256xbf16>
    %5 = arith.extf %4 : vector<2x256xbf16> to vector<2x256xf32>
    %6 = arith.truncf %0 : vector<2x64xf32> to vector<2x64xbf16>
    %c0_5 = arith.constant 0 : index
    %c0_6 = arith.constant 0 : index
    %7 = vector.load %arg1[%c0_5, %c0_6] : memref<64x256xbf16, #tpu.memory_space<vmem>>, vector<64x256xbf16>
    %cst = arith.constant dense<0.000000e+00> : vector<2x256xf32>
    %8 = tpu.matmul %6, %7, %cst {dimension_numbers = #tpu.dot_dimension_numbers<[1], [0], [0], [1], [0, 0, 1, 1], [], []>} : vector<2x64xbf16>, vector<64x256xbf16>, vector<2x256xf32> -> vector<2x256xf32>
    %9 = arith.addf %5, %8 : vector<2x256xf32>
    %10 = arith.negf %9 : vector<2x256xf32>
    %11 = math.exp %10 : vector<2x256xf32>
    %cst_7 = arith.constant 1.000000e+00 : f32
    %12 = vector.broadcast %cst_7 : f32 to vector<2x256xf32>
    %13 = arith.addf %12, %11 : vector<2x256xf32>
    %14 = arith.divf %12, %13 : vector<2x256xf32>
    %15 = vector.extract_strided_slice %14 {offsets = [0, 0], sizes = [2, 64], strides = [1, 1]} : vector<2x256xf32> to vector<2x64xf32>
    %16 = vector.extract_strided_slice %14 {offsets = [0, 64], sizes = [2, 64], strides = [1, 1]} : vector<2x256xf32> to vector<2x64xf32>
    %17 = vector.extract_strided_slice %14 {offsets = [0, 128], sizes = [2, 64], strides = [1, 1]} : vector<2x256xf32> to vector<2x64xf32>
    %cst_8 = arith.constant 2.000000e+00 : f32
    %18 = vector.broadcast %cst_8 : f32 to vector<2x64xf32>
    %19 = arith.mulf %18, %17 : vector<2x64xf32>
    %cst_9 = arith.constant 1.000000e+00 : f32
    %20 = vector.broadcast %cst_9 : f32 to vector<2x64xf32>
    %21 = arith.subf %19, %20 : vector<2x64xf32>
    %22 = vector.extract_strided_slice %14 {offsets = [0, 192], sizes = [2, 64], strides = [1, 1]} : vector<2x256xf32> to vector<2x64xf32>
    %23 = arith.mulf %16, %1 : vector<2x64xf32>
    %24 = arith.mulf %15, %21 : vector<2x64xf32>
    %25 = arith.addf %23, %24 : vector<2x64xf32>
    %26 = math.tanh %25 : vector<2x64xf32>
    %27 = arith.mulf %22, %26 : vector<2x64xf32>
    %28 = vector.extract_strided_slice %27 {offsets = [0, 0], sizes = [2, 32], strides = [1, 1]} : vector<2x64xf32> to vector<2x32xf32>
    %29 = arith.index_cast %c0_i32 : i32 to index
    %c0_10 = arith.constant 0 : index
    %c0_11 = arith.constant 0 : index
    %30 = vector.load %arg4[%29, %c0_10, %c0_11] : memref<8x2x64xf32, #tpu.memory_space<vmem>>, vector<1x2x32xf32>
    %31 = vector.shape_cast %30 : vector<1x2x32xf32> to vector<2x32xf32>
    %32 = vector.shape_cast %28 : vector<2x32xf32> to vector<1x2x32xf32>
    tpu.vector_store %arg4[%29, %c0_10, %c0_11], %32 {strides = array<i32>} : memref<8x2x64xf32, #tpu.memory_space<vmem>>, vector<1x2x32xf32>,
    %33 = vector.extract_strided_slice %27 {offsets = [0, 32], sizes = [2, 32], strides = [1, 1]} : vector<2x64xf32> to vector<2x32xf32>
    %c7_i32 = arith.constant 7 : i32
    %34 = arith.subi %c7_i32, %c0_i32 : i32
    %35 = arith.index_cast %34 : i32 to index
    %c0_12 = arith.constant 0 : index
    %c32 = arith.constant 32 : index
    %36 = vector.load %arg4[%35, %c0_12, %c32] : memref<8x2x64xf32, #tpu.memory_space<vmem>>, vector<1x2x32xf32>
    %37 = vector.shape_cast %36 : vector<1x2x32xf32> to vector<2x32xf32>
    %38 = vector.shape_cast %33 : vector<2x32xf32> to vector<1x2x32xf32>
    tpu.vector_store %arg4[%35, %c0_12, %c32], %38 {strides = array<i32>} : memref<8x2x64xf32, #tpu.memory_space<vmem>>, vector<1x2x32xf32>,
    %c1_i32 = arith.constant 1 : i32
    %39 = arith.index_cast %c1_i32 : i32 to index
    %c0_13 = arith.constant 0 : index
    %c0_14 = arith.constant 0 : index
    %40 = vector.load %arg0[%39, %c0_13, %c0_14] : memref<8x2x256xbf16, #tpu.memory_space<vmem>>, vector<1x2x256xbf16>
    %41 = vector.shape_cast %40 : vector<1x2x256xbf16> to vector<2x256xbf16>
    %42 = arith.extf %41 : vector<2x256xbf16> to vector<2x256xf32>
    %43 = arith.truncf %27 : vector<2x64xf32> to vector<2x64xbf16>
    %c0_15 = arith.constant 0 : index
    %c0_16 = arith.constant 0 : index
    %44 = vector.load %arg1[%c0_15, %c0_16] : memref<64x256xbf16, #tpu.memory_space<vmem>>, vector<64x256xbf16>
    %cst_17 = arith.constant dense<0.000000e+00> : vector<2x256xf32>
    %45 = tpu.matmul %43, %44, %cst_17 {dimension_numbers = #tpu.dot_dimension_numbers<[1], [0], [0], [1], [0, 0, 1, 1], [], []>} : vector<2x64xbf16>, vector<64x256xbf16>, vector<2x256xf32> -> vector<2x256xf32>
    %46 = arith.addf %42, %45 : vector<2x256xf32>
    %47 = arith.negf %46 : vector<2x256xf32>
    %48 = math.exp %47 : vector<2x256xf32>
    %cst_18 = arith.constant 1.000000e+00 : f32
    %49 = vector.broadcast %cst_18 : f32 to vector<2x256xf32>
    %50 = arith.addf %49, %48 : vector<2x256xf32>
    %51 = arith.divf %49, %50 : vector<2x256xf32>
    %52 = vector.extract_strided_slice %51 {offsets = [0, 0], sizes = [2, 64], strides = [1, 1]} : vector<2x256xf32> to vector<2x64xf32>
    %53 = vector.extract_strided_slice %51 {offsets = [0, 64], sizes = [2, 64], strides = [1, 1]} : vector<2x256xf32> to vector<2x64xf32>
    %54 = vector.extract_strided_slice %51 {offsets = [0, 128], sizes = [2, 64], strides = [1, 1]} : vector<2x256xf32> to vector<2x64xf32>
    %cst_19 = arith.constant 2.000000e+00 : f32
    %55 = vector.broadcast %cst_19 : f32 to vector<2x64xf32>
    %56 = arith.mulf %55, %54 : vector<2x64xf32>
    %cst_20 = arith.constant 1.000000e+00 : f32
    %57 = vector.broadcast %cst_20 : f32 to vector<2x64xf32>
    %58 = arith.subf %56, %57 : vector<2x64xf32>
    %59 = vector.extract_strided_slice %51 {offsets = [0, 192], sizes = [2, 64], strides = [1, 1]} : vector<2x256xf32> to vector<2x64xf32>
    %60 = arith.mulf %53, %25 : vector<2x64xf32>
    %61 = arith.mulf %52, %58 : vector<2x64xf32>
    %62 = arith.addf %60, %61 : vector<2x64xf32>
    %63 = math.tanh %62 : vector<2x64xf32>
    %64 = arith.mulf %59, %63 : vector<2x64xf32>
    %65 = vector.extract_strided_slice %64 {offsets = [0, 0], sizes = [2, 32], strides = [1, 1]} : vector<2x64xf32> to vector<2x32xf32>
    %66 = arith.index_cast %c1_i32 : i32 to index
    %c0_21 = arith.constant 0 : index
    %c0_22 = arith.constant 0 : index
    %67 = vector.load %arg4[%66, %c0_21, %c0_22] : memref<8x2x64xf32, #tpu.memory_space<vmem>>, vector<1x2x32xf32>
    %68 = vector.shape_cast %67 : vector<1x2x32xf32> to vector<2x32xf32>
    %69 = vector.shape_cast %65 : vector<2x32xf32> to vector<1x2x32xf32>
    tpu.vector_store %arg4[%66, %c0_21, %c0_22], %69 {strides = array<i32>} : memref<8x2x64xf32, #tpu.memory_space<vmem>>, vector<1x2x32xf32>,
    %70 = vector.extract_strided_slice %64 {offsets = [0, 32], sizes = [2, 32], strides = [1, 1]} : vector<2x64xf32> to vector<2x32xf32>
    %c7_i32_23 = arith.constant 7 : i32
    %71 = arith.subi %c7_i32_23, %c1_i32 : i32
    %72 = arith.index_cast %71 : i32 to index
    %c0_24 = arith.constant 0 : index
    %c32_25 = arith.constant 32 : index
    %73 = vector.load %arg4[%72, %c0_24, %c32_25] : memref<8x2x64xf32, #tpu.memory_space<vmem>>, vector<1x2x32xf32>
    %74 = vector.shape_cast %73 : vector<1x2x32xf32> to vector<2x32xf32>
    %75 = vector.shape_cast %70 : vector<2x32xf32> to vector<1x2x32xf32>
    tpu.vector_store %arg4[%72, %c0_24, %c32_25], %75 {strides = array<i32>} : memref<8x2x64xf32, #tpu.memory_space<vmem>>, vector<1x2x32xf32>,
    %c2_i32 = arith.constant 2 : i32
    %76 = arith.index_cast %c2_i32 : i32 to index
    %c0_26 = arith.constant 0 : index
    %c0_27 = arith.constant 0 : index
    %77 = vector.load %arg0[%76, %c0_26, %c0_27] : memref<8x2x256xbf16, #tpu.memory_space<vmem>>, vector<1x2x256xbf16>
    %78 = vector.shape_cast %77 : vector<1x2x256xbf16> to vector<2x256xbf16>
    %79 = arith.extf %78 : vector<2x256xbf16> to vector<2x256xf32>
    %80 = arith.truncf %64 : vector<2x64xf32> to vector<2x64xbf16>
    %c0_28 = arith.constant 0 : index
    %c0_29 = arith.constant 0 : index
    %81 = vector.load %arg1[%c0_28, %c0_29] : memref<64x256xbf16, #tpu.memory_space<vmem>>, vector<64x256xbf16>
    %cst_30 = arith.constant dense<0.000000e+00> : vector<2x256xf32>
    %82 = tpu.matmul %80, %81, %cst_30 {dimension_numbers = #tpu.dot_dimension_numbers<[1], [0], [0], [1], [0, 0, 1, 1], [], []>} : vector<2x64xbf16>, vector<64x256xbf16>, vector<2x256xf32> -> vector<2x256xf32>
    %83 = arith.addf %79, %82 : vector<2x256xf32>
    %84 = arith.negf %83 : vector<2x256xf32>
    %85 = math.exp %84 : vector<2x256xf32>
    %cst_31 = arith.constant 1.000000e+00 : f32
    %86 = vector.broadcast %cst_31 : f32 to vector<2x256xf32>
    %87 = arith.addf %86, %85 : vector<2x256xf32>
    %88 = arith.divf %86, %87 : vector<2x256xf32>
    %89 = vector.extract_strided_slice %88 {offsets = [0, 0], sizes = [2, 64], strides = [1, 1]} : vector<2x256xf32> to vector<2x64xf32>
    %90 = vector.extract_strided_slice %88 {offsets = [0, 64], sizes = [2, 64], strides = [1, 1]} : vector<2x256xf32> to vector<2x64xf32>
    %91 = vector.extract_strided_slice %88 {offsets = [0, 128], sizes = [2, 64], strides = [1, 1]} : vector<2x256xf32> to vector<2x64xf32>
    %cst_32 = arith.constant 2.000000e+00 : f32
    %92 = vector.broadcast %cst_32 : f32 to vector<2x64xf32>
    %93 = arith.mulf %92, %91 : vector<2x64xf32>
    %cst_33 = arith.constant 1.000000e+00 : f32
    %94 = vector.broadcast %cst_33 : f32 to vector<2x64xf32>
    %95 = arith.subf %93, %94 : vector<2x64xf32>
    %96 = vector.extract_strided_slice %88 {offsets = [0, 192], sizes = [2, 64], strides = [1, 1]} : vector<2x256xf32> to vector<2x64xf32>
    %97 = arith.mulf %90, %62 : vector<2x64xf32>
    %98 = arith.mulf %89, %95 : vector<2x64xf32>
    %99 = arith.addf %97, %98 : vector<2x64xf32>
    %100 = math.tanh %99 : vector<2x64xf32>
    %101 = arith.mulf %96, %100 : vector<2x64xf32>
    %102 = vector.extract_strided_slice %101 {offsets = [0, 0], sizes = [2, 32], strides = [1, 1]} : vector<2x64xf32> to vector<2x32xf32>
    %103 = arith.index_cast %c2_i32 : i32 to index
    %c0_34 = arith.constant 0 : index
    %c0_35 = arith.constant 0 : index
    %104 = vector.load %arg4[%103, %c0_34, %c0_35] : memref<8x2x64xf32, #tpu.memory_space<vmem>>, vector<1x2x32xf32>
    %105 = vector.shape_cast %104 : vector<1x2x32xf32> to vector<2x32xf32>
    %106 = vector.shape_cast %102 : vector<2x32xf32> to vector<1x2x32xf32>
    tpu.vector_store %arg4[%103, %c0_34, %c0_35], %106 {strides = array<i32>} : memref<8x2x64xf32, #tpu.memory_space<vmem>>, vector<1x2x32xf32>,
    %107 = vector.extract_strided_slice %101 {offsets = [0, 32], sizes = [2, 32], strides = [1, 1]} : vector<2x64xf32> to vector<2x32xf32>
    %c7_i32_36 = arith.constant 7 : i32
    %108 = arith.subi %c7_i32_36, %c2_i32 : i32
    %109 = arith.index_cast %108 : i32 to index
    %c0_37 = arith.constant 0 : index
    %c32_38 = arith.constant 32 : index
    %110 = vector.load %arg4[%109, %c0_37, %c32_38] : memref<8x2x64xf32, #tpu.memory_space<vmem>>, vector<1x2x32xf32>
    %111 = vector.shape_cast %110 : vector<1x2x32xf32> to vector<2x32xf32>
    %112 = vector.shape_cast %107 : vector<2x32xf32> to vector<1x2x32xf32>
    tpu.vector_store %arg4[%109, %c0_37, %c32_38], %112 {strides = array<i32>} : memref<8x2x64xf32, #tpu.memory_space<vmem>>, vector<1x2x32xf32>,
    %c3_i32 = arith.constant 3 : i32
    %113 = arith.index_cast %c3_i32 : i32 to index
    %c0_39 = arith.constant 0 : index
    %c0_40 = arith.constant 0 : index
    %114 = vector.load %arg0[%113, %c0_39, %c0_40] : memref<8x2x256xbf16, #tpu.memory_space<vmem>>, vector<1x2x256xbf16>
    %115 = vector.shape_cast %114 : vector<1x2x256xbf16> to vector<2x256xbf16>
    %116 = arith.extf %115 : vector<2x256xbf16> to vector<2x256xf32>
    %117 = arith.truncf %101 : vector<2x64xf32> to vector<2x64xbf16>
    %c0_41 = arith.constant 0 : index
    %c0_42 = arith.constant 0 : index
    %118 = vector.load %arg1[%c0_41, %c0_42] : memref<64x256xbf16, #tpu.memory_space<vmem>>, vector<64x256xbf16>
    %cst_43 = arith.constant dense<0.000000e+00> : vector<2x256xf32>
    %119 = tpu.matmul %117, %118, %cst_43 {dimension_numbers = #tpu.dot_dimension_numbers<[1], [0], [0], [1], [0, 0, 1, 1], [], []>} : vector<2x64xbf16>, vector<64x256xbf16>, vector<2x256xf32> -> vector<2x256xf32>
    %120 = arith.addf %116, %119 : vector<2x256xf32>
    %121 = arith.negf %120 : vector<2x256xf32>
    %122 = math.exp %121 : vector<2x256xf32>
    %cst_44 = arith.constant 1.000000e+00 : f32
    %123 = vector.broadcast %cst_44 : f32 to vector<2x256xf32>
    %124 = arith.addf %123, %122 : vector<2x256xf32>
    %125 = arith.divf %123, %124 : vector<2x256xf32>
    %126 = vector.extract_strided_slice %125 {offsets = [0, 0], sizes = [2, 64], strides = [1, 1]} : vector<2x256xf32> to vector<2x64xf32>
    %127 = vector.extract_strided_slice %125 {offsets = [0, 64], sizes = [2, 64], strides = [1, 1]} : vector<2x256xf32> to vector<2x64xf32>
    %128 = vector.extract_strided_slice %125 {offsets = [0, 128], sizes = [2, 64], strides = [1, 1]} : vector<2x256xf32> to vector<2x64xf32>
    %cst_45 = arith.constant 2.000000e+00 : f32
    %129 = vector.broadcast %cst_45 : f32 to vector<2x64xf32>
    %130 = arith.mulf %129, %128 : vector<2x64xf32>
    %cst_46 = arith.constant 1.000000e+00 : f32
    %131 = vector.broadcast %cst_46 : f32 to vector<2x64xf32>
    %132 = arith.subf %130, %131 : vector<2x64xf32>
    %133 = vector.extract_strided_slice %125 {offsets = [0, 192], sizes = [2, 64], strides = [1, 1]} : vector<2x256xf32> to vector<2x64xf32>
    %134 = arith.mulf %127, %99 : vector<2x64xf32>
    %135 = arith.mulf %126, %132 : vector<2x64xf32>
    %136 = arith.addf %134, %135 : vector<2x64xf32>
    %137 = math.tanh %136 : vector<2x64xf32>
    %138 = arith.mulf %133, %137 : vector<2x64xf32>
    %139 = vector.extract_strided_slice %138 {offsets = [0, 0], sizes = [2, 32], strides = [1, 1]} : vector<2x64xf32> to vector<2x32xf32>
    %140 = arith.index_cast %c3_i32 : i32 to index
    %c0_47 = arith.constant 0 : index
    %c0_48 = arith.constant 0 : index
    %141 = vector.load %arg4[%140, %c0_47, %c0_48] : memref<8x2x64xf32, #tpu.memory_space<vmem>>, vector<1x2x32xf32>
    %142 = vector.shape_cast %141 : vector<1x2x32xf32> to vector<2x32xf32>
    %143 = vector.shape_cast %139 : vector<2x32xf32> to vector<1x2x32xf32>
    tpu.vector_store %arg4[%140, %c0_47, %c0_48], %143 {strides = array<i32>} : memref<8x2x64xf32, #tpu.memory_space<vmem>>, vector<1x2x32xf32>,
    %144 = vector.extract_strided_slice %138 {offsets = [0, 32], sizes = [2, 32], strides = [1, 1]} : vector<2x64xf32> to vector<2x32xf32>
    %c7_i32_49 = arith.constant 7 : i32
    %145 = arith.subi %c7_i32_49, %c3_i32 : i32
    %146 = arith.index_cast %145 : i32 to index
    %c0_50 = arith.constant 0 : index
    %c32_51 = arith.constant 32 : index
    %147 = vector.load %arg4[%146, %c0_50, %c32_51] : memref<8x2x64xf32, #tpu.memory_space<vmem>>, vector<1x2x32xf32>
    %148 = vector.shape_cast %147 : vector<1x2x32xf32> to vector<2x32xf32>
    %149 = vector.shape_cast %144 : vector<2x32xf32> to vector<1x2x32xf32>
    tpu.vector_store %arg4[%146, %c0_50, %c32_51], %149 {strides = array<i32>} : memref<8x2x64xf32, #tpu.memory_space<vmem>>, vector<1x2x32xf32>,
    %c4_i32 = arith.constant 4 : i32
    %150 = arith.index_cast %c4_i32 : i32 to index
    %c0_52 = arith.constant 0 : index
    %c0_53 = arith.constant 0 : index
    %151 = vector.load %arg0[%150, %c0_52, %c0_53] : memref<8x2x256xbf16, #tpu.memory_space<vmem>>, vector<1x2x256xbf16>
    %152 = vector.shape_cast %151 : vector<1x2x256xbf16> to vector<2x256xbf16>
    %153 = arith.extf %152 : vector<2x256xbf16> to vector<2x256xf32>
    %154 = arith.truncf %138 : vector<2x64xf32> to vector<2x64xbf16>
    %c0_54 = arith.constant 0 : index
    %c0_55 = arith.constant 0 : index
    %155 = vector.load %arg1[%c0_54, %c0_55] : memref<64x256xbf16, #tpu.memory_space<vmem>>, vector<64x256xbf16>
    %cst_56 = arith.constant dense<0.000000e+00> : vector<2x256xf32>
    %156 = tpu.matmul %154, %155, %cst_56 {dimension_numbers = #tpu.dot_dimension_numbers<[1], [0], [0], [1], [0, 0, 1, 1], [], []>} : vector<2x64xbf16>, vector<64x256xbf16>, vector<2x256xf32> -> vector<2x256xf32>
    %157 = arith.addf %153, %156 : vector<2x256xf32>
    %158 = arith.negf %157 : vector<2x256xf32>
    %159 = math.exp %158 : vector<2x256xf32>
    %cst_57 = arith.constant 1.000000e+00 : f32
    %160 = vector.broadcast %cst_57 : f32 to vector<2x256xf32>
    %161 = arith.addf %160, %159 : vector<2x256xf32>
    %162 = arith.divf %160, %161 : vector<2x256xf32>
    %163 = vector.extract_strided_slice %162 {offsets = [0, 0], sizes = [2, 64], strides = [1, 1]} : vector<2x256xf32> to vector<2x64xf32>
    %164 = vector.extract_strided_slice %162 {offsets = [0, 64], sizes = [2, 64], strides = [1, 1]} : vector<2x256xf32> to vector<2x64xf32>
    %165 = vector.extract_strided_slice %162 {offsets = [0, 128], sizes = [2, 64], strides = [1, 1]} : vector<2x256xf32> to vector<2x64xf32>
    %cst_58 = arith.constant 2.000000e+00 : f32
    %166 = vector.broadcast %cst_58 : f32 to vector<2x64xf32>
    %167 = arith.mulf %166, %165 : vector<2x64xf32>
    %cst_59 = arith.constant 1.000000e+00 : f32
    %168 = vector.broadcast %cst_59 : f32 to vector<2x64xf32>
    %169 = arith.subf %167, %168 : vector<2x64xf32>
    %170 = vector.extract_strided_slice %162 {offsets = [0, 192], sizes = [2, 64], strides = [1, 1]} : vector<2x256xf32> to vector<2x64xf32>
    %171 = arith.mulf %164, %136 : vector<2x64xf32>
    %172 = arith.mulf %163, %169 : vector<2x64xf32>
    %173 = arith.addf %171, %172 : vector<2x64xf32>
    %174 = math.tanh %173 : vector<2x64xf32>
    %175 = arith.mulf %170, %174 : vector<2x64xf32>
    %176 = vector.extract_strided_slice %175 {offsets = [0, 0], sizes = [2, 32], strides = [1, 1]} : vector<2x64xf32> to vector<2x32xf32>
    %177 = arith.index_cast %c4_i32 : i32 to index
    %c0_60 = arith.constant 0 : index
    %c0_61 = arith.constant 0 : index
    %178 = vector.load %arg4[%177, %c0_60, %c0_61] : memref<8x2x64xf32, #tpu.memory_space<vmem>>, vector<1x2x32xf32>
    %179 = vector.shape_cast %178 : vector<1x2x32xf32> to vector<2x32xf32>
    %180 = vector.shape_cast %176 : vector<2x32xf32> to vector<1x2x32xf32>
    tpu.vector_store %arg4[%177, %c0_60, %c0_61], %180 {strides = array<i32>} : memref<8x2x64xf32, #tpu.memory_space<vmem>>, vector<1x2x32xf32>,
    %181 = vector.extract_strided_slice %175 {offsets = [0, 32], sizes = [2, 32], strides = [1, 1]} : vector<2x64xf32> to vector<2x32xf32>
    %c7_i32_62 = arith.constant 7 : i32
    %182 = arith.subi %c7_i32_62, %c4_i32 : i32
    %183 = arith.index_cast %182 : i32 to index
    %c0_63 = arith.constant 0 : index
    %c32_64 = arith.constant 32 : index
    %184 = vector.load %arg4[%183, %c0_63, %c32_64] : memref<8x2x64xf32, #tpu.memory_space<vmem>>, vector<1x2x32xf32>
    %185 = vector.shape_cast %184 : vector<1x2x32xf32> to vector<2x32xf32>
    %186 = vector.shape_cast %181 : vector<2x32xf32> to vector<1x2x32xf32>
    tpu.vector_store %arg4[%183, %c0_63, %c32_64], %186 {strides = array<i32>} : memref<8x2x64xf32, #tpu.memory_space<vmem>>, vector<1x2x32xf32>,
    %c5_i32 = arith.constant 5 : i32
    %187 = arith.index_cast %c5_i32 : i32 to index
    %c0_65 = arith.constant 0 : index
    %c0_66 = arith.constant 0 : index
    %188 = vector.load %arg0[%187, %c0_65, %c0_66] : memref<8x2x256xbf16, #tpu.memory_space<vmem>>, vector<1x2x256xbf16>
    %189 = vector.shape_cast %188 : vector<1x2x256xbf16> to vector<2x256xbf16>
    %190 = arith.extf %189 : vector<2x256xbf16> to vector<2x256xf32>
    %191 = arith.truncf %175 : vector<2x64xf32> to vector<2x64xbf16>
    %c0_67 = arith.constant 0 : index
    %c0_68 = arith.constant 0 : index
    %192 = vector.load %arg1[%c0_67, %c0_68] : memref<64x256xbf16, #tpu.memory_space<vmem>>, vector<64x256xbf16>
    %cst_69 = arith.constant dense<0.000000e+00> : vector<2x256xf32>
    %193 = tpu.matmul %191, %192, %cst_69 {dimension_numbers = #tpu.dot_dimension_numbers<[1], [0], [0], [1], [0, 0, 1, 1], [], []>} : vector<2x64xbf16>, vector<64x256xbf16>, vector<2x256xf32> -> vector<2x256xf32>
    %194 = arith.addf %190, %193 : vector<2x256xf32>
    %195 = arith.negf %194 : vector<2x256xf32>
    %196 = math.exp %195 : vector<2x256xf32>
    %cst_70 = arith.constant 1.000000e+00 : f32
    %197 = vector.broadcast %cst_70 : f32 to vector<2x256xf32>
    %198 = arith.addf %197, %196 : vector<2x256xf32>
    %199 = arith.divf %197, %198 : vector<2x256xf32>
    %200 = vector.extract_strided_slice %199 {offsets = [0, 0], sizes = [2, 64], strides = [1, 1]} : vector<2x256xf32> to vector<2x64xf32>
    %201 = vector.extract_strided_slice %199 {offsets = [0, 64], sizes = [2, 64], strides = [1, 1]} : vector<2x256xf32> to vector<2x64xf32>
    %202 = vector.extract_strided_slice %199 {offsets = [0, 128], sizes = [2, 64], strides = [1, 1]} : vector<2x256xf32> to vector<2x64xf32>
    %cst_71 = arith.constant 2.000000e+00 : f32
    %203 = vector.broadcast %cst_71 : f32 to vector<2x64xf32>
    %204 = arith.mulf %203, %202 : vector<2x64xf32>
    %cst_72 = arith.constant 1.000000e+00 : f32
    %205 = vector.broadcast %cst_72 : f32 to vector<2x64xf32>
    %206 = arith.subf %204, %205 : vector<2x64xf32>
    %207 = vector.extract_strided_slice %199 {offsets = [0, 192], sizes = [2, 64], strides = [1, 1]} : vector<2x256xf32> to vector<2x64xf32>
    %208 = arith.mulf %201, %173 : vector<2x64xf32>
    %209 = arith.mulf %200, %206 : vector<2x64xf32>
    %210 = arith.addf %208, %209 : vector<2x64xf32>
    %211 = math.tanh %210 : vector<2x64xf32>
    %212 = arith.mulf %207, %211 : vector<2x64xf32>
    %213 = vector.extract_strided_slice %212 {offsets = [0, 0], sizes = [2, 32], strides = [1, 1]} : vector<2x64xf32> to vector<2x32xf32>
    %214 = arith.index_cast %c5_i32 : i32 to index
    %c0_73 = arith.constant 0 : index
    %c0_74 = arith.constant 0 : index
    %215 = vector.load %arg4[%214, %c0_73, %c0_74] : memref<8x2x64xf32, #tpu.memory_space<vmem>>, vector<1x2x32xf32>
    %216 = vector.shape_cast %215 : vector<1x2x32xf32> to vector<2x32xf32>
    %217 = vector.shape_cast %213 : vector<2x32xf32> to vector<1x2x32xf32>
    tpu.vector_store %arg4[%214, %c0_73, %c0_74], %217 {strides = array<i32>} : memref<8x2x64xf32, #tpu.memory_space<vmem>>, vector<1x2x32xf32>,
    %218 = vector.extract_strided_slice %212 {offsets = [0, 32], sizes = [2, 32], strides = [1, 1]} : vector<2x64xf32> to vector<2x32xf32>
    %c7_i32_75 = arith.constant 7 : i32
    %219 = arith.subi %c7_i32_75, %c5_i32 : i32
    %220 = arith.index_cast %219 : i32 to index
    %c0_76 = arith.constant 0 : index
    %c32_77 = arith.constant 32 : index
    %221 = vector.load %arg4[%220, %c0_76, %c32_77] : memref<8x2x64xf32, #tpu.memory_space<vmem>>, vector<1x2x32xf32>
    %222 = vector.shape_cast %221 : vector<1x2x32xf32> to vector<2x32xf32>
    %223 = vector.shape_cast %218 : vector<2x32xf32> to vector<1x2x32xf32>
    tpu.vector_store %arg4[%220, %c0_76, %c32_77], %223 {strides = array<i32>} : memref<8x2x64xf32, #tpu.memory_space<vmem>>, vector<1x2x32xf32>,
    %c6_i32 = arith.constant 6 : i32
    %224 = arith.index_cast %c6_i32 : i32 to index
    %c0_78 = arith.constant 0 : index
    %c0_79 = arith.constant 0 : index
    %225 = vector.load %arg0[%224, %c0_78, %c0_79] : memref<8x2x256xbf16, #tpu.memory_space<vmem>>, vector<1x2x256xbf16>
    %226 = vector.shape_cast %225 : vector<1x2x256xbf16> to vector<2x256xbf16>
    %227 = arith.extf %226 : vector<2x256xbf16> to vector<2x256xf32>
    %228 = arith.truncf %212 : vector<2x64xf32> to vector<2x64xbf16>
    %c0_80 = arith.constant 0 : index
    %c0_81 = arith.constant 0 : index
    %229 = vector.load %arg1[%c0_80, %c0_81] : memref<64x256xbf16, #tpu.memory_space<vmem>>, vector<64x256xbf16>
    %cst_82 = arith.constant dense<0.000000e+00> : vector<2x256xf32>
    %230 = tpu.matmul %228, %229, %cst_82 {dimension_numbers = #tpu.dot_dimension_numbers<[1], [0], [0], [1], [0, 0, 1, 1], [], []>} : vector<2x64xbf16>, vector<64x256xbf16>, vector<2x256xf32> -> vector<2x256xf32>
    %231 = arith.addf %227, %230 : vector<2x256xf32>
    %232 = arith.negf %231 : vector<2x256xf32>
    %233 = math.exp %232 : vector<2x256xf32>
    %cst_83 = arith.constant 1.000000e+00 : f32
    %234 = vector.broadcast %cst_83 : f32 to vector<2x256xf32>
    %235 = arith.addf %234, %233 : vector<2x256xf32>
    %236 = arith.divf %234, %235 : vector<2x256xf32>
    %237 = vector.extract_strided_slice %236 {offsets = [0, 0], sizes = [2, 64], strides = [1, 1]} : vector<2x256xf32> to vector<2x64xf32>
    %238 = vector.extract_strided_slice %236 {offsets = [0, 64], sizes = [2, 64], strides = [1, 1]} : vector<2x256xf32> to vector<2x64xf32>
    %239 = vector.extract_strided_slice %236 {offsets = [0, 128], sizes = [2, 64], strides = [1, 1]} : vector<2x256xf32> to vector<2x64xf32>
    %cst_84 = arith.constant 2.000000e+00 : f32
    %240 = vector.broadcast %cst_84 : f32 to vector<2x64xf32>
    %241 = arith.mulf %240, %239 : vector<2x64xf32>
    %cst_85 = arith.constant 1.000000e+00 : f32
    %242 = vector.broadcast %cst_85 : f32 to vector<2x64xf32>
    %243 = arith.subf %241, %242 : vector<2x64xf32>
    %244 = vector.extract_strided_slice %236 {offsets = [0, 192], sizes = [2, 64], strides = [1, 1]} : vector<2x256xf32> to vector<2x64xf32>
    %245 = arith.mulf %238, %210 : vector<2x64xf32>
    %246 = arith.mulf %237, %243 : vector<2x64xf32>
    %247 = arith.addf %245, %246 : vector<2x64xf32>
    %248 = math.tanh %247 : vector<2x64xf32>
    %249 = arith.mulf %244, %248 : vector<2x64xf32>
    %250 = vector.extract_strided_slice %249 {offsets = [0, 0], sizes = [2, 32], strides = [1, 1]} : vector<2x64xf32> to vector<2x32xf32>
    %251 = arith.index_cast %c6_i32 : i32 to index
    %c0_86 = arith.constant 0 : index
    %c0_87 = arith.constant 0 : index
    %252 = vector.load %arg4[%251, %c0_86, %c0_87] : memref<8x2x64xf32, #tpu.memory_space<vmem>>, vector<1x2x32xf32>
    %253 = vector.shape_cast %252 : vector<1x2x32xf32> to vector<2x32xf32>
    %254 = vector.shape_cast %250 : vector<2x32xf32> to vector<1x2x32xf32>
    tpu.vector_store %arg4[%251, %c0_86, %c0_87], %254 {strides = array<i32>} : memref<8x2x64xf32, #tpu.memory_space<vmem>>, vector<1x2x32xf32>,
    %255 = vector.extract_strided_slice %249 {offsets = [0, 32], sizes = [2, 32], strides = [1, 1]} : vector<2x64xf32> to vector<2x32xf32>
    %c7_i32_88 = arith.constant 7 : i32
    %256 = arith.subi %c7_i32_88, %c6_i32 : i32
    %257 = arith.index_cast %256 : i32 to index
    %c0_89 = arith.constant 0 : index
    %c32_90 = arith.constant 32 : index
    %258 = vector.load %arg4[%257, %c0_89, %c32_90] : memref<8x2x64xf32, #tpu.memory_space<vmem>>, vector<1x2x32xf32>
    %259 = vector.shape_cast %258 : vector<1x2x32xf32> to vector<2x32xf32>
    %260 = vector.shape_cast %255 : vector<2x32xf32> to vector<1x2x32xf32>
    tpu.vector_store %arg4[%257, %c0_89, %c32_90], %260 {strides = array<i32>} : memref<8x2x64xf32, #tpu.memory_space<vmem>>, vector<1x2x32xf32>,
    %c7_i32_91 = arith.constant 7 : i32
    %261 = arith.index_cast %c7_i32_91 : i32 to index
    %c0_92 = arith.constant 0 : index
    %c0_93 = arith.constant 0 : index
    %262 = vector.load %arg0[%261, %c0_92, %c0_93] : memref<8x2x256xbf16, #tpu.memory_space<vmem>>, vector<1x2x256xbf16>
    %263 = vector.shape_cast %262 : vector<1x2x256xbf16> to vector<2x256xbf16>
    %264 = arith.extf %263 : vector<2x256xbf16> to vector<2x256xf32>
    %265 = arith.truncf %249 : vector<2x64xf32> to vector<2x64xbf16>
    %c0_94 = arith.constant 0 : index
    %c0_95 = arith.constant 0 : index
    %266 = vector.load %arg1[%c0_94, %c0_95] : memref<64x256xbf16, #tpu.memory_space<vmem>>, vector<64x256xbf16>
    %cst_96 = arith.constant dense<0.000000e+00> : vector<2x256xf32>
    %267 = tpu.matmul %265, %266, %cst_96 {dimension_numbers = #tpu.dot_dimension_numbers<[1], [0], [0], [1], [0, 0, 1, 1], [], []>} : vector<2x64xbf16>, vector<64x256xbf16>, vector<2x256xf32> -> vector<2x256xf32>
    %268 = arith.addf %264, %267 : vector<2x256xf32>
    %269 = arith.negf %268 : vector<2x256xf32>
    %270 = math.exp %269 : vector<2x256xf32>
    %cst_97 = arith.constant 1.000000e+00 : f32
    %271 = vector.broadcast %cst_97 : f32 to vector<2x256xf32>
    %272 = arith.addf %271, %270 : vector<2x256xf32>
    %273 = arith.divf %271, %272 : vector<2x256xf32>
    %274 = vector.extract_strided_slice %273 {offsets = [0, 0], sizes = [2, 64], strides = [1, 1]} : vector<2x256xf32> to vector<2x64xf32>
    %275 = vector.extract_strided_slice %273 {offsets = [0, 64], sizes = [2, 64], strides = [1, 1]} : vector<2x256xf32> to vector<2x64xf32>
    %276 = vector.extract_strided_slice %273 {offsets = [0, 128], sizes = [2, 64], strides = [1, 1]} : vector<2x256xf32> to vector<2x64xf32>
    %cst_98 = arith.constant 2.000000e+00 : f32
    %277 = vector.broadcast %cst_98 : f32 to vector<2x64xf32>
    %278 = arith.mulf %277, %276 : vector<2x64xf32>
    %cst_99 = arith.constant 1.000000e+00 : f32
    %279 = vector.broadcast %cst_99 : f32 to vector<2x64xf32>
    %280 = arith.subf %278, %279 : vector<2x64xf32>
    %281 = vector.extract_strided_slice %273 {offsets = [0, 192], sizes = [2, 64], strides = [1, 1]} : vector<2x256xf32> to vector<2x64xf32>
    %282 = arith.mulf %275, %247 : vector<2x64xf32>
    %283 = arith.mulf %274, %280 : vector<2x64xf32>
    %284 = arith.addf %282, %283 : vector<2x64xf32>
    %285 = math.tanh %284 : vector<2x64xf32>
    %286 = arith.mulf %281, %285 : vector<2x64xf32>
    %287 = vector.extract_strided_slice %286 {offsets = [0, 0], sizes = [2, 32], strides = [1, 1]} : vector<2x64xf32> to vector<2x32xf32>
    %288 = arith.index_cast %c7_i32_91 : i32 to index
    %c0_100 = arith.constant 0 : index
    %c0_101 = arith.constant 0 : index
    %289 = vector.load %arg4[%288, %c0_100, %c0_101] : memref<8x2x64xf32, #tpu.memory_space<vmem>>, vector<1x2x32xf32>
    %290 = vector.shape_cast %289 : vector<1x2x32xf32> to vector<2x32xf32>
    %291 = vector.shape_cast %287 : vector<2x32xf32> to vector<1x2x32xf32>
    tpu.vector_store %arg4[%288, %c0_100, %c0_101], %291 {strides = array<i32>} : memref<8x2x64xf32, #tpu.memory_space<vmem>>, vector<1x2x32xf32>,
    %292 = vector.extract_strided_slice %286 {offsets = [0, 32], sizes = [2, 32], strides = [1, 1]} : vector<2x64xf32> to vector<2x32xf32>
    %c7_i32_102 = arith.constant 7 : i32
    %293 = arith.subi %c7_i32_102, %c7_i32_91 : i32
    %294 = arith.index_cast %293 : i32 to index
    %c0_103 = arith.constant 0 : index
    %c32_104 = arith.constant 32 : index
    %295 = vector.load %arg4[%294, %c0_103, %c32_104] : memref<8x2x64xf32, #tpu.memory_space<vmem>>, vector<1x2x32xf32>
    %296 = vector.shape_cast %295 : vector<1x2x32xf32> to vector<2x32xf32>
    %297 = vector.shape_cast %292 : vector<2x32xf32> to vector<1x2x32xf32>
    tpu.vector_store %arg4[%294, %c0_103, %c32_104], %297 {strides = array<i32>} : memref<8x2x64xf32, #tpu.memory_space<vmem>>, vector<1x2x32xf32>,
    %c8_i32 = arith.constant 8 : i32
    %c0_105 = arith.constant 0 : index
    %c0_106 = arith.constant 0 : index
    %298 = vector.load %arg5[%c0_105, %c0_106] : memref<2x64xf32, #tpu.memory_space<vmem>>, vector<2x64xf32>
    tpu.vector_store %arg5[%c0_105, %c0_106], %286 {strides = array<i32>} : memref<2x64xf32, #tpu.memory_space<vmem>>, vector<2x64xf32>,
    return
  }
}

module attributes {stable_mosaic.version = 11 : i64} {
  func.func @_fused_bidir_lstm_kernel(%arg0: memref<8x2x256xbf16, #tpu.memory_space<vmem>>, %arg1: memref<64x256xbf16, #tpu.memory_space<vmem>>, %arg2: memref<2x64xf32, #tpu.memory_space<vmem>>, %arg3: memref<2x64xf32, #tpu.memory_space<vmem>>, %arg4: memref<8x2x64xf32, #tpu.memory_space<vmem>>, %arg5: memref<2x64xf32, #tpu.memory_space<vmem>>) attributes {dimension_semantics = [], scalar_prefetch = 0 : i64, scratch_operands = 0 : i64, tpu.core_type = #tpu.core_type<tc>} {
    %c0 = arith.constant 0 : index
    %c0_0 = arith.constant 0 : index
    %0 = vector.load %arg2[%c0, %c0_0] : memref<2x64xf32, #tpu.memory_space<vmem>>, vector<2x64xf32>
    %c0_1 = arith.constant 0 : index
    %c0_2 = arith.constant 0 : index
    %1 = vector.load %arg3[%c0_1, %c0_2] : memref<2x64xf32, #tpu.memory_space<vmem>>, vector<2x64xf32>
    %c0_i32 = arith.constant 0 : i32
    %2 = arith.index_cast %c0_i32 : i32 to index
    %c0_3 = arith.constant 0 : index
    %c0_4 = arith.constant 0 : index
    %3 = vector.load %arg0[%2, %c0_3, %c0_4] : memref<8x2x256xbf16, #tpu.memory_space<vmem>>, vector<1x2x256xbf16>
    %4 = vector.shape_cast %3 : vector<1x2x256xbf16> to vector<2x256xbf16>
    %5 = arith.extf %4 : vector<2x256xbf16> to vector<2x256xf32>
    %6 = arith.truncf %0 : vector<2x64xf32> to vector<2x64xbf16>
    %c0_5 = arith.constant 0 : index
    %c0_6 = arith.constant 0 : index
    %7 = vector.load %arg1[%c0_5, %c0_6] : memref<64x256xbf16, #tpu.memory_space<vmem>>, vector<64x256xbf16>
    %cst = arith.constant dense<0.000000e+00> : vector<2x256xf32>
    %8 = tpu.matmul %6, %7, %cst {dimension_numbers = #tpu.dot_dimension_numbers<[1], [0], [0], [1], [0, 0, 1, 1], [], []>} : vector<2x64xbf16>, vector<64x256xbf16>, vector<2x256xf32> -> vector<2x256xf32>
    %9 = arith.addf %5, %8 : vector<2x256xf32>
    %10 = arith.negf %9 : vector<2x256xf32>
    %11 = math.exp %10 : vector<2x256xf32>
    %cst_7 = arith.constant 1.000000e+00 : f32
    %12 = vector.broadcast %cst_7 : f32 to vector<2x256xf32>
    %13 = arith.addf %12, %11 : vector<2x256xf32>
    %14 = arith.divf %12, %13 : vector<2x256xf32>
    %15 = vector.extract_strided_slice %14 {offsets = [0, 0], sizes = [2, 64], strides = [1, 1]} : vector<2x256xf32> to vector<2x64xf32>
    %16 = vector.extract_strided_slice %14 {offsets = [0, 64], sizes = [2, 64], strides = [1, 1]} : vector<2x256xf32> to vector<2x64xf32>
    %17 = vector.extract_strided_slice %14 {offsets = [0, 128], sizes = [2, 64], strides = [1, 1]} : vector<2x256xf32> to vector<2x64xf32>
    %cst_8 = arith.constant 2.000000e+00 : f32
    %18 = vector.broadcast %cst_8 : f32 to vector<2x64xf32>
    %19 = arith.mulf %18, %17 : vector<2x64xf32>
    %cst_9 = arith.constant 1.000000e+00 : f32
    %20 = vector.broadcast %cst_9 : f32 to vector<2x64xf32>
    %21 = arith.subf %19, %20 : vector<2x64xf32>
    %22 = vector.extract_strided_slice %14 {offsets = [0, 192], sizes = [2, 64], strides = [1, 1]} : vector<2x256xf32> to vector<2x64xf32>
    %23 = arith.mulf %16, %1 : vector<2x64xf32>
    %24 = arith.mulf %15, %21 : vector<2x64xf32>
    %25 = arith.addf %23, %24 : vector<2x64xf32>
    %26 = math.tanh %25 : vector<2x64xf32>
    %27 = arith.mulf %22, %26 : vector<2x64xf32>
    %28 = vector.extract_strided_slice %27 {offsets = [0, 0], sizes = [2, 32], strides = [1, 1]} : vector<2x64xf32> to vector<2x32xf32>
    %29 = arith.index_cast %c0_i32 : i32 to index
    %c0_10 = arith.constant 0 : index
    %c0_11 = arith.constant 0 : index
    %30 = vector.load %arg4[%29, %c0_10, %c0_11] : memref<8x2x64xf32, #tpu.memory_space<vmem>>, vector<1x2x32xf32>
    %31 = vector.shape_cast %30 : vector<1x2x32xf32> to vector<2x32xf32>
    %32 = vector.shape_cast %28 : vector<2x32xf32> to vector<1x2x32xf32>
    tpu.vector_store %arg4[%29, %c0_10, %c0_11], %32 {strides = array<i32>} : memref<8x2x64xf32, #tpu.memory_space<vmem>>, vector<1x2x32xf32>,
    %33 = vector.extract_strided_slice %27 {offsets = [0, 32], sizes = [2, 32], strides = [1, 1]} : vector<2x64xf32> to vector<2x32xf32>
    %c7_i32 = arith.constant 7 : i32
    %34 = arith.subi %c7_i32, %c0_i32 : i32
    %35 = arith.index_cast %34 : i32 to index
    %c0_12 = arith.constant 0 : index
    %c32 = arith.constant 32 : index
    %36 = vector.load %arg4[%35, %c0_12, %c32] : memref<8x2x64xf32, #tpu.memory_space<vmem>>, vector<1x2x32xf32>
    %37 = vector.shape_cast %36 : vector<1x2x32xf32> to vector<2x32xf32>
    %38 = vector.shape_cast %33 : vector<2x32xf32> to vector<1x2x32xf32>
    tpu.vector_store %arg4[%35, %c0_12, %c32], %38 {strides = array<i32>} : memref<8x2x64xf32, #tpu.memory_space<vmem>>, vector<1x2x32xf32>,
    %c1_i32 = arith.constant 1 : i32
    %39 = arith.index_cast %c1_i32 : i32 to index
    %c0_13 = arith.constant 0 : index
    %c0_14 = arith.constant 0 : index
    %40 = vector.load %arg0[%39, %c0_13, %c0_14] : memref<8x2x256xbf16, #tpu.memory_space<vmem>>, vector<1x2x256xbf16>
    %41 = vector.shape_cast %40 : vector<1x2x256xbf16> to vector<2x256xbf16>
    %42 = arith.extf %41 : vector<2x256xbf16> to vector<2x256xf32>
    %43 = arith.truncf %27 : vector<2x64xf32> to vector<2x64xbf16>
    %c0_15 = arith.constant 0 : index
    %c0_16 = arith.constant 0 : index
    %44 = vector.load %arg1[%c0_15, %c0_16] : memref<64x256xbf16, #tpu.memory_space<vmem>>, vector<64x256xbf16>
    %cst_17 = arith.constant dense<0.000000e+00> : vector<2x256xf32>
    %45 = tpu.matmul %43, %44, %cst_17 {dimension_numbers = #tpu.dot_dimension_numbers<[1], [0], [0], [1], [0, 0, 1, 1], [], []>} : vector<2x64xbf16>, vector<64x256xbf16>, vector<2x256xf32> -> vector<2x256xf32>
    %46 = arith.addf %42, %45 : vector<2x256xf32>
    %47 = arith.negf %46 : vector<2x256xf32>
    %48 = math.exp %47 : vector<2x256xf32>
    %cst_18 = arith.constant 1.000000e+00 : f32
    %49 = vector.broadcast %cst_18 : f32 to vector<2x256xf32>
    %50 = arith.addf %49, %48 : vector<2x256xf32>
    %51 = arith.divf %49, %50 : vector<2x256xf32>
    %52 = vector.extract_strided_slice %51 {offsets = [0, 0], sizes = [2, 64], strides = [1, 1]} : vector<2x256xf32> to vector<2x64xf32>
    %53 = vector.extract_strided_slice %51 {offsets = [0, 64], sizes = [2, 64], strides = [1, 1]} : vector<2x256xf32> to vector<2x64xf32>
    %54 = vector.extract_strided_slice %51 {offsets = [0, 128], sizes = [2, 64], strides = [1, 1]} : vector<2x256xf32> to vector<2x64xf32>
    %cst_19 = arith.constant 2.000000e+00 : f32
    %55 = vector.broadcast %cst_19 : f32 to vector<2x64xf32>
    %56 = arith.mulf %55, %54 : vector<2x64xf32>
    %cst_20 = arith.constant 1.000000e+00 : f32
    %57 = vector.broadcast %cst_20 : f32 to vector<2x64xf32>
    %58 = arith.subf %56, %57 : vector<2x64xf32>
    %59 = vector.extract_strided_slice %51 {offsets = [0, 192], sizes = [2, 64], strides = [1, 1]} : vector<2x256xf32> to vector<2x64xf32>
    %60 = arith.mulf %53, %25 : vector<2x64xf32>
    %61 = arith.mulf %52, %58 : vector<2x64xf32>
    %62 = arith.addf %60, %61 : vector<2x64xf32>
    %63 = math.tanh %62 : vector<2x64xf32>
    %64 = arith.mulf %59, %63 : vector<2x64xf32>
    %65 = vector.extract_strided_slice %64 {offsets = [0, 0], sizes = [2, 32], strides = [1, 1]} : vector<2x64xf32> to vector<2x32xf32>
    %66 = arith.index_cast %c1_i32 : i32 to index
    %c0_21 = arith.constant 0 : index
    %c0_22 = arith.constant 0 : index
    %67 = vector.load %arg4[%66, %c0_21, %c0_22] : memref<8x2x64xf32, #tpu.memory_space<vmem>>, vector<1x2x32xf32>
    %68 = vector.shape_cast %67 : vector<1x2x32xf32> to vector<2x32xf32>
    %69 = vector.shape_cast %65 : vector<2x32xf32> to vector<1x2x32xf32>
    tpu.vector_store %arg4[%66, %c0_21, %c0_22], %69 {strides = array<i32>} : memref<8x2x64xf32, #tpu.memory_space<vmem>>, vector<1x2x32xf32>,
    %70 = vector.extract_strided_slice %64 {offsets = [0, 32], sizes = [2, 32], strides = [1, 1]} : vector<2x64xf32> to vector<2x32xf32>
    %c7_i32_23 = arith.constant 7 : i32
    %71 = arith.subi %c7_i32_23, %c1_i32 : i32
    %72 = arith.index_cast %71 : i32 to index
    %c0_24 = arith.constant 0 : index
    %c32_25 = arith.constant 32 : index
    %73 = vector.load %arg4[%72, %c0_24, %c32_25] : memref<8x2x64xf32, #tpu.memory_space<vmem>>, vector<1x2x32xf32>
    %74 = vector.shape_cast %73 : vector<1x2x32xf32> to vector<2x32xf32>
    %75 = vector.shape_cast %70 : vector<2x32xf32> to vector<1x2x32xf32>
    tpu.vector_store %arg4[%72, %c0_24, %c32_25], %75 {strides = array<i32>} : memref<8x2x64xf32, #tpu.memory_space<vmem>>, vector<1x2x32xf32>,
    %c2_i32 = arith.constant 2 : i32
    %76 = arith.index_cast %c2_i32 : i32 to index
    %c0_26 = arith.constant 0 : index
    %c0_27 = arith.constant 0 : index
    %77 = vector.load %arg0[%76, %c0_26, %c0_27] : memref<8x2x256xbf16, #tpu.memory_space<vmem>>, vector<1x2x256xbf16>
    %78 = vector.shape_cast %77 : vector<1x2x256xbf16> to vector<2x256xbf16>
    %79 = arith.extf %78 : vector<2x256xbf16> to vector<2x256xf32>
    %80 = arith.truncf %64 : vector<2x64xf32> to vector<2x64xbf16>
    %c0_28 = arith.constant 0 : index
    %c0_29 = arith.constant 0 : index
    %81 = vector.load %arg1[%c0_28, %c0_29] : memref<64x256xbf16, #tpu.memory_space<vmem>>, vector<64x256xbf16>
    %cst_30 = arith.constant dense<0.000000e+00> : vector<2x256xf32>
    %82 = tpu.matmul %80, %81, %cst_30 {dimension_numbers = #tpu.dot_dimension_numbers<[1], [0], [0], [1], [0, 0, 1, 1], [], []>} : vector<2x64xbf16>, vector<64x256xbf16>, vector<2x256xf32> -> vector<2x256xf32>
    %83 = arith.addf %79, %82 : vector<2x256xf32>
    %84 = arith.negf %83 : vector<2x256xf32>
    %85 = math.exp %84 : vector<2x256xf32>
    %cst_31 = arith.constant 1.000000e+00 : f32
    %86 = vector.broadcast %cst_31 : f32 to vector<2x256xf32>
    %87 = arith.addf %86, %85 : vector<2x256xf32>
    %88 = arith.divf %86, %87 : vector<2x256xf32>
    %89 = vector.extract_strided_slice %88 {offsets = [0, 0], sizes = [2, 64], strides = [1, 1]} : vector<2x256xf32> to vector<2x64xf32>
    %90 = vector.extract_strided_slice %88 {offsets = [0, 64], sizes = [2, 64], strides = [1, 1]} : vector<2x256xf32> to vector<2x64xf32>
    %91 = vector.extract_strided_slice %88 {offsets = [0, 128], sizes = [2, 64], strides = [1, 1]} : vector<2x256xf32> to vector<2x64xf32>
    %cst_32 = arith.constant 2.000000e+00 : f32
    %92 = vector.broadcast %cst_32 : f32 to vector<2x64xf32>
    %93 = arith.mulf %92, %91 : vector<2x64xf32>
    %cst_33 = arith.constant 1.000000e+00 : f32
    %94 = vector.broadcast %cst_33 : f32 to vector<2x64xf32>
    %95 = arith.subf %93, %94 : vector<2x64xf32>
    %96 = vector.extract_strided_slice %88 {offsets = [0, 192], sizes = [2, 64], strides = [1, 1]} : vector<2x256xf32> to vector<2x64xf32>
    %97 = arith.mulf %90, %62 : vector<2x64xf32>
    %98 = arith.mulf %89, %95 : vector<2x64xf32>
    %99 = arith.addf %97, %98 : vector<2x64xf32>
    %100 = math.tanh %99 : vector<2x64xf32>
    %101 = arith.mulf %96, %100 : vector<2x64xf32>
    %102 = vector.extract_strided_slice %101 {offsets = [0, 0], sizes = [2, 32], strides = [1, 1]} : vector<2x64xf32> to vector<2x32xf32>
    %103 = arith.index_cast %c2_i32 : i32 to index
    %c0_34 = arith.constant 0 : index
    %c0_35 = arith.constant 0 : index
    %104 = vector.load %arg4[%103, %c0_34, %c0_35] : memref<8x2x64xf32, #tpu.memory_space<vmem>>, vector<1x2x32xf32>
    %105 = vector.shape_cast %104 : vector<1x2x32xf32> to vector<2x32xf32>
    %106 = vector.shape_cast %102 : vector<2x32xf32> to vector<1x2x32xf32>
    tpu.vector_store %arg4[%103, %c0_34, %c0_35], %106 {strides = array<i32>} : memref<8x2x64xf32, #tpu.memory_space<vmem>>, vector<1x2x32xf32>,
    %107 = vector.extract_strided_slice %101 {offsets = [0, 32], sizes = [2, 32], strides = [1, 1]} : vector<2x64xf32> to vector<2x32xf32>
    %c7_i32_36 = arith.constant 7 : i32
    %108 = arith.subi %c7_i32_36, %c2_i32 : i32
    %109 = arith.index_cast %108 : i32 to index
    %c0_37 = arith.constant 0 : index
    %c32_38 = arith.constant 32 : index
    %110 = vector.load %arg4[%109, %c0_37, %c32_38] : memref<8x2x64xf32, #tpu.memory_space<vmem>>, vector<1x2x32xf32>
    %111 = vector.shape_cast %110 : vector<1x2x32xf32> to vector<2x32xf32>
    %112 = vector.shape_cast %107 : vector<2x32xf32> to vector<1x2x32xf32>
    tpu.vector_store %arg4[%109, %c0_37, %c32_38], %112 {strides = array<i32>} : memref<8x2x64xf32, #tpu.memory_space<vmem>>, vector<1x2x32xf32>,
    %c3_i32 = arith.constant 3 : i32
    %113 = arith.index_cast %c3_i32 : i32 to index
    %c0_39 = arith.constant 0 : index
    %c0_40 = arith.constant 0 : index
    %114 = vector.load %arg0[%113, %c0_39, %c0_40] : memref<8x2x256xbf16, #tpu.memory_space<vmem>>, vector<1x2x256xbf16>
    %115 = vector.shape_cast %114 : vector<1x2x256xbf16> to vector<2x256xbf16>
    %116 = arith.extf %115 : vector<2x256xbf16> to vector<2x256xf32>
    %117 = arith.truncf %101 : vector<2x64xf32> to vector<2x64xbf16>
    %c0_41 = arith.constant 0 : index
    %c0_42 = arith.constant 0 : index
    %118 = vector.load %arg1[%c0_41, %c0_42] : memref<64x256xbf16, #tpu.memory_space<vmem>>, vector<64x256xbf16>
    %cst_43 = arith.constant dense<0.000000e+00> : vector<2x256xf32>
    %119 = tpu.matmul %117, %118, %cst_43 {dimension_numbers = #tpu.dot_dimension_numbers<[1], [0], [0], [1], [0, 0, 1, 1], [], []>} : vector<2x64xbf16>, vector<64x256xbf16>, vector<2x256xf32> -> vector<2x256xf32>
    %120 = arith.addf %116, %119 : vector<2x256xf32>
    %121 = arith.negf %120 : vector<2x256xf32>
    %122 = math.exp %121 : vector<2x256xf32>
    %cst_44 = arith.constant 1.000000e+00 : f32
    %123 = vector.broadcast %cst_44 : f32 to vector<2x256xf32>
    %124 = arith.addf %123, %122 : vector<2x256xf32>
    %125 = arith.divf %123, %124 : vector<2x256xf32>
    %126 = vector.extract_strided_slice %125 {offsets = [0, 0], sizes = [2, 64], strides = [1, 1]} : vector<2x256xf32> to vector<2x64xf32>
    %127 = vector.extract_strided_slice %125 {offsets = [0, 64], sizes = [2, 64], strides = [1, 1]} : vector<2x256xf32> to vector<2x64xf32>
    %128 = vector.extract_strided_slice %125 {offsets = [0, 128], sizes = [2, 64], strides = [1, 1]} : vector<2x256xf32> to vector<2x64xf32>
    %cst_45 = arith.constant 2.000000e+00 : f32
    %129 = vector.broadcast %cst_45 : f32 to vector<2x64xf32>
    %130 = arith.mulf %129, %128 : vector<2x64xf32>
    %cst_46 = arith.constant 1.000000e+00 : f32
    %131 = vector.broadcast %cst_46 : f32 to vector<2x64xf32>
    %132 = arith.subf %130, %131 : vector<2x64xf32>
    %133 = vector.extract_strided_slice %125 {offsets = [0, 192], sizes = [2, 64], strides = [1, 1]} : vector<2x256xf32> to vector<2x64xf32>
    %134 = arith.mulf %127, %99 : vector<2x64xf32>
    %135 = arith.mulf %126, %132 : vector<2x64xf32>
    %136 = arith.addf %134, %135 : vector<2x64xf32>
    %137 = math.tanh %136 : vector<2x64xf32>
    %138 = arith.mulf %133, %137 : vector<2x64xf32>
    %139 = vector.extract_strided_slice %138 {offsets = [0, 0], sizes = [2, 32], strides = [1, 1]} : vector<2x64xf32> to vector<2x32xf32>
    %140 = arith.index_cast %c3_i32 : i32 to index
    %c0_47 = arith.constant 0 : index
    %c0_48 = arith.constant 0 : index
    %141 = vector.load %arg4[%140, %c0_47, %c0_48] : memref<8x2x64xf32, #tpu.memory_space<vmem>>, vector<1x2x32xf32>
    %142 = vector.shape_cast %141 : vector<1x2x32xf32> to vector<2x32xf32>
    %143 = vector.shape_cast %139 : vector<2x32xf32> to vector<1x2x32xf32>
    tpu.vector_store %arg4[%140, %c0_47, %c0_48], %143 {strides = array<i32>} : memref<8x2x64xf32, #tpu.memory_space<vmem>>, vector<1x2x32xf32>,
    %144 = vector.extract_strided_slice %138 {offsets = [0, 32], sizes = [2, 32], strides = [1, 1]} : vector<2x64xf32> to vector<2x32xf32>
    %c7_i32_49 = arith.constant 7 : i32
    %145 = arith.subi %c7_i32_49, %c3_i32 : i32
    %146 = arith.index_cast %145 : i32 to index
    %c0_50 = arith.constant 0 : index
    %c32_51 = arith.constant 32 : index
    %147 = vector.load %arg4[%146, %c0_50, %c32_51] : memref<8x2x64xf32, #tpu.memory_space<vmem>>, vector<1x2x32xf32>
    %148 = vector.shape_cast %147 : vector<1x2x32xf32> to vector<2x32xf32>
    %149 = vector.shape_cast %144 : vector<2x32xf32> to vector<1x2x32xf32>
    tpu.vector_store %arg4[%146, %c0_50, %c32_51], %149 {strides = array<i32>} : memref<8x2x64xf32, #tpu.memory_space<vmem>>, vector<1x2x32xf32>,
    %c4_i32 = arith.constant 4 : i32
    %150 = arith.index_cast %c4_i32 : i32 to index
    %c0_52 = arith.constant 0 : index
    %c0_53 = arith.constant 0 : index
    %151 = vector.load %arg0[%150, %c0_52, %c0_53] : memref<8x2x256xbf16, #tpu.memory_space<vmem>>, vector<1x2x256xbf16>
    %152 = vector.shape_cast %151 : vector<1x2x256xbf16> to vector<2x256xbf16>
    %153 = arith.extf %152 : vector<2x256xbf16> to vector<2x256xf32>
    %154 = arith.truncf %138 : vector<2x64xf32> to vector<2x64xbf16>
    %c0_54 = arith.constant 0 : index
    %c0_55 = arith.constant 0 : index
    %155 = vector.load %arg1[%c0_54, %c0_55] : memref<64x256xbf16, #tpu.memory_space<vmem>>, vector<64x256xbf16>
    %cst_56 = arith.constant dense<0.000000e+00> : vector<2x256xf32>
    %156 = tpu.matmul %154, %155, %cst_56 {dimension_numbers = #tpu.dot_dimension_numbers<[1], [0], [0], [1], [0, 0, 1, 1], [], []>} : vector<2x64xbf16>, vector<64x256xbf16>, vector<2x256xf32> -> vector<2x256xf32>
    %157 = arith.addf %153, %156 : vector<2x256xf32>
    %158 = arith.negf %157 : vector<2x256xf32>
    %159 = math.exp %158 : vector<2x256xf32>
    %cst_57 = arith.constant 1.000000e+00 : f32
    %160 = vector.broadcast %cst_57 : f32 to vector<2x256xf32>
    %161 = arith.addf %160, %159 : vector<2x256xf32>
    %162 = arith.divf %160, %161 : vector<2x256xf32>
    %163 = vector.extract_strided_slice %162 {offsets = [0, 0], sizes = [2, 64], strides = [1, 1]} : vector<2x256xf32> to vector<2x64xf32>
    %164 = vector.extract_strided_slice %162 {offsets = [0, 64], sizes = [2, 64], strides = [1, 1]} : vector<2x256xf32> to vector<2x64xf32>
    %165 = vector.extract_strided_slice %162 {offsets = [0, 128], sizes = [2, 64], strides = [1, 1]} : vector<2x256xf32> to vector<2x64xf32>
    %cst_58 = arith.constant 2.000000e+00 : f32
    %166 = vector.broadcast %cst_58 : f32 to vector<2x64xf32>
    %167 = arith.mulf %166, %165 : vector<2x64xf32>
    %cst_59 = arith.constant 1.000000e+00 : f32
    %168 = vector.broadcast %cst_59 : f32 to vector<2x64xf32>
    %169 = arith.subf %167, %168 : vector<2x64xf32>
    %170 = vector.extract_strided_slice %162 {offsets = [0, 192], sizes = [2, 64], strides = [1, 1]} : vector<2x256xf32> to vector<2x64xf32>
    %171 = arith.mulf %164, %136 : vector<2x64xf32>
    %172 = arith.mulf %163, %169 : vector<2x64xf32>
    %173 = arith.addf %171, %172 : vector<2x64xf32>
    %174 = math.tanh %173 : vector<2x64xf32>
    %175 = arith.mulf %170, %174 : vector<2x64xf32>
    %176 = vector.extract_strided_slice %175 {offsets = [0, 0], sizes = [2, 32], strides = [1, 1]} : vector<2x64xf32> to vector<2x32xf32>
    %177 = arith.index_cast %c4_i32 : i32 to index
    %c0_60 = arith.constant 0 : index
    %c0_61 = arith.constant 0 : index
    %178 = vector.load %arg4[%177, %c0_60, %c0_61] : memref<8x2x64xf32, #tpu.memory_space<vmem>>, vector<1x2x32xf32>
    %179 = vector.shape_cast %178 : vector<1x2x32xf32> to vector<2x32xf32>
    %180 = vector.shape_cast %176 : vector<2x32xf32> to vector<1x2x32xf32>
    tpu.vector_store %arg4[%177, %c0_60, %c0_61], %180 {strides = array<i32>} : memref<8x2x64xf32, #tpu.memory_space<vmem>>, vector<1x2x32xf32>,
    %181 = vector.extract_strided_slice %175 {offsets = [0, 32], sizes = [2, 32], strides = [1, 1]} : vector<2x64xf32> to vector<2x32xf32>
    %c7_i32_62 = arith.constant 7 : i32
    %182 = arith.subi %c7_i32_62, %c4_i32 : i32
    %183 = arith.index_cast %182 : i32 to index
    %c0_63 = arith.constant 0 : index
    %c32_64 = arith.constant 32 : index
    %184 = vector.load %arg4[%183, %c0_63, %c32_64] : memref<8x2x64xf32, #tpu.memory_space<vmem>>, vector<1x2x32xf32>
    %185 = vector.shape_cast %184 : vector<1x2x32xf32> to vector<2x32xf32>
    %186 = vector.shape_cast %181 : vector<2x32xf32> to vector<1x2x32xf32>
    tpu.vector_store %arg4[%183, %c0_63, %c32_64], %186 {strides = array<i32>} : memref<8x2x64xf32, #tpu.memory_space<vmem>>, vector<1x2x32xf32>,
    %c5_i32 = arith.constant 5 : i32
    %187 = arith.index_cast %c5_i32 : i32 to index
    %c0_65 = arith.constant 0 : index
    %c0_66 = arith.constant 0 : index
    %188 = vector.load %arg0[%187, %c0_65, %c0_66] : memref<8x2x256xbf16, #tpu.memory_space<vmem>>, vector<1x2x256xbf16>
    %189 = vector.shape_cast %188 : vector<1x2x256xbf16> to vector<2x256xbf16>
    %190 = arith.extf %189 : vector<2x256xbf16> to vector<2x256xf32>
    %191 = arith.truncf %175 : vector<2x64xf32> to vector<2x64xbf16>
    %c0_67 = arith.constant 0 : index
    %c0_68 = arith.constant 0 : index
    %192 = vector.load %arg1[%c0_67, %c0_68] : memref<64x256xbf16, #tpu.memory_space<vmem>>, vector<64x256xbf16>
    %cst_69 = arith.constant dense<0.000000e+00> : vector<2x256xf32>
    %193 = tpu.matmul %191, %192, %cst_69 {dimension_numbers = #tpu.dot_dimension_numbers<[1], [0], [0], [1], [0, 0, 1, 1], [], []>} : vector<2x64xbf16>, vector<64x256xbf16>, vector<2x256xf32> -> vector<2x256xf32>
    %194 = arith.addf %190, %193 : vector<2x256xf32>
    %195 = arith.negf %194 : vector<2x256xf32>
    %196 = math.exp %195 : vector<2x256xf32>
    %cst_70 = arith.constant 1.000000e+00 : f32
    %197 = vector.broadcast %cst_70 : f32 to vector<2x256xf32>
    %198 = arith.addf %197, %196 : vector<2x256xf32>
    %199 = arith.divf %197, %198 : vector<2x256xf32>
    %200 = vector.extract_strided_slice %199 {offsets = [0, 0], sizes = [2, 64], strides = [1, 1]} : vector<2x256xf32> to vector<2x64xf32>
    %201 = vector.extract_strided_slice %199 {offsets = [0, 64], sizes = [2, 64], strides = [1, 1]} : vector<2x256xf32> to vector<2x64xf32>
    %202 = vector.extract_strided_slice %199 {offsets = [0, 128], sizes = [2, 64], strides = [1, 1]} : vector<2x256xf32> to vector<2x64xf32>
    %cst_71 = arith.constant 2.000000e+00 : f32
    %203 = vector.broadcast %cst_71 : f32 to vector<2x64xf32>
    %204 = arith.mulf %203, %202 : vector<2x64xf32>
    %cst_72 = arith.constant 1.000000e+00 : f32
    %205 = vector.broadcast %cst_72 : f32 to vector<2x64xf32>
    %206 = arith.subf %204, %205 : vector<2x64xf32>
    %207 = vector.extract_strided_slice %199 {offsets = [0, 192], sizes = [2, 64], strides = [1, 1]} : vector<2x256xf32> to vector<2x64xf32>
    %208 = arith.mulf %201, %173 : vector<2x64xf32>
    %209 = arith.mulf %200, %206 : vector<2x64xf32>
    %210 = arith.addf %208, %209 : vector<2x64xf32>
    %211 = math.tanh %210 : vector<2x64xf32>
    %212 = arith.mulf %207, %211 : vector<2x64xf32>
    %213 = vector.extract_strided_slice %212 {offsets = [0, 0], sizes = [2, 32], strides = [1, 1]} : vector<2x64xf32> to vector<2x32xf32>
    %214 = arith.index_cast %c5_i32 : i32 to index
    %c0_73 = arith.constant 0 : index
    %c0_74 = arith.constant 0 : index
    %215 = vector.load %arg4[%214, %c0_73, %c0_74] : memref<8x2x64xf32, #tpu.memory_space<vmem>>, vector<1x2x32xf32>
    %216 = vector.shape_cast %215 : vector<1x2x32xf32> to vector<2x32xf32>
    %217 = vector.shape_cast %213 : vector<2x32xf32> to vector<1x2x32xf32>
    tpu.vector_store %arg4[%214, %c0_73, %c0_74], %217 {strides = array<i32>} : memref<8x2x64xf32, #tpu.memory_space<vmem>>, vector<1x2x32xf32>,
    %218 = vector.extract_strided_slice %212 {offsets = [0, 32], sizes = [2, 32], strides = [1, 1]} : vector<2x64xf32> to vector<2x32xf32>
    %c7_i32_75 = arith.constant 7 : i32
    %219 = arith.subi %c7_i32_75, %c5_i32 : i32
    %220 = arith.index_cast %219 : i32 to index
    %c0_76 = arith.constant 0 : index
    %c32_77 = arith.constant 32 : index
    %221 = vector.load %arg4[%220, %c0_76, %c32_77] : memref<8x2x64xf32, #tpu.memory_space<vmem>>, vector<1x2x32xf32>
    %222 = vector.shape_cast %221 : vector<1x2x32xf32> to vector<2x32xf32>
    %223 = vector.shape_cast %218 : vector<2x32xf32> to vector<1x2x32xf32>
    tpu.vector_store %arg4[%220, %c0_76, %c32_77], %223 {strides = array<i32>} : memref<8x2x64xf32, #tpu.memory_space<vmem>>, vector<1x2x32xf32>,
    %c6_i32 = arith.constant 6 : i32
    %224 = arith.index_cast %c6_i32 : i32 to index
    %c0_78 = arith.constant 0 : index
    %c0_79 = arith.constant 0 : index
    %225 = vector.load %arg0[%224, %c0_78, %c0_79] : memref<8x2x256xbf16, #tpu.memory_space<vmem>>, vector<1x2x256xbf16>
    %226 = vector.shape_cast %225 : vector<1x2x256xbf16> to vector<2x256xbf16>
    %227 = arith.extf %226 : vector<2x256xbf16> to vector<2x256xf32>
    %228 = arith.truncf %212 : vector<2x64xf32> to vector<2x64xbf16>
    %c0_80 = arith.constant 0 : index
    %c0_81 = arith.constant 0 : index
    %229 = vector.load %arg1[%c0_80, %c0_81] : memref<64x256xbf16, #tpu.memory_space<vmem>>, vector<64x256xbf16>
    %cst_82 = arith.constant dense<0.000000e+00> : vector<2x256xf32>
    %230 = tpu.matmul %228, %229, %cst_82 {dimension_numbers = #tpu.dot_dimension_numbers<[1], [0], [0], [1], [0, 0, 1, 1], [], []>} : vector<2x64xbf16>, vector<64x256xbf16>, vector<2x256xf32> -> vector<2x256xf32>
    %231 = arith.addf %227, %230 : vector<2x256xf32>
    %232 = arith.negf %231 : vector<2x256xf32>
    %233 = math.exp %232 : vector<2x256xf32>
    %cst_83 = arith.constant 1.000000e+00 : f32
    %234 = vector.broadcast %cst_83 : f32 to vector<2x256xf32>
    %235 = arith.addf %234, %233 : vector<2x256xf32>
    %236 = arith.divf %234, %235 : vector<2x256xf32>
    %237 = vector.extract_strided_slice %236 {offsets = [0, 0], sizes = [2, 64], strides = [1, 1]} : vector<2x256xf32> to vector<2x64xf32>
    %238 = vector.extract_strided_slice %236 {offsets = [0, 64], sizes = [2, 64], strides = [1, 1]} : vector<2x256xf32> to vector<2x64xf32>
    %239 = vector.extract_strided_slice %236 {offsets = [0, 128], sizes = [2, 64], strides = [1, 1]} : vector<2x256xf32> to vector<2x64xf32>
    %cst_84 = arith.constant 2.000000e+00 : f32
    %240 = vector.broadcast %cst_84 : f32 to vector<2x64xf32>
    %241 = arith.mulf %240, %239 : vector<2x64xf32>
    %cst_85 = arith.constant 1.000000e+00 : f32
    %242 = vector.broadcast %cst_85 : f32 to vector<2x64xf32>
    %243 = arith.subf %241, %242 : vector<2x64xf32>
    %244 = vector.extract_strided_slice %236 {offsets = [0, 192], sizes = [2, 64], strides = [1, 1]} : vector<2x256xf32> to vector<2x64xf32>
    %245 = arith.mulf %238, %210 : vector<2x64xf32>
    %246 = arith.mulf %237, %243 : vector<2x64xf32>
    %247 = arith.addf %245, %246 : vector<2x64xf32>
    %248 = math.tanh %247 : vector<2x64xf32>
    %249 = arith.mulf %244, %248 : vector<2x64xf32>
    %250 = vector.extract_strided_slice %249 {offsets = [0, 0], sizes = [2, 32], strides = [1, 1]} : vector<2x64xf32> to vector<2x32xf32>
    %251 = arith.index_cast %c6_i32 : i32 to index
    %c0_86 = arith.constant 0 : index
    %c0_87 = arith.constant 0 : index
    %252 = vector.load %arg4[%251, %c0_86, %c0_87] : memref<8x2x64xf32, #tpu.memory_space<vmem>>, vector<1x2x32xf32>
    %253 = vector.shape_cast %252 : vector<1x2x32xf32> to vector<2x32xf32>
    %254 = vector.shape_cast %250 : vector<2x32xf32> to vector<1x2x32xf32>
    tpu.vector_store %arg4[%251, %c0_86, %c0_87], %254 {strides = array<i32>} : memref<8x2x64xf32, #tpu.memory_space<vmem>>, vector<1x2x32xf32>,
    %255 = vector.extract_strided_slice %249 {offsets = [0, 32], sizes = [2, 32], strides = [1, 1]} : vector<2x64xf32> to vector<2x32xf32>
    %c7_i32_88 = arith.constant 7 : i32
    %256 = arith.subi %c7_i32_88, %c6_i32 : i32
    %257 = arith.index_cast %256 : i32 to index
    %c0_89 = arith.constant 0 : index
    %c32_90 = arith.constant 32 : index
    %258 = vector.load %arg4[%257, %c0_89, %c32_90] : memref<8x2x64xf32, #tpu.memory_space<vmem>>, vector<1x2x32xf32>
    %259 = vector.shape_cast %258 : vector<1x2x32xf32> to vector<2x32xf32>
    %260 = vector.shape_cast %255 : vector<2x32xf32> to vector<1x2x32xf32>
    tpu.vector_store %arg4[%257, %c0_89, %c32_90], %260 {strides = array<i32>} : memref<8x2x64xf32, #tpu.memory_space<vmem>>, vector<1x2x32xf32>,
    %c7_i32_91 = arith.constant 7 : i32
    %261 = arith.index_cast %c7_i32_91 : i32 to index
    %c0_92 = arith.constant 0 : index
    %c0_93 = arith.constant 0 : index
    %262 = vector.load %arg0[%261, %c0_92, %c0_93] : memref<8x2x256xbf16, #tpu.memory_space<vmem>>, vector<1x2x256xbf16>
    %263 = vector.shape_cast %262 : vector<1x2x256xbf16> to vector<2x256xbf16>
    %264 = arith.extf %263 : vector<2x256xbf16> to vector<2x256xf32>
    %265 = arith.truncf %249 : vector<2x64xf32> to vector<2x64xbf16>
    %c0_94 = arith.constant 0 : index
    %c0_95 = arith.constant 0 : index
    %266 = vector.load %arg1[%c0_94, %c0_95] : memref<64x256xbf16, #tpu.memory_space<vmem>>, vector<64x256xbf16>
    %cst_96 = arith.constant dense<0.000000e+00> : vector<2x256xf32>
    %267 = tpu.matmul %265, %266, %cst_96 {dimension_numbers = #tpu.dot_dimension_numbers<[1], [0], [0], [1], [0, 0, 1, 1], [], []>} : vector<2x64xbf16>, vector<64x256xbf16>, vector<2x256xf32> -> vector<2x256xf32>
    %268 = arith.addf %264, %267 : vector<2x256xf32>
    %269 = arith.negf %268 : vector<2x256xf32>
    %270 = math.exp %269 : vector<2x256xf32>
    %cst_97 = arith.constant 1.000000e+00 : f32
    %271 = vector.broadcast %cst_97 : f32 to vector<2x256xf32>
    %272 = arith.addf %271, %270 : vector<2x256xf32>
    %273 = arith.divf %271, %272 : vector<2x256xf32>
    %274 = vector.extract_strided_slice %273 {offsets = [0, 0], sizes = [2, 64], strides = [1, 1]} : vector<2x256xf32> to vector<2x64xf32>
    %275 = vector.extract_strided_slice %273 {offsets = [0, 64], sizes = [2, 64], strides = [1, 1]} : vector<2x256xf32> to vector<2x64xf32>
    %276 = vector.extract_strided_slice %273 {offsets = [0, 128], sizes = [2, 64], strides = [1, 1]} : vector<2x256xf32> to vector<2x64xf32>
    %cst_98 = arith.constant 2.000000e+00 : f32
    %277 = vector.broadcast %cst_98 : f32 to vector<2x64xf32>
    %278 = arith.mulf %277, %276 : vector<2x64xf32>
    %cst_99 = arith.constant 1.000000e+00 : f32
    %279 = vector.broadcast %cst_99 : f32 to vector<2x64xf32>
    %280 = arith.subf %278, %279 : vector<2x64xf32>
    %281 = vector.extract_strided_slice %273 {offsets = [0, 192], sizes = [2, 64], strides = [1, 1]} : vector<2x256xf32> to vector<2x64xf32>
    %282 = arith.mulf %275, %247 : vector<2x64xf32>
    %283 = arith.mulf %274, %280 : vector<2x64xf32>
    %284 = arith.addf %282, %283 : vector<2x64xf32>
    %285 = math.tanh %284 : vector<2x64xf32>
    %286 = arith.mulf %281, %285 : vector<2x64xf32>
    %287 = vector.extract_strided_slice %286 {offsets = [0, 0], sizes = [2, 32], strides = [1, 1]} : vector<2x64xf32> to vector<2x32xf32>
    %288 = arith.index_cast %c7_i32_91 : i32 to index
    %c0_100 = arith.constant 0 : index
    %c0_101 = arith.constant 0 : index
    %289 = vector.load %arg4[%288, %c0_100, %c0_101] : memref<8x2x64xf32, #tpu.memory_space<vmem>>, vector<1x2x32xf32>
    %290 = vector.shape_cast %289 : vector<1x2x32xf32> to vector<2x32xf32>
    %291 = vector.shape_cast %287 : vector<2x32xf32> to vector<1x2x32xf32>
    tpu.vector_store %arg4[%288, %c0_100, %c0_101], %291 {strides = array<i32>} : memref<8x2x64xf32, #tpu.memory_space<vmem>>, vector<1x2x32xf32>,
    %292 = vector.extract_strided_slice %286 {offsets = [0, 32], sizes = [2, 32], strides = [1, 1]} : vector<2x64xf32> to vector<2x32xf32>
    %c7_i32_102 = arith.constant 7 : i32
    %293 = arith.subi %c7_i32_102, %c7_i32_91 : i32
    %294 = arith.index_cast %293 : i32 to index
    %c0_103 = arith.constant 0 : index
    %c32_104 = arith.constant 32 : index
    %295 = vector.load %arg4[%294, %c0_103, %c32_104] : memref<8x2x64xf32, #tpu.memory_space<vmem>>, vector<1x2x32xf32>
    %296 = vector.shape_cast %295 : vector<1x2x32xf32> to vector<2x32xf32>
    %297 = vector.shape_cast %292 : vector<2x32xf32> to vector<1x2x32xf32>
    tpu.vector_store %arg4[%294, %c0_103, %c32_104], %297 {strides = array<i32>} : memref<8x2x64xf32, #tpu.memory_space<vmem>>, vector<1x2x32xf32>,
    %c8_i32 = arith.constant 8 : i32
    %c0_105 = arith.constant 0 : index
    %c0_106 = arith.constant 0 : index
    %298 = vector.load %arg5[%c0_105, %c0_106] : memref<2x64xf32, #tpu.memory_space<vmem>>, vector<2x64xf32>
    tpu.vector_store %arg5[%c0_105, %c0_106], %286 {strides = array<i32>} : memref<2x64xf32, #tpu.memory_space<vmem>>, vector<2x64xf32>,
    return
  }
}

</mosaic_0001>

<llo_original>
// kernel: lstm_cell_forward.3
$region0: #{lstm_cell_forward.3}
  #allocation0 [shape = 'u32[]', space=smem, size = 0x4, offset = 0x4, fixed_abs, tag = 'smem constant byte address 0x4 - core index']
  #allocation1 [shape = 'u32[144,128]{1,0:T(1,128)}', space=vmem, size = 0x12000, scoped, tag = 'internal scratch']
  %s0 = inlined_call_operand.vmem [shape: bf16[8,2,256], index: 0, kind: input, shape index: {}]
  %s1 = inlined_call_operand.vmem [shape: bf16[64,256], index: 1, kind: input, shape index: {}]
  %s2 = inlined_call_operand.vmem [shape: f32[2,64], index: 2, kind: input, shape index: {}]
  %s3 = inlined_call_operand.vmem [shape: f32[2,64], index: 3, kind: input, shape index: {}]
  %s4 = inlined_call_operand.vmem [shape: f32[8,2,64], index: 4, kind: output, shape index: {0}]
  %s5 = inlined_call_operand.vmem [shape: f32[2,64], index: 5, kind: output, shape index: {1}]
  %6 = xla_tuple %s4, %s5
  %s7 = sld [smem:[#allocation0]]
  $region34: #{lstm_cell_forward.3} parent=0
    _
  %s9 = ssub.s32 1, %s7
  %s10 = scalar_select 0, %s9, %s7
  // Predicated region
  $region2: #{lstm_cell_forward.3} parent=0 // pred_check
    _
  $region3: #{lstm_cell_forward.3} parent=0 // pred_check_branch
    %12 = sbr.rel (0) target = $region5
  $region4: #{lstm_cell_forward.3} parent=0 // pred_region
    _
  $region5: #{lstm_cell_forward.3} parent=0 // pred_fallthru
    _
  // Predicated region
  $region6: #{lstm_cell_forward.3} parent=0 // pred_check
    _
  $region7: #{lstm_cell_forward.3} parent=0 // pred_check_branch
    %14 = sbr.rel (0) target = $region9
  $region8: #{lstm_cell_forward.3} parent=0 // pred_region
    _
  $region9: #{lstm_cell_forward.3} parent=0 // pred_fallthru
    _
  // Predicated region
  $region10: #{lstm_cell_forward.3} parent=0 // pred_check
    _
  $region11: #{lstm_cell_forward.3} parent=0 // pred_check_branch
    %16 = sbr.rel (0) target = $region13
  $region12: #{lstm_cell_forward.3} parent=0 // pred_region
    _
  $region13: #{lstm_cell_forward.3} parent=0 // pred_fallthru
    _
  // Predicated region
  $region14: #{lstm_cell_forward.3} parent=0 // pred_check
    _
  $region15: #{lstm_cell_forward.3} parent=0 // pred_check_branch
    %18 = sbr.rel (0) target = $region17
  $region16: #{lstm_cell_forward.3} parent=0 // pred_region
    _
  $region17: #{lstm_cell_forward.3} parent=0 // pred_fallthru
    _
  %v20 = vld [vmem:[%s2] sm:$0x3]
  %v21 = vld [vmem:[%s3] sm:$0x3]
  %v22 = vld [vmem:[%s0] sm:$0x3]
  %v23 = vunpack.c.l.bf16 %v22
  %v24 = vpack.c.bf16 %v20, %v20
  %v25 = vld [vmem:[%s1] sm:$0xff]
  %v26 = vld [vmem:[%s1 + $0x8] sm:$0xff]
  %v27 = vld [vmem:[%s1 + $0x10] sm:$0xff]
  %v28 = vld [vmem:[%s1 + $0x18] sm:$0xff]
  %v29 = vld [vmem:[%s1 + $0x20] sm:$0xff]
  %v30 = vld [vmem:[%s1 + $0x28] sm:$0xff]
  %v31 = vld [vmem:[%s1 + $0x30] sm:$0xff]
  %v32 = vld [vmem:[%s1 + $0x38] sm:$0xff]
  %v41 = vunpack.c.l.b16 %v25
  %v42 = vunpack.c.h.b16 %v25
  %v43 = vunpack.c.l.b16 %v26
  %v44 = vunpack.c.h.b16 %v26
  %v45 = vunpack.c.l.b16 %v27
  %v46 = vunpack.c.h.b16 %v27
  %v47 = vunpack.c.l.b16 %v28
  %v48 = vunpack.c.h.b16 %v28
  %v49 = vunpack.c.l.b16 %v29
  %v50 = vunpack.c.h.b16 %v29
  %v51 = vunpack.c.l.b16 %v30
  %v52 = vunpack.c.h.b16 %v30
  %v53 = vunpack.c.l.b16 %v31
  %v54 = vunpack.c.h.b16 %v31
  %v55 = vunpack.c.l.b16 %v32
  %v56 = vunpack.c.h.b16 %v32
  %v57 = vpack.c.b16 %v43, %v41
  %v58 = vpack.c.b16 %v44, %v42
  %v59 = vpack.c.b16 %v47, %v45
  %v60 = vpack.c.b16 %v48, %v46
  %v61 = vpack.c.b16 %v51, %v49
  %v62 = vpack.c.b16 %v52, %v50
  %v63 = vpack.c.b16 %v55, %v53
  %v64 = vpack.c.b16 %v56, %v54
  %vm73 = vcmask 523264
  %v75 = vsel %vm73, %v24, 0
  %77 = vmatprep.subr.bf16.mxu0 %v58
  %78 = vmatpush1.bf16.msra.mxu0 %v57
  %79 = vmatprep.subr.bf16.mxu0 %v60
  %80 = vmatpush1.bf16.msra.mxu0 %v59
  %81 = vmatprep.subr.bf16.mxu0 %v62
  %82 = vmatpush1.bf16.msra.mxu0 %v61
  %83 = vmatprep.subr.bf16.mxu0 %v64
  %84 = vmatpush1.bf16.msra.mxu0 %v63
  %85 = vmatprep.subr.bf16.mxu0 0
  %86 = vmatpush1.bf16.msra.mxu0 0
  %87 = vmatprep.subr.bf16.mxu0 0
  %88 = vmatpush1.bf16.msra.mxu0 0
  %89 = vmatprep.subr.bf16.mxu0 0
  %90 = vmatpush1.bf16.msra.mxu0 0
  %91 = vmatprep.subr.bf16.mxu0 0
  %92 = vmatpush1.bf16.msra.mxu0 0
  %93 = vmatprep.subr.bf16.mxu0 0
  %94 = vmatpush1.bf16.msra.mxu0 0
  %95 = vmatprep.subr.bf16.mxu0 0
  %96 = vmatpush1.bf16.msra.mxu0 0
  %97 = vmatprep.subr.bf16.mxu0 0
  %98 = vmatpush1.bf16.msra.mxu0 0
  %99 = vmatprep.subr.bf16.mxu0 0
  %100 = vmatpush1.bf16.msra.mxu0 0
  %101 = vmatprep.subr.bf16.mxu0 0
  %102 = vmatpush1.bf16.msra.mxu0 0
  %103 = vmatprep.subr.bf16.mxu0 0
  %104 = vmatpush1.bf16.msra.mxu0 0
  %105 = vmatprep.subr.bf16.mxu0 0
  %106 = vmatpush1.bf16.msra.mxu0 0
  %107 = vmatprep.subr.bf16.mxu0 0
  %108 = vmatpush1.bf16.msra.mxu0 0
  %109 = vmatprep.mubr.bf16.mxu0 0
  %110 = vmatmul.mubr.bf16.gmra.mrb[0].mxu0 %v75
  %v111 = vpop.f32.mrb[0].mxu0
  %v112 = vadd.f32 0.0, %v111
  %v113 = vpop.f32.mrb[0].mxu0
  %v114 = vadd.f32 0.0, %v113
  %v115 = vpop.f32.mrb[0].mxu0
  %v116 = vpop.f32.mrb[0].mxu0
  %117 = vdwg.mxu0
  %v120 = vcombine.low %v112, %v114
  %v122 = vunpack.c.l.s4 1983009808
  %v123 = vunpack.c.0.s8 %v122
  %v124 = vlaneseq
  %v125 = vshrl.u32 %v124, 7
  %v126 = vsub.s32 %v123, %v125
  %v127 = vrot.slane %v120, %v126
  %v129 = vadd.f32 %v23, %v127
  %v130 = vxor.u32 %v129, 2147483648
  %v131 = vmul.f32 %v130, 1.442695
  %v132 = vpow.pop %v131
  %v133 = vadd.f32 %v132, 1.0
  %v134 = vrcp.pop %v133
  %v135 = vmul.f32 1.0, %v134
  %v137 = vrot.slane %v135, 2
  %v139 = vmul.f32 %v137, 2.0
  %v140 = vsub.f32 %v139, 1.0
  %v143 = vunpack.c.l.s4 1983009808
  %v144 = vunpack.c.0.s8 %v143
  %v145 = vlaneseq
  %v146 = vshrl.u32 %v145, 7
  %v147 = vsub.s32 %v144, %v146
  %v148 = vrot.slane %v21, %v147
  %149 = vrot.lane.b32.xlu0 %v148, 64
  %v150 = vpop.permute.xlu0 %149
  %v152 = vmul.f32 %v135, %v150
  %v153 = vmul.f32 %v135, %v140
  %155 = vrot.lane.b32.xlu0 %v153, 64
  %v156 = vpop.permute.xlu0 %155
  %v158 = vadd.f32 %v152, %v156
  %v159 = vtanh.pop %v158
  %160 = vrot.lane.b32.xlu0 %v135, 64
  %v161 = vpop.permute.xlu0 %160
  %v162 = vrot.slane %v161, 2
  %165 = vrot.lane.b32.xlu0 %v159, 64
  %v166 = vpop.permute.xlu0 %165
  %v168 = vmul.f32 %v162, %v166
  %vm169 = vcmask 254976
  %170 = vst.msk [vmem:[%s4] sm:$0x3] %vm169, %v168
  %s171 = scalar_lea.vmem %s4, 14
  %vm172 = vcmask 517376
  %173 = vst.msk [vmem:[%s171] sm:$0x3] %vm172, %v168
  %s174 = scalar_lea.vmem %s0, 2
  %v175 = vld [vmem:[%s174] sm:$0x3]
  %v176 = vunpack.c.l.bf16 %v175
  %v177 = vpack.c.bf16 %v168, %v168
  %v178 = vld [vmem:[%s1] sm:$0xff]
  %v179 = vld [vmem:[%s1 + $0x8] sm:$0xff]
  %v180 = vld [vmem:[%s1 + $0x10] sm:$0xff]
  %v181 = vld [vmem:[%s1 + $0x18] sm:$0xff]
  %v182 = vld [vmem:[%s1 + $0x20] sm:$0xff]
  %v183 = vld [vmem:[%s1 + $0x28] sm:$0xff]
  %v184 = vld [vmem:[%s1 + $0x30] sm:$0xff]
  %v185 = vld [vmem:[%s1 + $0x38] sm:$0xff]
  %v194 = vunpack.c.l.b16 %v178
  %v195 = vunpack.c.h.b16 %v178
  %v196 = vunpack.c.l.b16 %v179
  %v197 = vunpack.c.h.b16 %v179
  %v198 = vunpack.c.l.b16 %v180
  %v199 = vunpack.c.h.b16 %v180
  %v200 = vunpack.c.l.b16 %v181
  %v201 = vunpack.c.h.b16 %v181
  %v202 = vunpack.c.l.b16 %v182
  %v203 = vunpack.c.h.b16 %v182
  %v204 = vunpack.c.l.b16 %v183
  %v205 = vunpack.c.h.b16 %v183
  %v206 = vunpack.c.l.b16 %v184
  %v207 = vunpack.c.h.b16 %v184
  %v208 = vunpack.c.l.b16 %v185
  %v209 = vunpack.c.h.b16 %v185
  %v210 = vpack.c.b16 %v196, %v194
  %v211 = vpack.c.b16 %v197, %v195
  %v212 = vpack.c.b16 %v200, %v198
  %v213 = vpack.c.b16 %v201, %v199
  %v214 = vpack.c.b16 %v204, %v202
  %v215 = vpack.c.b16 %v205, %v203
  %v216 = vpack.c.b16 %v208, %v206
  %v217 = vpack.c.b16 %v209, %v207
  %v227 = vsel %vm73, %v177, 0
  %229 = vmatprep.subr.bf16.mxu0 %v211
  %230 = vmatpush1.bf16.msra.mxu0 %v210
  %231 = vmatprep.subr.bf16.mxu0 %v213
  %232 = vmatpush1.bf16.msra.mxu0 %v212
  %233 = vmatprep.subr.bf16.mxu0 %v215
  %234 = vmatpush1.bf16.msra.mxu0 %v214
  %235 = vmatprep.subr.bf16.mxu0 %v217
  %236 = vmatpush1.bf16.msra.mxu0 %v216
  %237 = vmatprep.subr.bf16.mxu0 0
  %238 = vmatpush1.bf16.msra.mxu0 0
  %239 = vmatprep.subr.bf16.mxu0 0
  %240 = vmatpush1.bf16.msra.mxu0 0
  %241 = vmatprep.subr.bf16.mxu0 0
  %242 = vmatpush1.bf16.msra.mxu0 0
  %243 = vmatprep.subr.bf16.mxu0 0
  %244 = vmatpush1.bf16.msra.mxu0 0
  %245 = vmatprep.subr.bf16.mxu0 0
  %246 = vmatpush1.bf16.msra.mxu0 0
  %247 = vmatprep.subr.bf16.mxu0 0
  %248 = vmatpush1.bf16.msra.mxu0 0
  %249 = vmatprep.subr.bf16.mxu0 0
  %250 = vmatpush1.bf16.msra.mxu0 0
  %251 = vmatprep.subr.bf16.mxu0 0
  %252 = vmatpush1.bf16.msra.mxu0 0
  %253 = vmatprep.subr.bf16.mxu0 0
  %254 = vmatpush1.bf16.msra.mxu0 0
  %255 = vmatprep.subr.bf16.mxu0 0
  %256 = vmatpush1.bf16.msra.mxu0 0
  %257 = vmatprep.subr.bf16.mxu0 0
  %258 = vmatpush1.bf16.msra.mxu0 0
  %259 = vmatprep.subr.bf16.mxu0 0
  %260 = vmatpush1.bf16.msra.mxu0 0
  %261 = vmatprep.mubr.bf16.mxu0 0
  %262 = vmatmul.mubr.bf16.gmra.mrb[0].mxu0 %v227
  %v263 = vpop.f32.mrb[0].mxu0
  %v264 = vadd.f32 0.0, %v263
  %v265 = vpop.f32.mrb[0].mxu0
  %v266 = vadd.f32 0.0, %v265
  %v267 = vpop.f32.mrb[0].mxu0
  %v268 = vpop.f32.mrb[0].mxu0
  %269 = vdwg.mxu0
  %v272 = vcombine.low %v264, %v266
  %v274 = vunpack.c.l.s4 1983009808
  %v275 = vunpack.c.0.s8 %v274
  %v276 = vlaneseq
  %v277 = vshrl.u32 %v276, 7
  %v278 = vsub.s32 %v275, %v277
  %v279 = vrot.slane %v272, %v278
  %v281 = vadd.f32 %v176, %v279
  %v282 = vxor.u32 %v281, 2147483648
  %v283 = vmul.f32 %v282, 1.442695
  %v284 = vpow.pop %v283
  %v285 = vadd.f32 %v284, 1.0
  %v286 = vrcp.pop %v285
  %v287 = vmul.f32 1.0, %v286
  %v289 = vrot.slane %v287, 2
  %v291 = vmul.f32 %v289, 2.0
  %v292 = vsub.f32 %v291, 1.0
  %v293 = vmul.f32 %v287, %v158
  %v294 = vmul.f32 %v287, %v292
  %296 = vrot.lane.b32.xlu0 %v294, 64
  %v297 = vpop.permute.xlu0 %296
  %v299 = vadd.f32 %v293, %v297
  %v300 = vtanh.pop %v299
  %301 = vrot.lane.b32.xlu0 %v287, 64
  %v302 = vpop.permute.xlu0 %301
  %v303 = vrot.slane %v302, 2
  %306 = vrot.lane.b32.xlu0 %v300, 64
  %v307 = vpop.permute.xlu0 %306
  %v309 = vmul.f32 %v303, %v307
  %s310 = scalar_lea.vmem %s4, 2
  %311 = vst.msk [vmem:[%s310] sm:$0x3] %vm169, %v309
  %s312 = scalar_lea.vmem %s4, 12
  %313 = vst.msk [vmem:[%s312] sm:$0x3] %vm172, %v309
  %s314 = scalar_lea.vmem %s0, 4
  %v315 = vld [vmem:[%s314] sm:$0x3]
  %v316 = vunpack.c.l.bf16 %v315
  %v317 = vpack.c.bf16 %v309, %v309
  %v318 = vld [vmem:[%s1] sm:$0xff]
  %v319 = vld [vmem:[%s1 + $0x8] sm:$0xff]
  %v320 = vld [vmem:[%s1 + $0x10] sm:$0xff]
  %v321 = vld [vmem:[%s1 + $0x18] sm:$0xff]
  %v322 = vld [vmem:[%s1 + $0x20] sm:$0xff]
  %v323 = vld [vmem:[%s1 + $0x28] sm:$0xff]
  %v324 = vld [vmem:[%s1 + $0x30] sm:$0xff]
  %v325 = vld [vmem:[%s1 + $0x38] sm:$0xff]
  %v334 = vunpack.c.l.b16 %v318
  %v335 = vunpack.c.h.b16 %v318
  %v336 = vunpack.c.l.b16 %v319
  %v337 = vunpack.c.h.b16 %v319
  %v338 = vunpack.c.l.b16 %v320
  %v339 = vunpack.c.h.b16 %v320
  %v340 = vunpack.c.l.b16 %v321
  %v341 = vunpack.c.h.b16 %v321
  %v342 = vunpack.c.l.b16 %v322
  %v343 = vunpack.c.h.b16 %v322
  %v344 = vunpack.c.l.b16 %v323
  %v345 = vunpack.c.h.b16 %v323
  %v346 = vunpack.c.l.b16 %v324
  %v347 = vunpack.c.h.b16 %v324
  %v348 = vunpack.c.l.b16 %v325
  %v349 = vunpack.c.h.b16 %v325
  %v350 = vpack.c.b16 %v336, %v334
  %v351 = vpack.c.b16 %v337, %v335
  %v352 = vpack.c.b16 %v340, %v338
  %v353 = vpack.c.b16 %v341, %v339
  %v354 = vpack.c.b16 %v344, %v342
  %v355 = vpack.c.b16 %v345, %v343
  %v356 = vpack.c.b16 %v348, %v346
  %v357 = vpack.c.b16 %v349, %v347
  %v367 = vsel %vm73, %v317, 0
  %369 = vmatprep.subr.bf16.mxu0 %v351
  %370 = vmatpush1.bf16.msra.mxu0 %v350
  %371 = vmatprep.subr.bf16.mxu0 %v353
  %372 = vmatpush1.bf16.msra.mxu0 %v352
  %373 = vmatprep.subr.bf16.mxu0 %v355
  %374 = vmatpush1.bf16.msra.mxu0 %v354
  %375 = vmatprep.subr.bf16.mxu0 %v357
  %376 = vmatpush1.bf16.msra.mxu0 %v356
  %377 = vmatprep.subr.bf16.mxu0 0
  %378 = vmatpush1.bf16.msra.mxu0 0
  %379 = vmatprep.subr.bf16.mxu0 0
  %380 = vmatpush1.bf16.msra.mxu0 0
  %381 = vmatprep.subr.bf16.mxu0 0
  %382 = vmatpush1.bf16.msra.mxu0 0
  %383 = vmatprep.subr.bf16.mxu0 0
  %384 = vmatpush1.bf16.msra.mxu0 0
  %385 = vmatprep.subr.bf16.mxu0 0
  %386 = vmatpush1.bf16.msra.mxu0 0
  %387 = vmatprep.subr.bf16.mxu0 0
  %388 = vmatpush1.bf16.msra.mxu0 0
  %389 = vmatprep.subr.bf16.mxu0 0
  %390 = vmatpush1.bf16.msra.mxu0 0
  %391 = vmatprep.subr.bf16.mxu0 0
  %392 = vmatpush1.bf16.msra.mxu0 0
  %393 = vmatprep.subr.bf16.mxu0 0
  %394 = vmatpush1.bf16.msra.mxu0 0
  %395 = vmatprep.subr.bf16.mxu0 0
  %396 = vmatpush1.bf16.msra.mxu0 0
  %397 = vmatprep.subr.bf16.mxu0 0
  %398 = vmatpush1.bf16.msra.mxu0 0
  %399 = vmatprep.subr.bf16.mxu0 0
  %400 = vmatpush1.bf16.msra.mxu0 0
  %401 = vmatprep.mubr.bf16.mxu0 0
  %402 = vmatmul.mubr.bf16.gmra.mrb[0].mxu0 %v367
  %v403 = vpop.f32.mrb[0].mxu0
  %v404 = vadd.f32 0.0, %v403
  %v405 = vpop.f32.mrb[0].mxu0
  %v406 = vadd.f32 0.0, %v405
  %v407 = vpop.f32.mrb[0].mxu0
  %v408 = vpop.f32.mrb[0].mxu0
  %409 = vdwg.mxu0
  %v412 = vcombine.low %v404, %v406
  %v414 = vunpack.c.l.s4 1983009808
  %v415 = vunpack.c.0.s8 %v414
  %v416 = vlaneseq
  %v417 = vshrl.u32 %v416, 7
  %v418 = vsub.s32 %v415, %v417
  %v419 = vrot.slane %v412, %v418
  %v421 = vadd.f32 %v316, %v419
  %v422 = vxor.u32 %v421, 2147483648
  %v423 = vmul.f32 %v422, 1.442695
  %v424 = vpow.pop %v423
  %v425 = vadd.f32 %v424, 1.0
  %v426 = vrcp.pop %v425
  %v427 = vmul.f32 1.0, %v426
  %v429 = vrot.slane %v427, 2
  %v431 = vmul.f32 %v429, 2.0
  %v432 = vsub.f32 %v431, 1.0
  %v433 = vmul.f32 %v427, %v299
  %v434 = vmul.f32 %v427, %v432
  %436 = vrot.lane.b32.xlu0 %v434, 64
  %v437 = vpop.permute.xlu0 %436
  %v439 = vadd.f32 %v433, %v437
  %v440 = vtanh.pop %v439
  %441 = vrot.lane.b32.xlu0 %v427, 64
  %v442 = vpop.permute.xlu0 %441
  %v443 = vrot.slane %v442, 2
  %446 = vrot.lane.b32.xlu0 %v440, 64
  %v447 = vpop.permute.xlu0 %446
  %v449 = vmul.f32 %v443, %v447
  %s450 = scalar_lea.vmem %s4, 4
  %451 = vst.msk [vmem:[%s450] sm:$0x3] %vm169, %v449
  %s452 = scalar_lea.vmem %s4, 10
  %453 = vst.msk [vmem:[%s452] sm:$0x3] %vm172, %v449
  %s454 = scalar_lea.vmem %s0, 6
  %v455 = vld [vmem:[%s454] sm:$0x3]
  %v456 = vunpack.c.l.bf16 %v455
  %v457 = vpack.c.bf16 %v449, %v449
  %v458 = vld [vmem:[%s1] sm:$0xff]
  %v459 = vld [vmem:[%s1 + $0x8] sm:$0xff]
  %v460 = vld [vmem:[%s1 + $0x10] sm:$0xff]
  %v461 = vld [vmem:[%s1 + $0x18] sm:$0xff]
  %v462 = vld [vmem:[%s1 + $0x20] sm:$0xff]
  %v463 = vld [vmem:[%s1 + $0x28] sm:$0xff]
  %v464 = vld [vmem:[%s1 + $0x30] sm:$0xff]
  %v465 = vld [vmem:[%s1 + $0x38] sm:$0xff]
  %v474 = vunpack.c.l.b16 %v458
  %v475 = vunpack.c.h.b16 %v458
  %v476 = vunpack.c.l.b16 %v459
  %v477 = vunpack.c.h.b16 %v459
  %v478 = vunpack.c.l.b16 %v460
  %v479 = vunpack.c.h.b16 %v460
  %v480 = vunpack.c.l.b16 %v461
  %v481 = vunpack.c.h.b16 %v461
  %v482 = vunpack.c.l.b16 %v462
  %v483 = vunpack.c.h.b16 %v462
  %v484 = vunpack.c.l.b16 %v463
  %v485 = vunpack.c.h.b16 %v463
  %v486 = vunpack.c.l.b16 %v464
  %v487 = vunpack.c.h.b16 %v464
  %v488 = vunpack.c.l.b16 %v465
  %v489 = vunpack.c.h.b16 %v465
  %v490 = vpack.c.b16 %v476, %v474
  %v491 = vpack.c.b16 %v477, %v475
  %v492 = vpack.c.b16 %v480, %v478
  %v493 = vpack.c.b16 %v481, %v479
  %v494 = vpack.c.b16 %v484, %v482
  %v495 = vpack.c.b16 %v485, %v483
  %v496 = vpack.c.b16 %v488, %v486
  %v497 = vpack.c.b16 %v489, %v487
  %v507 = vsel %vm73, %v457, 0
  %509 = vmatprep.subr.bf16.mxu0 %v491
  %510 = vmatpush1.bf16.msra.mxu0 %v490
  %511 = vmatprep.subr.bf16.mxu0 %v493
  %512 = vmatpush1.bf16.msra.mxu0 %v492
  %513 = vmatprep.subr.bf16.mxu0 %v495
  %514 = vmatpush1.bf16.msra.mxu0 %v494
  %515 = vmatprep.subr.bf16.mxu0 %v497
  %516 = vmatpush1.bf16.msra.mxu0 %v496
  %517 = vmatprep.subr.bf16.mxu0 0
  %518 = vmatpush1.bf16.msra.mxu0 0
  %519 = vmatprep.subr.bf16.mxu0 0
  %520 = vmatpush1.bf16.msra.mxu0 0
  %521 = vmatprep.subr.bf16.mxu0 0
  %522 = vmatpush1.bf16.msra.mxu0 0
  %523 = vmatprep.subr.bf16.mxu0 0
  %524 = vmatpush1.bf16.msra.mxu0 0
  %525 = vmatprep.subr.bf16.mxu0 0
  %526 = vmatpush1.bf16.msra.mxu0 0
  %527 = vmatprep.subr.bf16.mxu0 0
  %528 = vmatpush1.bf16.msra.mxu0 0
  %529 = vmatprep.subr.bf16.mxu0 0
  %530 = vmatpush1.bf16.msra.mxu0 0
  %531 = vmatprep.subr.bf16.mxu0 0
  %532 = vmatpush1.bf16.msra.mxu0 0
  %533 = vmatprep.subr.bf16.mxu0 0
  %534 = vmatpush1.bf16.msra.mxu0 0
  %535 = vmatprep.subr.bf16.mxu0 0
  %536 = vmatpush1.bf16.msra.mxu0 0
  %537 = vmatprep.subr.bf16.mxu0 0
  %538 = vmatpush1.bf16.msra.mxu0 0
  %539 = vmatprep.subr.bf16.mxu0 0
  %540 = vmatpush1.bf16.msra.mxu0 0
  %541 = vmatprep.mubr.bf16.mxu0 0
  %542 = vmatmul.mubr.bf16.gmra.mrb[0].mxu0 %v507
  %v543 = vpop.f32.mrb[0].mxu0
  %v544 = vadd.f32 0.0, %v543
  %v545 = vpop.f32.mrb[0].mxu0
  %v546 = vadd.f32 0.0, %v545
  %v547 = vpop.f32.mrb[0].mxu0
  %v548 = vpop.f32.mrb[0].mxu0
  %549 = vdwg.mxu0
  %v552 = vcombine.low %v544, %v546
  %v554 = vunpack.c.l.s4 1983009808
  %v555 = vunpack.c.0.s8 %v554
  %v556 = vlaneseq
  %v557 = vshrl.u32 %v556, 7
  %v558 = vsub.s32 %v555, %v557
  %v559 = vrot.slane %v552, %v558
  %v561 = vadd.f32 %v456, %v559
  %v562 = vxor.u32 %v561, 2147483648
  %v563 = vmul.f32 %v562, 1.442695
  %v564 = vpow.pop %v563
  %v565 = vadd.f32 %v564, 1.0
  %v566 = vrcp.pop %v565
  %v567 = vmul.f32 1.0, %v566
  %v569 = vrot.slane %v567, 2
  %v571 = vmul.f32 %v569, 2.0
  %v572 = vsub.f32 %v571, 1.0
  %v573 = vmul.f32 %v567, %v439
  %v574 = vmul.f32 %v567, %v572
  %576 = vrot.lane.b32.xlu0 %v574, 64
  %v577 = vpop.permute.xlu0 %576
  %v579 = vadd.f32 %v573, %v577
  %v580 = vtanh.pop %v579
  %581 = vrot.lane.b32.xlu0 %v567, 64
  %v582 = vpop.permute.xlu0 %581
  %v583 = vrot.slane %v582, 2
  %586 = vrot.lane.b32.xlu0 %v580, 64
  %v587 = vpop.permute.xlu0 %586
  %v589 = vmul.f32 %v583, %v587
  %s590 = scalar_lea.vmem %s4, 6
  %591 = vst.msk [vmem:[%s590] sm:$0x3] %vm169, %v589
  %s592 = scalar_lea.vmem %s4, 8
  %593 = vst.msk [vmem:[%s592] sm:$0x3] %vm172, %v589
  %s594 = scalar_lea.vmem %s0, 8
  %v595 = vld [vmem:[%s594] sm:$0x3]
  %v596 = vunpack.c.l.bf16 %v595
  %v597 = vpack.c.bf16 %v589, %v589
  %v598 = vld [vmem:[%s1] sm:$0xff]
  %v599 = vld [vmem:[%s1 + $0x8] sm:$0xff]
  %v600 = vld [vmem:[%s1 + $0x10] sm:$0xff]
  %v601 = vld [vmem:[%s1 + $0x18] sm:$0xff]
  %v602 = vld [vmem:[%s1 + $0x20] sm:$0xff]
  %v603 = vld [vmem:[%s1 + $0x28] sm:$0xff]
  %v604 = vld [vmem:[%s1 + $0x30] sm:$0xff]
  %v605 = vld [vmem:[%s1 + $0x38] sm:$0xff]
  %v614 = vunpack.c.l.b16 %v598
  %v615 = vunpack.c.h.b16 %v598
  %v616 = vunpack.c.l.b16 %v599
  %v617 = vunpack.c.h.b16 %v599
  %v618 = vunpack.c.l.b16 %v600
  %v619 = vunpack.c.h.b16 %v600
  %v620 = vunpack.c.l.b16 %v601
  %v621 = vunpack.c.h.b16 %v601
  %v622 = vunpack.c.l.b16 %v602
  %v623 = vunpack.c.h.b16 %v602
  %v624 = vunpack.c.l.b16 %v603
  %v625 = vunpack.c.h.b16 %v603
  %v626 = vunpack.c.l.b16 %v604
  %v627 = vunpack.c.h.b16 %v604
  %v628 = vunpack.c.l.b16 %v605
  %v629 = vunpack.c.h.b16 %v605
  %v630 = vpack.c.b16 %v616, %v614
  %v631 = vpack.c.b16 %v617, %v615
  %v632 = vpack.c.b16 %v620, %v618
  %v633 = vpack.c.b16 %v621, %v619
  %v634 = vpack.c.b16 %v624, %v622
  %v635 = vpack.c.b16 %v625, %v623
  %v636 = vpack.c.b16 %v628, %v626
  %v637 = vpack.c.b16 %v629, %v627
  %v647 = vsel %vm73, %v597, 0
  %649 = vmatprep.subr.bf16.mxu0 %v631
  %650 = vmatpush1.bf16.msra.mxu0 %v630
  %651 = vmatprep.subr.bf16.mxu0 %v633
  %652 = vmatpush1.bf16.msra.mxu0 %v632
  %653 = vmatprep.subr.bf16.mxu0 %v635
  %654 = vmatpush1.bf16.msra.mxu0 %v634
  %655 = vmatprep.subr.bf16.mxu0 %v637
  %656 = vmatpush1.bf16.msra.mxu0 %v636
  %657 = vmatprep.subr.bf16.mxu0 0
  %658 = vmatpush1.bf16.msra.mxu0 0
  %659 = vmatprep.subr.bf16.mxu0 0
  %660 = vmatpush1.bf16.msra.mxu0 0
  %661 = vmatprep.subr.bf16.mxu0 0
  %662 = vmatpush1.bf16.msra.mxu0 0
  %663 = vmatprep.subr.bf16.mxu0 0
  %664 = vmatpush1.bf16.msra.mxu0 0
  %665 = vmatprep.subr.bf16.mxu0 0
  %666 = vmatpush1.bf16.msra.mxu0 0
  %667 = vmatprep.subr.bf16.mxu0 0
  %668 = vmatpush1.bf16.msra.mxu0 0
  %669 = vmatprep.subr.bf16.mxu0 0
  %670 = vmatpush1.bf16.msra.mxu0 0
  %671 = vmatprep.subr.bf16.mxu0 0
  %672 = vmatpush1.bf16.msra.mxu0 0
  %673 = vmatprep.subr.bf16.mxu0 0
  %674 = vmatpush1.bf16.msra.mxu0 0
  %675 = vmatprep.subr.bf16.mxu0 0
  %676 = vmatpush1.bf16.msra.mxu0 0
  %677 = vmatprep.subr.bf16.mxu0 0
  %678 = vmatpush1.bf16.msra.mxu0 0
  %679 = vmatprep.subr.bf16.mxu0 0
  %680 = vmatpush1.bf16.msra.mxu0 0
  %681 = vmatprep.mubr.bf16.mxu0 0
  %682 = vmatmul.mubr.bf16.gmra.mrb[0].mxu0 %v647
  %v683 = vpop.f32.mrb[0].mxu0
  %v684 = vadd.f32 0.0, %v683
  %v685 = vpop.f32.mrb[0].mxu0
  %v686 = vadd.f32 0.0, %v685
  %v687 = vpop.f32.mrb[0].mxu0
  %v688 = vpop.f32.mrb[0].mxu0
  %689 = vdwg.mxu0
  %v692 = vcombine.low %v684, %v686
  %v694 = vunpack.c.l.s4 1983009808
  %v695 = vunpack.c.0.s8 %v694
  %v696 = vlaneseq
  %v697 = vshrl.u32 %v696, 7
  %v698 = vsub.s32 %v695, %v697
  %v699 = vrot.slane %v692, %v698
  %v701 = vadd.f32 %v596, %v699
  %v702 = vxor.u32 %v701, 2147483648
  %v703 = vmul.f32 %v702, 1.442695
  %v704 = vpow.pop %v703
  %v705 = vadd.f32 %v704, 1.0
  %v706 = vrcp.pop %v705
  %v707 = vmul.f32 1.0, %v706
  %v709 = vrot.slane %v707, 2
  %v711 = vmul.f32 %v709, 2.0
  %v712 = vsub.f32 %v711, 1.0
  %v713 = vmul.f32 %v707, %v579
  %v714 = vmul.f32 %v707, %v712
  %716 = vrot.lane.b32.xlu0 %v714, 64
  %v717 = vpop.permute.xlu0 %716
  %v719 = vadd.f32 %v713, %v717
  %v720 = vtanh.pop %v719
  %721 = vrot.lane.b32.xlu0 %v707, 64
  %v722 = vpop.permute.xlu0 %721
  %v723 = vrot.slane %v722, 2
  %726 = vrot.lane.b32.xlu0 %v720, 64
  %v727 = vpop.permute.xlu0 %726
  %v729 = vmul.f32 %v723, %v727
  %730 = vst.msk [vmem:[%s592] sm:$0x3] %vm169, %v729
  %731 = vst.msk [vmem:[%s590] sm:$0x3] %vm172, %v729
  %s732 = scalar_lea.vmem %s0, 10
  %v733 = vld [vmem:[%s732] sm:$0x3]
  %v734 = vunpack.c.l.bf16 %v733
  %v735 = vpack.c.bf16 %v729, %v729
  %v736 = vld [vmem:[%s1] sm:$0xff]
  %v737 = vld [vmem:[%s1 + $0x8] sm:$0xff]
  %v738 = vld [vmem:[%s1 + $0x10] sm:$0xff]
  %v739 = vld [vmem:[%s1 + $0x18] sm:$0xff]
  %v740 = vld [vmem:[%s1 + $0x20] sm:$0xff]
  %v741 = vld [vmem:[%s1 + $0x28] sm:$0xff]
  %v742 = vld [vmem:[%s1 + $0x30] sm:$0xff]
  %v743 = vld [vmem:[%s1 + $0x38] sm:$0xff]
  %v752 = vunpack.c.l.b16 %v736
  %v753 = vunpack.c.h.b16 %v736
  %v754 = vunpack.c.l.b16 %v737
  %v755 = vunpack.c.h.b16 %v737
  %v756 = vunpack.c.l.b16 %v738
  %v757 = vunpack.c.h.b16 %v738
  %v758 = vunpack.c.l.b16 %v739
  %v759 = vunpack.c.h.b16 %v739
  %v760 = vunpack.c.l.b16 %v740
  %v761 = vunpack.c.h.b16 %v740
  %v762 = vunpack.c.l.b16 %v741
  %v763 = vunpack.c.h.b16 %v741
  %v764 = vunpack.c.l.b16 %v742
  %v765 = vunpack.c.h.b16 %v742
  %v766 = vunpack.c.l.b16 %v743
  %v767 = vunpack.c.h.b16 %v743
  %v768 = vpack.c.b16 %v754, %v752
  %v769 = vpack.c.b16 %v755, %v753
  %v770 = vpack.c.b16 %v758, %v756
  %v771 = vpack.c.b16 %v759, %v757
  %v772 = vpack.c.b16 %v762, %v760
  %v773 = vpack.c.b16 %v763, %v761
  %v774 = vpack.c.b16 %v766, %v764
  %v775 = vpack.c.b16 %v767, %v765
  %v785 = vsel %vm73, %v735, 0
  %787 = vmatprep.subr.bf16.mxu0 %v769
  %788 = vmatpush1.bf16.msra.mxu0 %v768
  %789 = vmatprep.subr.bf16.mxu0 %v771
  %790 = vmatpush1.bf16.msra.mxu0 %v770
  %791 = vmatprep.subr.bf16.mxu0 %v773
  %792 = vmatpush1.bf16.msra.mxu0 %v772
  %793 = vmatprep.subr.bf16.mxu0 %v775
  %794 = vmatpush1.bf16.msra.mxu0 %v774
  %795 = vmatprep.subr.bf16.mxu0 0
  %796 = vmatpush1.bf16.msra.mxu0 0
  %797 = vmatprep.subr.bf16.mxu0 0
  %798 = vmatpush1.bf16.msra.mxu0 0
  %799 = vmatprep.subr.bf16.mxu0 0
  %800 = vmatpush1.bf16.msra.mxu0 0
  %801 = vmatprep.subr.bf16.mxu0 0
  %802 = vmatpush1.bf16.msra.mxu0 0
  %803 = vmatprep.subr.bf16.mxu0 0
  %804 = vmatpush1.bf16.msra.mxu0 0
  %805 = vmatprep.subr.bf16.mxu0 0
  %806 = vmatpush1.bf16.msra.mxu0 0
  %807 = vmatprep.subr.bf16.mxu0 0
  %808 = vmatpush1.bf16.msra.mxu0 0
  %809 = vmatprep.subr.bf16.mxu0 0
  %810 = vmatpush1.bf16.msra.mxu0 0
  %811 = vmatprep.subr.bf16.mxu0 0
  %812 = vmatpush1.bf16.msra.mxu0 0
  %813 = vmatprep.subr.bf16.mxu0 0
  %814 = vmatpush1.bf16.msra.mxu0 0
  %815 = vmatprep.subr.bf16.mxu0 0
  %816 = vmatpush1.bf16.msra.mxu0 0
  %817 = vmatprep.subr.bf16.mxu0 0
  %818 = vmatpush1.bf16.msra.mxu0 0
  %819 = vmatprep.mubr.bf16.mxu0 0
  %820 = vmatmul.mubr.bf16.gmra.mrb[0].mxu0 %v785
  %v821 = vpop.f32.mrb[0].mxu0
  %v822 = vadd.f32 0.0, %v821
  %v823 = vpop.f32.mrb[0].mxu0
  %v824 = vadd.f32 0.0, %v823
  %v825 = vpop.f32.mrb[0].mxu0
  %v826 = vpop.f32.mrb[0].mxu0
  %827 = vdwg.mxu0
  %v830 = vcombine.low %v822, %v824
  %v832 = vunpack.c.l.s4 1983009808
  %v833 = vunpack.c.0.s8 %v832
  %v834 = vlaneseq
  %v835 = vshrl.u32 %v834, 7
  %v836 = vsub.s32 %v833, %v835
  %v837 = vrot.slane %v830, %v836
  %v839 = vadd.f32 %v734, %v837
  %v840 = vxor.u32 %v839, 2147483648
  %v841 = vmul.f32 %v840, 1.442695
  %v842 = vpow.pop %v841
  %v843 = vadd.f32 %v842, 1.0
  %v844 = vrcp.pop %v843
  %v845 = vmul.f32 1.0, %v844
  %v847 = vrot.slane %v845, 2
  %v849 = vmul.f32 %v847, 2.0
  %v850 = vsub.f32 %v849, 1.0
  %v851 = vmul.f32 %v845, %v719
  %v852 = vmul.f32 %v845, %v850
  %854 = vrot.lane.b32.xlu0 %v852, 64
  %v855 = vpop.permute.xlu0 %854
  %v857 = vadd.f32 %v851, %v855
  %v858 = vtanh.pop %v857
  %859 = vrot.lane.b32.xlu0 %v845, 64
  %v860 = vpop.permute.xlu0 %859
  %v861 = vrot.slane %v860, 2
  %864 = vrot.lane.b32.xlu0 %v858, 64
  %v865 = vpop.permute.xlu0 %864
  %v867 = vmul.f32 %v861, %v865
  %868 = vst.msk [vmem:[%s452] sm:$0x3] %vm169, %v867
  %869 = vst.msk [vmem:[%s450] sm:$0x3] %vm172, %v867
  %s870 = scalar_lea.vmem %s0, 12
  %v871 = vld [vmem:[%s870] sm:$0x3]
  %v872 = vunpack.c.l.bf16 %v871
  %v873 = vpack.c.bf16 %v867, %v867
  %v874 = vld [vmem:[%s1] sm:$0xff]
  %v875 = vld [vmem:[%s1 + $0x8] sm:$0xff]
  %v876 = vld [vmem:[%s1 + $0x10] sm:$0xff]
  %v877 = vld [vmem:[%s1 + $0x18] sm:$0xff]
  %v878 = vld [vmem:[%s1 + $0x20] sm:$0xff]
  %v879 = vld [vmem:[%s1 + $0x28] sm:$0xff]
  %v880 = vld [vmem:[%s1 + $0x30] sm:$0xff]
  %v881 = vld [vmem:[%s1 + $0x38] sm:$0xff]
  %v890 = vunpack.c.l.b16 %v874
  %v891 = vunpack.c.h.b16 %v874
  %v892 = vunpack.c.l.b16 %v875
  %v893 = vunpack.c.h.b16 %v875
  %v894 = vunpack.c.l.b16 %v876
  %v895 = vunpack.c.h.b16 %v876
  %v896 = vunpack.c.l.b16 %v877
  %v897 = vunpack.c.h.b16 %v877
  %v898 = vunpack.c.l.b16 %v878
  %v899 = vunpack.c.h.b16 %v878
  %v900 = vunpack.c.l.b16 %v879
  %v901 = vunpack.c.h.b16 %v879
  %v902 = vunpack.c.l.b16 %v880
  %v903 = vunpack.c.h.b16 %v880
  %v904 = vunpack.c.l.b16 %v881
  %v905 = vunpack.c.h.b16 %v881
  %v906 = vpack.c.b16 %v892, %v890
  %v907 = vpack.c.b16 %v893, %v891
  %v908 = vpack.c.b16 %v896, %v894
  %v909 = vpack.c.b16 %v897, %v895
  %v910 = vpack.c.b16 %v900, %v898
  %v911 = vpack.c.b16 %v901, %v899
  %v912 = vpack.c.b16 %v904, %v902
  %v913 = vpack.c.b16 %v905, %v903
  %v923 = vsel %vm73, %v873, 0
  %925 = vmatprep.subr.bf16.mxu0 %v907
  %926 = vmatpush1.bf16.msra.mxu0 %v906
  %927 = vmatprep.subr.bf16.mxu0 %v909
  %928 = vmatpush1.bf16.msra.mxu0 %v908
  %929 = vmatprep.subr.bf16.mxu0 %v911
  %930 = vmatpush1.bf16.msra.mxu0 %v910
  %931 = vmatprep.subr.bf16.mxu0 %v913
  %932 = vmatpush1.bf16.msra.mxu0 %v912
  %933 = vmatprep.subr.bf16.mxu0 0
  %934 = vmatpush1.bf16.msra.mxu0 0
  %935 = vmatprep.subr.bf16.mxu0 0
  %936 = vmatpush1.bf16.msra.mxu0 0
  %937 = vmatprep.subr.bf16.mxu0 0
  %938 = vmatpush1.bf16.msra.mxu0 0
  %939 = vmatprep.subr.bf16.mxu0 0
  %940 = vmatpush1.bf16.msra.mxu0 0
  %941 = vmatprep.subr.bf16.mxu0 0
  %942 = vmatpush1.bf16.msra.mxu0 0
  %943 = vmatprep.subr.bf16.mxu0 0
  %944 = vmatpush1.bf16.msra.mxu0 0
  %945 = vmatprep.subr.bf16.mxu0 0
  %946 = vmatpush1.bf16.msra.mxu0 0
  %947 = vmatprep.subr.bf16.mxu0 0
  %948 = vmatpush1.bf16.msra.mxu0 0
  %949 = vmatprep.subr.bf16.mxu0 0
  %950 = vmatpush1.bf16.msra.mxu0 0
  %951 = vmatprep.subr.bf16.mxu0 0
  %952 = vmatpush1.bf16.msra.mxu0 0
  %953 = vmatprep.subr.bf16.mxu0 0
  %954 = vmatpush1.bf16.msra.mxu0 0
  %955 = vmatprep.subr.bf16.mxu0 0
  %956 = vmatpush1.bf16.msra.mxu0 0
  %957 = vmatprep.mubr.bf16.mxu0 0
  %958 = vmatmul.mubr.bf16.gmra.mrb[0].mxu0 %v923
  %v959 = vpop.f32.mrb[0].mxu0
  %v960 = vadd.f32 0.0, %v959
  %v961 = vpop.f32.mrb[0].mxu0
  %v962 = vadd.f32 0.0, %v961
  %v963 = vpop.f32.mrb[0].mxu0
  %v964 = vpop.f32.mrb[0].mxu0
  %965 = vdwg.mxu0
  %v968 = vcombine.low %v960, %v962
  %v970 = vunpack.c.l.s4 1983009808
  %v971 = vunpack.c.0.s8 %v970
  %v972 = vlaneseq
  %v973 = vshrl.u32 %v972, 7
  %v974 = vsub.s32 %v971, %v973
  %v975 = vrot.slane %v968, %v974
  %v977 = vadd.f32 %v872, %v975
  %v978 = vxor.u32 %v977, 2147483648
  %v979 = vmul.f32 %v978, 1.442695
  %v980 = vpow.pop %v979
  %v981 = vadd.f32 %v980, 1.0
  %v982 = vrcp.pop %v981
  %v983 = vmul.f32 1.0, %v982
  %v985 = vrot.slane %v983, 2
  %v987 = vmul.f32 %v985, 2.0
  %v988 = vsub.f32 %v987, 1.0
  %v989 = vmul.f32 %v983, %v857
  %v990 = vmul.f32 %v983, %v988
  %992 = vrot.lane.b32.xlu0 %v990, 64
  %v993 = vpop.permute.xlu0 %992
  %v995 = vadd.f32 %v989, %v993
  %v996 = vtanh.pop %v995
  %997 = vrot.lane.b32.xlu0 %v983, 64
  %v998 = vpop.permute.xlu0 %997
  %v999 = vrot.slane %v998, 2
  %1002 = vrot.lane.b32.xlu0 %v996, 64
  %v1003 = vpop.permute.xlu0 %1002
  %v1005 = vmul.f32 %v999, %v1003
  %1006 = vst.msk [vmem:[%s312] sm:$0x3] %vm169, %v1005
  %1007 = vst.msk [vmem:[%s310] sm:$0x3] %vm172, %v1005
  %s1008 = scalar_lea.vmem %s0, 14
  %v1009 = vld [vmem:[%s1008] sm:$0x3]
  %v1010 = vunpack.c.l.bf16 %v1009
  %v1011 = vpack.c.bf16 %v1005, %v1005
  %v1012 = vld [vmem:[%s1] sm:$0xff]
  %v1013 = vld [vmem:[%s1 + $0x8] sm:$0xff]
  %v1014 = vld [vmem:[%s1 + $0x10] sm:$0xff]
  %v1015 = vld [vmem:[%s1 + $0x18] sm:$0xff]
  %v1016 = vld [vmem:[%s1 + $0x20] sm:$0xff]
  %v1017 = vld [vmem:[%s1 + $0x28] sm:$0xff]
  %v1018 = vld [vmem:[%s1 + $0x30] sm:$0xff]
  %v1019 = vld [vmem:[%s1 + $0x38] sm:$0xff]
  %v1028 = vunpack.c.l.b16 %v1012
  %v1029 = vunpack.c.h.b16 %v1012
  %v1030 = vunpack.c.l.b16 %v1013
  %v1031 = vunpack.c.h.b16 %v1013
  %v1032 = vunpack.c.l.b16 %v1014
  %v1033 = vunpack.c.h.b16 %v1014
  %v1034 = vunpack.c.l.b16 %v1015
  %v1035 = vunpack.c.h.b16 %v1015
  %v1036 = vunpack.c.l.b16 %v1016
  %v1037 = vunpack.c.h.b16 %v1016
  %v1038 = vunpack.c.l.b16 %v1017
  %v1039 = vunpack.c.h.b16 %v1017
  %v1040 = vunpack.c.l.b16 %v1018
  %v1041 = vunpack.c.h.b16 %v1018
  %v1042 = vunpack.c.l.b16 %v1019
  %v1043 = vunpack.c.h.b16 %v1019
  %v1044 = vpack.c.b16 %v1030, %v1028
  %v1045 = vpack.c.b16 %v1031, %v1029
  %v1046 = vpack.c.b16 %v1034, %v1032
  %v1047 = vpack.c.b16 %v1035, %v1033
  %v1048 = vpack.c.b16 %v1038, %v1036
  %v1049 = vpack.c.b16 %v1039, %v1037
  %v1050 = vpack.c.b16 %v1042, %v1040
  %v1051 = vpack.c.b16 %v1043, %v1041
  %v1061 = vsel %vm73, %v1011, 0
  %1063 = vmatprep.subr.bf16.mxu0 %v1045
  %1064 = vmatpush1.bf16.msra.mxu0 %v1044
  %1065 = vmatprep.subr.bf16.mxu0 %v1047
  %1066 = vmatpush1.bf16.msra.mxu0 %v1046
  %1067 = vmatprep.subr.bf16.mxu0 %v1049
  %1068 = vmatpush1.bf16.msra.mxu0 %v1048
  %1069 = vmatprep.subr.bf16.mxu0 %v1051
  %1070 = vmatpush1.bf16.msra.mxu0 %v1050
  %1071 = vmatprep.subr.bf16.mxu0 0
  %1072 = vmatpush1.bf16.msra.mxu0 0
  %1073 = vmatprep.subr.bf16.mxu0 0
  %1074 = vmatpush1.bf16.msra.mxu0 0
  %1075 = vmatprep.subr.bf16.mxu0 0
  %1076 = vmatpush1.bf16.msra.mxu0 0
  %1077 = vmatprep.subr.bf16.mxu0 0
  %1078 = vmatpush1.bf16.msra.mxu0 0
  %1079 = vmatprep.subr.bf16.mxu0 0
  %1080 = vmatpush1.bf16.msra.mxu0 0
  %1081 = vmatprep.subr.bf16.mxu0 0
  %1082 = vmatpush1.bf16.msra.mxu0 0
  %1083 = vmatprep.subr.bf16.mxu0 0
  %1084 = vmatpush1.bf16.msra.mxu0 0
  %1085 = vmatprep.subr.bf16.mxu0 0
  %1086 = vmatpush1.bf16.msra.mxu0 0
  %1087 = vmatprep.subr.bf16.mxu0 0
  %1088 = vmatpush1.bf16.msra.mxu0 0
  %1089 = vmatprep.subr.bf16.mxu0 0
  %1090 = vmatpush1.bf16.msra.mxu0 0
  %1091 = vmatprep.subr.bf16.mxu0 0
  %1092 = vmatpush1.bf16.msra.mxu0 0
  %1093 = vmatprep.subr.bf16.mxu0 0
  %1094 = vmatpush1.bf16.msra.mxu0 0
  %1095 = vmatprep.mubr.bf16.mxu0 0
  %1096 = vmatmul.mubr.bf16.gmra.mrb[0].mxu0 %v1061
  %v1097 = vpop.f32.mrb[0].mxu0
  %v1098 = vadd.f32 0.0, %v1097
  %v1099 = vpop.f32.mrb[0].mxu0
  %v1100 = vadd.f32 0.0, %v1099
  %v1101 = vpop.f32.mrb[0].mxu0
  %v1102 = vpop.f32.mrb[0].mxu0
  %1103 = vdwg.mxu0
  %v1106 = vcombine.low %v1098, %v1100
  %v1108 = vunpack.c.l.s4 1983009808
  %v1109 = vunpack.c.0.s8 %v1108
  %v1110 = vlaneseq
  %v1111 = vshrl.u32 %v1110, 7
  %v1112 = vsub.s32 %v1109, %v1111
  %v1113 = vrot.slane %v1106, %v1112
  %v1115 = vadd.f32 %v1010, %v1113
  %v1116 = vxor.u32 %v1115, 2147483648
  %v1117 = vmul.f32 %v1116, 1.442695
  %v1118 = vpow.pop %v1117
  %v1119 = vadd.f32 %v1118, 1.0
  %v1120 = vrcp.pop %v1119
  %v1121 = vmul.f32 1.0, %v1120
  %v1123 = vrot.slane %v1121, 2
  %v1125 = vmul.f32 %v1123, 2.0
  %v1126 = vsub.f32 %v1125, 1.0
  %v1127 = vmul.f32 %v1121, %v995
  %v1128 = vmul.f32 %v1121, %v1126
  %1130 = vrot.lane.b32.xlu0 %v1128, 64
  %v1131 = vpop.permute.xlu0 %1130
  %v1133 = vadd.f32 %v1127, %v1131
  %v1134 = vtanh.pop %v1133
  %1135 = vrot.lane.b32.xlu0 %v1121, 64
  %v1136 = vpop.permute.xlu0 %1135
  %v1137 = vrot.slane %v1136, 2
  %1140 = vrot.lane.b32.xlu0 %v1134, 64
  %v1141 = vpop.permute.xlu0 %1140
  %v1143 = vmul.f32 %v1137, %v1141
  %1144 = vst.msk [vmem:[%s171] sm:$0x3] %vm169, %v1143
  %1145 = vst.msk [vmem:[%s4] sm:$0x3] %vm172, %v1143
  %vm1146 = vcmask 517120
  %1147 = vst.msk [vmem:[%s5] sm:$0x3] %vm1146, %v1143
  // Predicated region
  $region18: #{lstm_cell_forward.3} parent=0 // pred_check
    _
  $region19: #{lstm_cell_forward.3} parent=0 // pred_check_branch
    %1149 = sbr.rel (0) target = $region21
  $region20: #{lstm_cell_forward.3} parent=0 // pred_region
    _
  $region21: #{lstm_cell_forward.3} parent=0 // pred_fallthru
    _
  // Predicated region
  $region22: #{lstm_cell_forward.3} parent=0 // pred_check
    _
  $region23: #{lstm_cell_forward.3} parent=0 // pred_check_branch
    %1151 = sbr.rel (0) target = $region25
  $region24: #{lstm_cell_forward.3} parent=0 // pred_region
    _
  $region25: #{lstm_cell_forward.3} parent=0 // pred_fallthru
    _
  // Predicated region
  $region26: #{lstm_cell_forward.3} parent=0 // pred_check
    _
  $region27: #{lstm_cell_forward.3} parent=0 // pred_check_branch
    %1153 = sbr.rel (0) target = $region29
  $region28: #{lstm_cell_forward.3} parent=0 // pred_region
    _
  $region29: #{lstm_cell_forward.3} parent=0 // pred_fallthru
    _
  // Predicated region
  $region30: #{lstm_cell_forward.3} parent=0 // pred_check
    _
  $region31: #{lstm_cell_forward.3} parent=0 // pred_check_branch
    %1155 = sbr.rel (0) target = $region33
  $region32: #{lstm_cell_forward.3} parent=0 // pred_region
    _
  $region33: #{lstm_cell_forward.3} parent=0 // pred_fallthru
    _

// kernel: lstm_cell_forward.2
$region0: #{lstm_cell_forward.2}
  #allocation0 [shape = 'u32[]', space=smem, size = 0x4, offset = 0x4, fixed_abs, tag = 'smem constant byte address 0x4 - core index']
  #allocation1 [shape = 'u32[144,128]{1,0:T(1,128)}', space=vmem, size = 0x12000, scoped, tag = 'internal scratch']
  %s0 = inlined_call_operand.vmem [shape: bf16[8,2,256], index: 0, kind: input, shape index: {}]
  %s1 = inlined_call_operand.vmem [shape: bf16[64,256], index: 1, kind: input, shape index: {}]
  %s2 = inlined_call_operand.vmem [shape: f32[2,64], index: 2, kind: input, shape index: {}]
  %s3 = inlined_call_operand.vmem [shape: f32[2,64], index: 3, kind: input, shape index: {}]
  %s4 = inlined_call_operand.vmem [shape: f32[8,2,64], index: 4, kind: output, shape index: {0}]
  %s5 = inlined_call_operand.hbm [shape: f32[2,64], index: 5, kind: output, shape index: {1}]
  %6 = xla_tuple %s4, %s5
  %s7 = sld [smem:[#allocation0]]
  $region34: #{lstm_cell_forward.2} parent=0
    _
  %s9 = ssub.s32 1, %s7
  %s10 = scalar_select 0, %s9, %s7
  $region1: #{lstm_cell_forward.2} parent=0
    #allocation2 [shape = 'u8[1024]{0}', space=vmem, size = 0x400, scoped, tag = 'output window, operand 1, single buffered']
    #allocation3 [shape = 's32[1]{0}', space=sflag, size = 0x4, scoped, tag = 'scoped memory for lstm_cell_forward.2']
    %11 = vsyncpa [#allocation3], 0
    // Predicated region
    $region2: #{lstm_cell_forward.2} parent=1 // pred_check
      _
    $region3: #{lstm_cell_forward.2} parent=1 // pred_check_branch
      %13 = sbr.rel (0) target = $region5
    $region4: #{lstm_cell_forward.2} parent=1 // pred_region
      _
    $region5: #{lstm_cell_forward.2} parent=1 // pred_fallthru
      _
    // Predicated region
    $region6: #{lstm_cell_forward.2} parent=1 // pred_check
      _
    $region7: #{lstm_cell_forward.2} parent=1 // pred_check_branch
      %15 = sbr.rel (0) target = $region9
    $region8: #{lstm_cell_forward.2} parent=1 // pred_region
      _
    $region9: #{lstm_cell_forward.2} parent=1 // pred_fallthru
      _
    // Predicated region
    $region10: #{lstm_cell_forward.2} parent=1 // pred_check
      _
    $region11: #{lstm_cell_forward.2} parent=1 // pred_check_branch
      %17 = sbr.rel (0) target = $region13
    $region12: #{lstm_cell_forward.2} parent=1 // pred_region
      _
    $region13: #{lstm_cell_forward.2} parent=1 // pred_fallthru
      _
    // Predicated region
    $region14: #{lstm_cell_forward.2} parent=1 // pred_check
      _
    $region15: #{lstm_cell_forward.2} parent=1 // pred_check_branch
      %19 = sbr.rel (0) target = $region17
    $region16: #{lstm_cell_forward.2} parent=1 // pred_region
      _
    $region17: #{lstm_cell_forward.2} parent=1 // pred_fallthru
      _
    %v21 = vld [vmem:[%s2] sm:$0x3]
    %v22 = vld [vmem:[%s3] sm:$0x3]
    %v23 = vld [vmem:[%s0] sm:$0x3]
    %v24 = vunpack.c.l.bf16 %v23
    %v25 = vpack.c.bf16 %v21, %v21
    %v26 = vld [vmem:[%s1] sm:$0xff]
    %v27 = vld [vmem:[%s1 + $0x8] sm:$0xff]
    %v28 = vld [vmem:[%s1 + $0x10] sm:$0xff]
    %v29 = vld [vmem:[%s1 + $0x18] sm:$0xff]
    %v30 = vld [vmem:[%s1 + $0x20] sm:$0xff]
    %v31 = vld [vmem:[%s1 + $0x28] sm:$0xff]
    %v32 = vld [vmem:[%s1 + $0x30] sm:$0xff]
    %v33 = vld [vmem:[%s1 + $0x38] sm:$0xff]
    %v42 = vunpack.c.l.b16 %v26
    %v43 = vunpack.c.h.b16 %v26
    %v44 = vunpack.c.l.b16 %v27
    %v45 = vunpack.c.h.b16 %v27
    %v46 = vunpack.c.l.b16 %v28
    %v47 = vunpack.c.h.b16 %v28
    %v48 = vunpack.c.l.b16 %v29
    %v49 = vunpack.c.h.b16 %v29
    %v50 = vunpack.c.l.b16 %v30
    %v51 = vunpack.c.h.b16 %v30
    %v52 = vunpack.c.l.b16 %v31
    %v53 = vunpack.c.h.b16 %v31
    %v54 = vunpack.c.l.b16 %v32
    %v55 = vunpack.c.h.b16 %v32
    %v56 = vunpack.c.l.b16 %v33
    %v57 = vunpack.c.h.b16 %v33
    %v58 = vpack.c.b16 %v44, %v42
    %v59 = vpack.c.b16 %v45, %v43
    %v60 = vpack.c.b16 %v48, %v46
    %v61 = vpack.c.b16 %v49, %v47
    %v62 = vpack.c.b16 %v52, %v50
    %v63 = vpack.c.b16 %v53, %v51
    %v64 = vpack.c.b16 %v56, %v54
    %v65 = vpack.c.b16 %v57, %v55
    %vm74 = vcmask 523264
    %v76 = vsel %vm74, %v25, 0
    %78 = vmatprep.subr.bf16.mxu0 %v59
    %79 = vmatpush1.bf16.msra.mxu0 %v58
    %80 = vmatprep.subr.bf16.mxu0 %v61
    %81 = vmatpush1.bf16.msra.mxu0 %v60
    %82 = vmatprep.subr.bf16.mxu0 %v63
    %83 = vmatpush1.bf16.msra.mxu0 %v62
    %84 = vmatprep.subr.bf16.mxu0 %v65
    %85 = vmatpush1.bf16.msra.mxu0 %v64
    %86 = vmatprep.subr.bf16.mxu0 0
    %87 = vmatpush1.bf16.msra.mxu0 0
    %88 = vmatprep.subr.bf16.mxu0 0
    %89 = vmatpush1.bf16.msra.mxu0 0
    %90 = vmatprep.subr.bf16.mxu0 0
    %91 = vmatpush1.bf16.msra.mxu0 0
    %92 = vmatprep.subr.bf16.mxu0 0
    %93 = vmatpush1.bf16.msra.mxu0 0
    %94 = vmatprep.subr.bf16.mxu0 0
    %95 = vmatpush1.bf16.msra.mxu0 0
    %96 = vmatprep.subr.bf16.mxu0 0
    %97 = vmatpush1.bf16.msra.mxu0 0
    %98 = vmatprep.subr.bf16.mxu0 0
    %99 = vmatpush1.bf16.msra.mxu0 0
    %100 = vmatprep.subr.bf16.mxu0 0
    %101 = vmatpush1.bf16.msra.mxu0 0
    %102 = vmatprep.subr.bf16.mxu0 0
    %103 = vmatpush1.bf16.msra.mxu0 0
    %104 = vmatprep.subr.bf16.mxu0 0
    %105 = vmatpush1.bf16.msra.mxu0 0
    %106 = vmatprep.subr.bf16.mxu0 0
    %107 = vmatpush1.bf16.msra.mxu0 0
    %108 = vmatprep.subr.bf16.mxu0 0
    %109 = vmatpush1.bf16.msra.mxu0 0
    %110 = vmatprep.mubr.bf16.mxu0 0
    %111 = vmatmul.mubr.bf16.gmra.mrb[0].mxu0 %v76
    %v112 = vpop.f32.mrb[0].mxu0
    %v113 = vadd.f32 0.0, %v112
    %v114 = vpop.f32.mrb[0].mxu0
    %v115 = vadd.f32 0.0, %v114
    %v116 = vpop.f32.mrb[0].mxu0
    %v117 = vpop.f32.mrb[0].mxu0
    %118 = vdwg.mxu0
    %v121 = vcombine.low %v113, %v115
    %v123 = vunpack.c.l.s4 1983009808
    %v124 = vunpack.c.0.s8 %v123
    %v125 = vlaneseq
    %v126 = vshrl.u32 %v125, 7
    %v127 = vsub.s32 %v124, %v126
    %v128 = vrot.slane %v121, %v127
    %v130 = vadd.f32 %v24, %v128
    %v131 = vxor.u32 %v130, 2147483648
    %v132 = vmul.f32 %v131, 1.442695
    %v133 = vpow.pop %v132
    %v134 = vadd.f32 %v133, 1.0
    %v135 = vrcp.pop %v134
    %v136 = vmul.f32 1.0, %v135
    %v138 = vrot.slane %v136, 2
    %v140 = vmul.f32 %v138, 2.0
    %v141 = vsub.f32 %v140, 1.0
    %v144 = vunpack.c.l.s4 1983009808
    %v145 = vunpack.c.0.s8 %v144
    %v146 = vlaneseq
    %v147 = vshrl.u32 %v146, 7
    %v148 = vsub.s32 %v145, %v147
    %v149 = vrot.slane %v22, %v148
    %150 = vrot.lane.b32.xlu0 %v149, 64
    %v151 = vpop.permute.xlu0 %150
    %v153 = vmul.f32 %v136, %v151
    %v154 = vmul.f32 %v136, %v141
    %156 = vrot.lane.b32.xlu0 %v154, 64
    %v157 = vpop.permute.xlu0 %156
    %v159 = vadd.f32 %v153, %v157
    %v160 = vtanh.pop %v159
    %161 = vrot.lane.b32.xlu0 %v136, 64
    %v162 = vpop.permute.xlu0 %161
    %v163 = vrot.slane %v162, 2
    %166 = vrot.lane.b32.xlu0 %v160, 64
    %v167 = vpop.permute.xlu0 %166
    %v169 = vmul.f32 %v163, %v167
    %vm170 = vcmask 254976
    %171 = vst.msk [vmem:[%s4] sm:$0x3] %vm170, %v169
    %s172 = scalar_lea.vmem %s4, 14
    %vm173 = vcmask 517376
    %174 = vst.msk [vmem:[%s172] sm:$0x3] %vm173, %v169
    %s175 = scalar_lea.vmem %s0, 2
    %v176 = vld [vmem:[%s175] sm:$0x3]
    %v177 = vunpack.c.l.bf16 %v176
    %v178 = vpack.c.bf16 %v169, %v169
    %v179 = vld [vmem:[%s1] sm:$0xff]
    %v180 = vld [vmem:[%s1 + $0x8] sm:$0xff]
    %v181 = vld [vmem:[%s1 + $0x10] sm:$0xff]
    %v182 = vld [vmem:[%s1 + $0x18] sm:$0xff]
    %v183 = vld [vmem:[%s1 + $0x20] sm:$0xff]
    %v184 = vld [vmem:[%s1 + $0x28] sm:$0xff]
    %v185 = vld [vmem:[%s1 + $0x30] sm:$0xff]
    %v186 = vld [vmem:[%s1 + $0x38] sm:$0xff]
    %v195 = vunpack.c.l.b16 %v179
    %v196 = vunpack.c.h.b16 %v179
    %v197 = vunpack.c.l.b16 %v180
    %v198 = vunpack.c.h.b16 %v180
    %v199 = vunpack.c.l.b16 %v181
    %v200 = vunpack.c.h.b16 %v181
    %v201 = vunpack.c.l.b16 %v182
    %v202 = vunpack.c.h.b16 %v182
    %v203 = vunpack.c.l.b16 %v183
    %v204 = vunpack.c.h.b16 %v183
    %v205 = vunpack.c.l.b16 %v184
    %v206 = vunpack.c.h.b16 %v184
    %v207 = vunpack.c.l.b16 %v185
    %v208 = vunpack.c.h.b16 %v185
    %v209 = vunpack.c.l.b16 %v186
    %v210 = vunpack.c.h.b16 %v186
    %v211 = vpack.c.b16 %v197, %v195
    %v212 = vpack.c.b16 %v198, %v196
    %v213 = vpack.c.b16 %v201, %v199
    %v214 = vpack.c.b16 %v202, %v200
    %v215 = vpack.c.b16 %v205, %v203
    %v216 = vpack.c.b16 %v206, %v204
    %v217 = vpack.c.b16 %v209, %v207
    %v218 = vpack.c.b16 %v210, %v208
    %v228 = vsel %vm74, %v178, 0
    %230 = vmatprep.subr.bf16.mxu0 %v212
    %231 = vmatpush1.bf16.msra.mxu0 %v211
    %232 = vmatprep.subr.bf16.mxu0 %v214
    %233 = vmatpush1.bf16.msra.mxu0 %v213
    %234 = vmatprep.subr.bf16.mxu0 %v216
    %235 = vmatpush1.bf16.msra.mxu0 %v215
    %236 = vmatprep.subr.bf16.mxu0 %v218
    %237 = vmatpush1.bf16.msra.mxu0 %v217
    %238 = vmatprep.subr.bf16.mxu0 0
    %239 = vmatpush1.bf16.msra.mxu0 0
    %240 = vmatprep.subr.bf16.mxu0 0
    %241 = vmatpush1.bf16.msra.mxu0 0
    %242 = vmatprep.subr.bf16.mxu0 0
    %243 = vmatpush1.bf16.msra.mxu0 0
    %244 = vmatprep.subr.bf16.mxu0 0
    %245 = vmatpush1.bf16.msra.mxu0 0
    %246 = vmatprep.subr.bf16.mxu0 0
    %247 = vmatpush1.bf16.msra.mxu0 0
    %248 = vmatprep.subr.bf16.mxu0 0
    %249 = vmatpush1.bf16.msra.mxu0 0
    %250 = vmatprep.subr.bf16.mxu0 0
    %251 = vmatpush1.bf16.msra.mxu0 0
    %252 = vmatprep.subr.bf16.mxu0 0
    %253 = vmatpush1.bf16.msra.mxu0 0
    %254 = vmatprep.subr.bf16.mxu0 0
    %255 = vmatpush1.bf16.msra.mxu0 0
    %256 = vmatprep.subr.bf16.mxu0 0
    %257 = vmatpush1.bf16.msra.mxu0 0
    %258 = vmatprep.subr.bf16.mxu0 0
    %259 = vmatpush1.bf16.msra.mxu0 0
    %260 = vmatprep.subr.bf16.mxu0 0
    %261 = vmatpush1.bf16.msra.mxu0 0
    %262 = vmatprep.mubr.bf16.mxu0 0
    %263 = vmatmul.mubr.bf16.gmra.mrb[0].mxu0 %v228
    %v264 = vpop.f32.mrb[0].mxu0
    %v265 = vadd.f32 0.0, %v264
    %v266 = vpop.f32.mrb[0].mxu0
    %v267 = vadd.f32 0.0, %v266
    %v268 = vpop.f32.mrb[0].mxu0
    %v269 = vpop.f32.mrb[0].mxu0
    %270 = vdwg.mxu0
    %v273 = vcombine.low %v265, %v267
    %v275 = vunpack.c.l.s4 1983009808
    %v276 = vunpack.c.0.s8 %v275
    %v277 = vlaneseq
    %v278 = vshrl.u32 %v277, 7
    %v279 = vsub.s32 %v276, %v278
    %v280 = vrot.slane %v273, %v279
    %v282 = vadd.f32 %v177, %v280
    %v283 = vxor.u32 %v282, 2147483648
    %v284 = vmul.f32 %v283, 1.442695
    %v285 = vpow.pop %v284
    %v286 = vadd.f32 %v285, 1.0
    %v287 = vrcp.pop %v286
    %v288 = vmul.f32 1.0, %v287
    %v290 = vrot.slane %v288, 2
    %v292 = vmul.f32 %v290, 2.0
    %v293 = vsub.f32 %v292, 1.0
    %v294 = vmul.f32 %v288, %v159
    %v295 = vmul.f32 %v288, %v293
    %297 = vrot.lane.b32.xlu0 %v295, 64
    %v298 = vpop.permute.xlu0 %297
    %v300 = vadd.f32 %v294, %v298
    %v301 = vtanh.pop %v300
    %302 = vrot.lane.b32.xlu0 %v288, 64
    %v303 = vpop.permute.xlu0 %302
    %v304 = vrot.slane %v303, 2
    %307 = vrot.lane.b32.xlu0 %v301, 64
    %v308 = vpop.permute.xlu0 %307
    %v310 = vmul.f32 %v304, %v308
    %s311 = scalar_lea.vmem %s4, 2
    %312 = vst.msk [vmem:[%s311] sm:$0x3] %vm170, %v310
    %s313 = scalar_lea.vmem %s4, 12
    %314 = vst.msk [vmem:[%s313] sm:$0x3] %vm173, %v310
    %s315 = scalar_lea.vmem %s0, 4
    %v316 = vld [vmem:[%s315] sm:$0x3]
    %v317 = vunpack.c.l.bf16 %v316
    %v318 = vpack.c.bf16 %v310, %v310
    %v319 = vld [vmem:[%s1] sm:$0xff]
    %v320 = vld [vmem:[%s1 + $0x8] sm:$0xff]
    %v321 = vld [vmem:[%s1 + $0x10] sm:$0xff]
    %v322 = vld [vmem:[%s1 + $0x18] sm:$0xff]
    %v323 = vld [vmem:[%s1 + $0x20] sm:$0xff]
    %v324 = vld [vmem:[%s1 + $0x28] sm:$0xff]
    %v325 = vld [vmem:[%s1 + $0x30] sm:$0xff]
    %v326 = vld [vmem:[%s1 + $0x38] sm:$0xff]
    %v335 = vunpack.c.l.b16 %v319
    %v336 = vunpack.c.h.b16 %v319
    %v337 = vunpack.c.l.b16 %v320
    %v338 = vunpack.c.h.b16 %v320
    %v339 = vunpack.c.l.b16 %v321
    %v340 = vunpack.c.h.b16 %v321
    %v341 = vunpack.c.l.b16 %v322
    %v342 = vunpack.c.h.b16 %v322
    %v343 = vunpack.c.l.b16 %v323
    %v344 = vunpack.c.h.b16 %v323
    %v345 = vunpack.c.l.b16 %v324
    %v346 = vunpack.c.h.b16 %v324
    %v347 = vunpack.c.l.b16 %v325
    %v348 = vunpack.c.h.b16 %v325
    %v349 = vunpack.c.l.b16 %v326
    %v350 = vunpack.c.h.b16 %v326
    %v351 = vpack.c.b16 %v337, %v335
    %v352 = vpack.c.b16 %v338, %v336
    %v353 = vpack.c.b16 %v341, %v339
    %v354 = vpack.c.b16 %v342, %v340
    %v355 = vpack.c.b16 %v345, %v343
    %v356 = vpack.c.b16 %v346, %v344
    %v357 = vpack.c.b16 %v349, %v347
    %v358 = vpack.c.b16 %v350, %v348
    %v368 = vsel %vm74, %v318, 0
    %370 = vmatprep.subr.bf16.mxu0 %v352
    %371 = vmatpush1.bf16.msra.mxu0 %v351
    %372 = vmatprep.subr.bf16.mxu0 %v354
    %373 = vmatpush1.bf16.msra.mxu0 %v353
    %374 = vmatprep.subr.bf16.mxu0 %v356
    %375 = vmatpush1.bf16.msra.mxu0 %v355
    %376 = vmatprep.subr.bf16.mxu0 %v358
    %377 = vmatpush1.bf16.msra.mxu0 %v357
    %378 = vmatprep.subr.bf16.mxu0 0
    %379 = vmatpush1.bf16.msra.mxu0 0
    %380 = vmatprep.subr.bf16.mxu0 0
    %381 = vmatpush1.bf16.msra.mxu0 0
    %382 = vmatprep.subr.bf16.mxu0 0
    %383 = vmatpush1.bf16.msra.mxu0 0
    %384 = vmatprep.subr.bf16.mxu0 0
    %385 = vmatpush1.bf16.msra.mxu0 0
    %386 = vmatprep.subr.bf16.mxu0 0
    %387 = vmatpush1.bf16.msra.mxu0 0
    %388 = vmatprep.subr.bf16.mxu0 0
    %389 = vmatpush1.bf16.msra.mxu0 0
    %390 = vmatprep.subr.bf16.mxu0 0
    %391 = vmatpush1.bf16.msra.mxu0 0
    %392 = vmatprep.subr.bf16.mxu0 0
    %393 = vmatpush1.bf16.msra.mxu0 0
    %394 = vmatprep.subr.bf16.mxu0 0
    %395 = vmatpush1.bf16.msra.mxu0 0
    %396 = vmatprep.subr.bf16.mxu0 0
    %397 = vmatpush1.bf16.msra.mxu0 0
    %398 = vmatprep.subr.bf16.mxu0 0
    %399 = vmatpush1.bf16.msra.mxu0 0
    %400 = vmatprep.subr.bf16.mxu0 0
    %401 = vmatpush1.bf16.msra.mxu0 0
    %402 = vmatprep.mubr.bf16.mxu0 0
    %403 = vmatmul.mubr.bf16.gmra.mrb[0].mxu0 %v368
    %v404 = vpop.f32.mrb[0].mxu0
    %v405 = vadd.f32 0.0, %v404
    %v406 = vpop.f32.mrb[0].mxu0
    %v407 = vadd.f32 0.0, %v406
    %v408 = vpop.f32.mrb[0].mxu0
    %v409 = vpop.f32.mrb[0].mxu0
    %410 = vdwg.mxu0
    %v413 = vcombine.low %v405, %v407
    %v415 = vunpack.c.l.s4 1983009808
    %v416 = vunpack.c.0.s8 %v415
    %v417 = vlaneseq
    %v418 = vshrl.u32 %v417, 7
    %v419 = vsub.s32 %v416, %v418
    %v420 = vrot.slane %v413, %v419
    %v422 = vadd.f32 %v317, %v420
    %v423 = vxor.u32 %v422, 2147483648
    %v424 = vmul.f32 %v423, 1.442695
    %v425 = vpow.pop %v424
    %v426 = vadd.f32 %v425, 1.0
    %v427 = vrcp.pop %v426
    %v428 = vmul.f32 1.0, %v427
    %v430 = vrot.slane %v428, 2
    %v432 = vmul.f32 %v430, 2.0
    %v433 = vsub.f32 %v432, 1.0
    %v434 = vmul.f32 %v428, %v300
    %v435 = vmul.f32 %v428, %v433
    %437 = vrot.lane.b32.xlu0 %v435, 64
    %v438 = vpop.permute.xlu0 %437
    %v440 = vadd.f32 %v434, %v438
    %v441 = vtanh.pop %v440
    %442 = vrot.lane.b32.xlu0 %v428, 64
    %v443 = vpop.permute.xlu0 %442
    %v444 = vrot.slane %v443, 2
    %447 = vrot.lane.b32.xlu0 %v441, 64
    %v448 = vpop.permute.xlu0 %447
    %v450 = vmul.f32 %v444, %v448
    %s451 = scalar_lea.vmem %s4, 4
    %452 = vst.msk [vmem:[%s451] sm:$0x3] %vm170, %v450
    %s453 = scalar_lea.vmem %s4, 10
    %454 = vst.msk [vmem:[%s453] sm:$0x3] %vm173, %v450
    %s455 = scalar_lea.vmem %s0, 6
    %v456 = vld [vmem:[%s455] sm:$0x3]
    %v457 = vunpack.c.l.bf16 %v456
    %v458 = vpack.c.bf16 %v450, %v450
    %v459 = vld [vmem:[%s1] sm:$0xff]
    %v460 = vld [vmem:[%s1 + $0x8] sm:$0xff]
    %v461 = vld [vmem:[%s1 + $0x10] sm:$0xff]
    %v462 = vld [vmem:[%s1 + $0x18] sm:$0xff]
    %v463 = vld [vmem:[%s1 + $0x20] sm:$0xff]
    %v464 = vld [vmem:[%s1 + $0x28] sm:$0xff]
    %v465 = vld [vmem:[%s1 + $0x30] sm:$0xff]
    %v466 = vld [vmem:[%s1 + $0x38] sm:$0xff]
    %v475 = vunpack.c.l.b16 %v459
    %v476 = vunpack.c.h.b16 %v459
    %v477 = vunpack.c.l.b16 %v460
    %v478 = vunpack.c.h.b16 %v460
    %v479 = vunpack.c.l.b16 %v461
    %v480 = vunpack.c.h.b16 %v461
    %v481 = vunpack.c.l.b16 %v462
    %v482 = vunpack.c.h.b16 %v462
    %v483 = vunpack.c.l.b16 %v463
    %v484 = vunpack.c.h.b16 %v463
    %v485 = vunpack.c.l.b16 %v464
    %v486 = vunpack.c.h.b16 %v464
    %v487 = vunpack.c.l.b16 %v465
    %v488 = vunpack.c.h.b16 %v465
    %v489 = vunpack.c.l.b16 %v466
    %v490 = vunpack.c.h.b16 %v466
    %v491 = vpack.c.b16 %v477, %v475
    %v492 = vpack.c.b16 %v478, %v476
    %v493 = vpack.c.b16 %v481, %v479
    %v494 = vpack.c.b16 %v482, %v480
    %v495 = vpack.c.b16 %v485, %v483
    %v496 = vpack.c.b16 %v486, %v484
    %v497 = vpack.c.b16 %v489, %v487
    %v498 = vpack.c.b16 %v490, %v488
    %v508 = vsel %vm74, %v458, 0
    %510 = vmatprep.subr.bf16.mxu0 %v492
    %511 = vmatpush1.bf16.msra.mxu0 %v491
    %512 = vmatprep.subr.bf16.mxu0 %v494
    %513 = vmatpush1.bf16.msra.mxu0 %v493
    %514 = vmatprep.subr.bf16.mxu0 %v496
    %515 = vmatpush1.bf16.msra.mxu0 %v495
    %516 = vmatprep.subr.bf16.mxu0 %v498
    %517 = vmatpush1.bf16.msra.mxu0 %v497
    %518 = vmatprep.subr.bf16.mxu0 0
    %519 = vmatpush1.bf16.msra.mxu0 0
    %520 = vmatprep.subr.bf16.mxu0 0
    %521 = vmatpush1.bf16.msra.mxu0 0
    %522 = vmatprep.subr.bf16.mxu0 0
    %523 = vmatpush1.bf16.msra.mxu0 0
    %524 = vmatprep.subr.bf16.mxu0 0
    %525 = vmatpush1.bf16.msra.mxu0 0
    %526 = vmatprep.subr.bf16.mxu0 0
    %527 = vmatpush1.bf16.msra.mxu0 0
    %528 = vmatprep.subr.bf16.mxu0 0
    %529 = vmatpush1.bf16.msra.mxu0 0
    %530 = vmatprep.subr.bf16.mxu0 0
    %531 = vmatpush1.bf16.msra.mxu0 0
    %532 = vmatprep.subr.bf16.mxu0 0
    %533 = vmatpush1.bf16.msra.mxu0 0
    %534 = vmatprep.subr.bf16.mxu0 0
    %535 = vmatpush1.bf16.msra.mxu0 0
    %536 = vmatprep.subr.bf16.mxu0 0
    %537 = vmatpush1.bf16.msra.mxu0 0
    %538 = vmatprep.subr.bf16.mxu0 0
    %539 = vmatpush1.bf16.msra.mxu0 0
    %540 = vmatprep.subr.bf16.mxu0 0
    %541 = vmatpush1.bf16.msra.mxu0 0
    %542 = vmatprep.mubr.bf16.mxu0 0
    %543 = vmatmul.mubr.bf16.gmra.mrb[0].mxu0 %v508
    %v544 = vpop.f32.mrb[0].mxu0
    %v545 = vadd.f32 0.0, %v544
    %v546 = vpop.f32.mrb[0].mxu0
    %v547 = vadd.f32 0.0, %v546
    %v548 = vpop.f32.mrb[0].mxu0
    %v549 = vpop.f32.mrb[0].mxu0
    %550 = vdwg.mxu0
    %v553 = vcombine.low %v545, %v547
    %v555 = vunpack.c.l.s4 1983009808
    %v556 = vunpack.c.0.s8 %v555
    %v557 = vlaneseq
    %v558 = vshrl.u32 %v557, 7
    %v559 = vsub.s32 %v556, %v558
    %v560 = vrot.slane %v553, %v559
    %v562 = vadd.f32 %v457, %v560
    %v563 = vxor.u32 %v562, 2147483648
    %v564 = vmul.f32 %v563, 1.442695
    %v565 = vpow.pop %v564
    %v566 = vadd.f32 %v565, 1.0
    %v567 = vrcp.pop %v566
    %v568 = vmul.f32 1.0, %v567
    %v570 = vrot.slane %v568, 2
    %v572 = vmul.f32 %v570, 2.0
    %v573 = vsub.f32 %v572, 1.0
    %v574 = vmul.f32 %v568, %v440
    %v575 = vmul.f32 %v568, %v573
    %577 = vrot.lane.b32.xlu0 %v575, 64
    %v578 = vpop.permute.xlu0 %577
    %v580 = vadd.f32 %v574, %v578
    %v581 = vtanh.pop %v580
    %582 = vrot.lane.b32.xlu0 %v568, 64
    %v583 = vpop.permute.xlu0 %582
    %v584 = vrot.slane %v583, 2
    %587 = vrot.lane.b32.xlu0 %v581, 64
    %v588 = vpop.permute.xlu0 %587
    %v590 = vmul.f32 %v584, %v588
    %s591 = scalar_lea.vmem %s4, 6
    %592 = vst.msk [vmem:[%s591] sm:$0x3] %vm170, %v590
    %s593 = scalar_lea.vmem %s4, 8
    %594 = vst.msk [vmem:[%s593] sm:$0x3] %vm173, %v590
    %s595 = scalar_lea.vmem %s0, 8
    %v596 = vld [vmem:[%s595] sm:$0x3]
    %v597 = vunpack.c.l.bf16 %v596
    %v598 = vpack.c.bf16 %v590, %v590
    %v599 = vld [vmem:[%s1] sm:$0xff]
    %v600 = vld [vmem:[%s1 + $0x8] sm:$0xff]
    %v601 = vld [vmem:[%s1 + $0x10] sm:$0xff]
    %v602 = vld [vmem:[%s1 + $0x18] sm:$0xff]
    %v603 = vld [vmem:[%s1 + $0x20] sm:$0xff]
    %v604 = vld [vmem:[%s1 + $0x28] sm:$0xff]
    %v605 = vld [vmem:[%s1 + $0x30] sm:$0xff]
    %v606 = vld [vmem:[%s1 + $0x38] sm:$0xff]
    %v615 = vunpack.c.l.b16 %v599
    %v616 = vunpack.c.h.b16 %v599
    %v617 = vunpack.c.l.b16 %v600
    %v618 = vunpack.c.h.b16 %v600
    %v619 = vunpack.c.l.b16 %v601
    %v620 = vunpack.c.h.b16 %v601
    %v621 = vunpack.c.l.b16 %v602
    %v622 = vunpack.c.h.b16 %v602
    %v623 = vunpack.c.l.b16 %v603
    %v624 = vunpack.c.h.b16 %v603
    %v625 = vunpack.c.l.b16 %v604
    %v626 = vunpack.c.h.b16 %v604
    %v627 = vunpack.c.l.b16 %v605
    %v628 = vunpack.c.h.b16 %v605
    %v629 = vunpack.c.l.b16 %v606
    %v630 = vunpack.c.h.b16 %v606
    %v631 = vpack.c.b16 %v617, %v615
    %v632 = vpack.c.b16 %v618, %v616
    %v633 = vpack.c.b16 %v621, %v619
    %v634 = vpack.c.b16 %v622, %v620
    %v635 = vpack.c.b16 %v625, %v623
    %v636 = vpack.c.b16 %v626, %v624
    %v637 = vpack.c.b16 %v629, %v627
    %v638 = vpack.c.b16 %v630, %v628
    %v648 = vsel %vm74, %v598, 0
    %650 = vmatprep.subr.bf16.mxu0 %v632
    %651 = vmatpush1.bf16.msra.mxu0 %v631
    %652 = vmatprep.subr.bf16.mxu0 %v634
    %653 = vmatpush1.bf16.msra.mxu0 %v633
    %654 = vmatprep.subr.bf16.mxu0 %v636
    %655 = vmatpush1.bf16.msra.mxu0 %v635
    %656 = vmatprep.subr.bf16.mxu0 %v638
    %657 = vmatpush1.bf16.msra.mxu0 %v637
    %658 = vmatprep.subr.bf16.mxu0 0
    %659 = vmatpush1.bf16.msra.mxu0 0
    %660 = vmatprep.subr.bf16.mxu0 0
    %661 = vmatpush1.bf16.msra.mxu0 0
    %662 = vmatprep.subr.bf16.mxu0 0
    %663 = vmatpush1.bf16.msra.mxu0 0
    %664 = vmatprep.subr.bf16.mxu0 0
    %665 = vmatpush1.bf16.msra.mxu0 0
    %666 = vmatprep.subr.bf16.mxu0 0
    %667 = vmatpush1.bf16.msra.mxu0 0
    %668 = vmatprep.subr.bf16.mxu0 0
    %669 = vmatpush1.bf16.msra.mxu0 0
    %670 = vmatprep.subr.bf16.mxu0 0
    %671 = vmatpush1.bf16.msra.mxu0 0
    %672 = vmatprep.subr.bf16.mxu0 0
    %673 = vmatpush1.bf16.msra.mxu0 0
    %674 = vmatprep.subr.bf16.mxu0 0
    %675 = vmatpush1.bf16.msra.mxu0 0
    %676 = vmatprep.subr.bf16.mxu0 0
    %677 = vmatpush1.bf16.msra.mxu0 0
    %678 = vmatprep.subr.bf16.mxu0 0
    %679 = vmatpush1.bf16.msra.mxu0 0
    %680 = vmatprep.subr.bf16.mxu0 0
    %681 = vmatpush1.bf16.msra.mxu0 0
    %682 = vmatprep.mubr.bf16.mxu0 0
    %683 = vmatmul.mubr.bf16.gmra.mrb[0].mxu0 %v648
    %v684 = vpop.f32.mrb[0].mxu0
    %v685 = vadd.f32 0.0, %v684
    %v686 = vpop.f32.mrb[0].mxu0
    %v687 = vadd.f32 0.0, %v686
    %v688 = vpop.f32.mrb[0].mxu0
    %v689 = vpop.f32.mrb[0].mxu0
    %690 = vdwg.mxu0
    %v693 = vcombine.low %v685, %v687
    %v695 = vunpack.c.l.s4 1983009808
    %v696 = vunpack.c.0.s8 %v695
    %v697 = vlaneseq
    %v698 = vshrl.u32 %v697, 7
    %v699 = vsub.s32 %v696, %v698
    %v700 = vrot.slane %v693, %v699
    %v702 = vadd.f32 %v597, %v700
    %v703 = vxor.u32 %v702, 2147483648
    %v704 = vmul.f32 %v703, 1.442695
    %v705 = vpow.pop %v704
    %v706 = vadd.f32 %v705, 1.0
    %v707 = vrcp.pop %v706
    %v708 = vmul.f32 1.0, %v707
    %v710 = vrot.slane %v708, 2
    %v712 = vmul.f32 %v710, 2.0
    %v713 = vsub.f32 %v712, 1.0
    %v714 = vmul.f32 %v708, %v580
    %v715 = vmul.f32 %v708, %v713
    %717 = vrot.lane.b32.xlu0 %v715, 64
    %v718 = vpop.permute.xlu0 %717
    %v720 = vadd.f32 %v714, %v718
    %v721 = vtanh.pop %v720
    %722 = vrot.lane.b32.xlu0 %v708, 64
    %v723 = vpop.permute.xlu0 %722
    %v724 = vrot.slane %v723, 2
    %727 = vrot.lane.b32.xlu0 %v721, 64
    %v728 = vpop.permute.xlu0 %727
    %v730 = vmul.f32 %v724, %v728
    %731 = vst.msk [vmem:[%s593] sm:$0x3] %vm170, %v730
    %732 = vst.msk [vmem:[%s591] sm:$0x3] %vm173, %v730
    %s733 = scalar_lea.vmem %s0, 10
    %v734 = vld [vmem:[%s733] sm:$0x3]
    %v735 = vunpack.c.l.bf16 %v734
    %v736 = vpack.c.bf16 %v730, %v730
    %v737 = vld [vmem:[%s1] sm:$0xff]
    %v738 = vld [vmem:[%s1 + $0x8] sm:$0xff]
    %v739 = vld [vmem:[%s1 + $0x10] sm:$0xff]
    %v740 = vld [vmem:[%s1 + $0x18] sm:$0xff]
    %v741 = vld [vmem:[%s1 + $0x20] sm:$0xff]
    %v742 = vld [vmem:[%s1 + $0x28] sm:$0xff]
    %v743 = vld [vmem:[%s1 + $0x30] sm:$0xff]
    %v744 = vld [vmem:[%s1 + $0x38] sm:$0xff]
    %v753 = vunpack.c.l.b16 %v737
    %v754 = vunpack.c.h.b16 %v737
    %v755 = vunpack.c.l.b16 %v738
    %v756 = vunpack.c.h.b16 %v738
    %v757 = vunpack.c.l.b16 %v739
    %v758 = vunpack.c.h.b16 %v739
    %v759 = vunpack.c.l.b16 %v740
    %v760 = vunpack.c.h.b16 %v740
    %v761 = vunpack.c.l.b16 %v741
    %v762 = vunpack.c.h.b16 %v741
    %v763 = vunpack.c.l.b16 %v742
    %v764 = vunpack.c.h.b16 %v742
    %v765 = vunpack.c.l.b16 %v743
    %v766 = vunpack.c.h.b16 %v743
    %v767 = vunpack.c.l.b16 %v744
    %v768 = vunpack.c.h.b16 %v744
    %v769 = vpack.c.b16 %v755, %v753
    %v770 = vpack.c.b16 %v756, %v754
    %v771 = vpack.c.b16 %v759, %v757
    %v772 = vpack.c.b16 %v760, %v758
    %v773 = vpack.c.b16 %v763, %v761
    %v774 = vpack.c.b16 %v764, %v762
    %v775 = vpack.c.b16 %v767, %v765
    %v776 = vpack.c.b16 %v768, %v766
    %v786 = vsel %vm74, %v736, 0
    %788 = vmatprep.subr.bf16.mxu0 %v770
    %789 = vmatpush1.bf16.msra.mxu0 %v769
    %790 = vmatprep.subr.bf16.mxu0 %v772
    %791 = vmatpush1.bf16.msra.mxu0 %v771
    %792 = vmatprep.subr.bf16.mxu0 %v774
    %793 = vmatpush1.bf16.msra.mxu0 %v773
    %794 = vmatprep.subr.bf16.mxu0 %v776
    %795 = vmatpush1.bf16.msra.mxu0 %v775
    %796 = vmatprep.subr.bf16.mxu0 0
    %797 = vmatpush1.bf16.msra.mxu0 0
    %798 = vmatprep.subr.bf16.mxu0 0
    %799 = vmatpush1.bf16.msra.mxu0 0
    %800 = vmatprep.subr.bf16.mxu0 0
    %801 = vmatpush1.bf16.msra.mxu0 0
    %802 = vmatprep.subr.bf16.mxu0 0
    %803 = vmatpush1.bf16.msra.mxu0 0
    %804 = vmatprep.subr.bf16.mxu0 0
    %805 = vmatpush1.bf16.msra.mxu0 0
    %806 = vmatprep.subr.bf16.mxu0 0
    %807 = vmatpush1.bf16.msra.mxu0 0
    %808 = vmatprep.subr.bf16.mxu0 0
    %809 = vmatpush1.bf16.msra.mxu0 0
    %810 = vmatprep.subr.bf16.mxu0 0
    %811 = vmatpush1.bf16.msra.mxu0 0
    %812 = vmatprep.subr.bf16.mxu0 0
    %813 = vmatpush1.bf16.msra.mxu0 0
    %814 = vmatprep.subr.bf16.mxu0 0
    %815 = vmatpush1.bf16.msra.mxu0 0
    %816 = vmatprep.subr.bf16.mxu0 0
    %817 = vmatpush1.bf16.msra.mxu0 0
    %818 = vmatprep.subr.bf16.mxu0 0
    %819 = vmatpush1.bf16.msra.mxu0 0
    %820 = vmatprep.mubr.bf16.mxu0 0
    %821 = vmatmul.mubr.bf16.gmra.mrb[0].mxu0 %v786
    %v822 = vpop.f32.mrb[0].mxu0
    %v823 = vadd.f32 0.0, %v822
    %v824 = vpop.f32.mrb[0].mxu0
    %v825 = vadd.f32 0.0, %v824
    %v826 = vpop.f32.mrb[0].mxu0
    %v827 = vpop.f32.mrb[0].mxu0
    %828 = vdwg.mxu0
    %v831 = vcombine.low %v823, %v825
    %v833 = vunpack.c.l.s4 1983009808
    %v834 = vunpack.c.0.s8 %v833
    %v835 = vlaneseq
    %v836 = vshrl.u32 %v835, 7
    %v837 = vsub.s32 %v834, %v836
    %v838 = vrot.slane %v831, %v837
    %v840 = vadd.f32 %v735, %v838
    %v841 = vxor.u32 %v840, 2147483648
    %v842 = vmul.f32 %v841, 1.442695
    %v843 = vpow.pop %v842
    %v844 = vadd.f32 %v843, 1.0
    %v845 = vrcp.pop %v844
    %v846 = vmul.f32 1.0, %v845
    %v848 = vrot.slane %v846, 2
    %v850 = vmul.f32 %v848, 2.0
    %v851 = vsub.f32 %v850, 1.0
    %v852 = vmul.f32 %v846, %v720
    %v853 = vmul.f32 %v846, %v851
    %855 = vrot.lane.b32.xlu0 %v853, 64
    %v856 = vpop.permute.xlu0 %855
    %v858 = vadd.f32 %v852, %v856
    %v859 = vtanh.pop %v858
    %860 = vrot.lane.b32.xlu0 %v846, 64
    %v861 = vpop.permute.xlu0 %860
    %v862 = vrot.slane %v861, 2
    %865 = vrot.lane.b32.xlu0 %v859, 64
    %v866 = vpop.permute.xlu0 %865
    %v868 = vmul.f32 %v862, %v866
    %869 = vst.msk [vmem:[%s453] sm:$0x3] %vm170, %v868
    %870 = vst.msk [vmem:[%s451] sm:$0x3] %vm173, %v868
    %s871 = scalar_lea.vmem %s0, 12
    %v872 = vld [vmem:[%s871] sm:$0x3]
    %v873 = vunpack.c.l.bf16 %v872
    %v874 = vpack.c.bf16 %v868, %v868
    %v875 = vld [vmem:[%s1] sm:$0xff]
    %v876 = vld [vmem:[%s1 + $0x8] sm:$0xff]
    %v877 = vld [vmem:[%s1 + $0x10] sm:$0xff]
    %v878 = vld [vmem:[%s1 + $0x18] sm:$0xff]
    %v879 = vld [vmem:[%s1 + $0x20] sm:$0xff]
    %v880 = vld [vmem:[%s1 + $0x28] sm:$0xff]
    %v881 = vld [vmem:[%s1 + $0x30] sm:$0xff]
    %v882 = vld [vmem:[%s1 + $0x38] sm:$0xff]
    %v891 = vunpack.c.l.b16 %v875
    %v892 = vunpack.c.h.b16 %v875
    %v893 = vunpack.c.l.b16 %v876
    %v894 = vunpack.c.h.b16 %v876
    %v895 = vunpack.c.l.b16 %v877
    %v896 = vunpack.c.h.b16 %v877
    %v897 = vunpack.c.l.b16 %v878
    %v898 = vunpack.c.h.b16 %v878
    %v899 = vunpack.c.l.b16 %v879
    %v900 = vunpack.c.h.b16 %v879
    %v901 = vunpack.c.l.b16 %v880
    %v902 = vunpack.c.h.b16 %v880
    %v903 = vunpack.c.l.b16 %v881
    %v904 = vunpack.c.h.b16 %v881
    %v905 = vunpack.c.l.b16 %v882
    %v906 = vunpack.c.h.b16 %v882
    %v907 = vpack.c.b16 %v893, %v891
    %v908 = vpack.c.b16 %v894, %v892
    %v909 = vpack.c.b16 %v897, %v895
    %v910 = vpack.c.b16 %v898, %v896
    %v911 = vpack.c.b16 %v901, %v899
    %v912 = vpack.c.b16 %v902, %v900
    %v913 = vpack.c.b16 %v905, %v903
    %v914 = vpack.c.b16 %v906, %v904
    %v924 = vsel %vm74, %v874, 0
    %926 = vmatprep.subr.bf16.mxu0 %v908
    %927 = vmatpush1.bf16.msra.mxu0 %v907
    %928 = vmatprep.subr.bf16.mxu0 %v910
    %929 = vmatpush1.bf16.msra.mxu0 %v909
    %930 = vmatprep.subr.bf16.mxu0 %v912
    %931 = vmatpush1.bf16.msra.mxu0 %v911
    %932 = vmatprep.subr.bf16.mxu0 %v914
    %933 = vmatpush1.bf16.msra.mxu0 %v913
    %934 = vmatprep.subr.bf16.mxu0 0
    %935 = vmatpush1.bf16.msra.mxu0 0
    %936 = vmatprep.subr.bf16.mxu0 0
    %937 = vmatpush1.bf16.msra.mxu0 0
    %938 = vmatprep.subr.bf16.mxu0 0
    %939 = vmatpush1.bf16.msra.mxu0 0
    %940 = vmatprep.subr.bf16.mxu0 0
    %941 = vmatpush1.bf16.msra.mxu0 0
    %942 = vmatprep.subr.bf16.mxu0 0
    %943 = vmatpush1.bf16.msra.mxu0 0
    %944 = vmatprep.subr.bf16.mxu0 0
    %945 = vmatpush1.bf16.msra.mxu0 0
    %946 = vmatprep.subr.bf16.mxu0 0
    %947 = vmatpush1.bf16.msra.mxu0 0
    %948 = vmatprep.subr.bf16.mxu0 0
    %949 = vmatpush1.bf16.msra.mxu0 0
    %950 = vmatprep.subr.bf16.mxu0 0
    %951 = vmatpush1.bf16.msra.mxu0 0
    %952 = vmatprep.subr.bf16.mxu0 0
    %953 = vmatpush1.bf16.msra.mxu0 0
    %954 = vmatprep.subr.bf16.mxu0 0
    %955 = vmatpush1.bf16.msra.mxu0 0
    %956 = vmatprep.subr.bf16.mxu0 0
    %957 = vmatpush1.bf16.msra.mxu0 0
    %958 = vmatprep.mubr.bf16.mxu0 0
    %959 = vmatmul.mubr.bf16.gmra.mrb[0].mxu0 %v924
    %v960 = vpop.f32.mrb[0].mxu0
    %v961 = vadd.f32 0.0, %v960
    %v962 = vpop.f32.mrb[0].mxu0
    %v963 = vadd.f32 0.0, %v962
    %v964 = vpop.f32.mrb[0].mxu0
    %v965 = vpop.f32.mrb[0].mxu0
    %966 = vdwg.mxu0
    %v969 = vcombine.low %v961, %v963
    %v971 = vunpack.c.l.s4 1983009808
    %v972 = vunpack.c.0.s8 %v971
    %v973 = vlaneseq
    %v974 = vshrl.u32 %v973, 7
    %v975 = vsub.s32 %v972, %v974
    %v976 = vrot.slane %v969, %v975
    %v978 = vadd.f32 %v873, %v976
    %v979 = vxor.u32 %v978, 2147483648
    %v980 = vmul.f32 %v979, 1.442695
    %v981 = vpow.pop %v980
    %v982 = vadd.f32 %v981, 1.0
    %v983 = vrcp.pop %v982
    %v984 = vmul.f32 1.0, %v983
    %v986 = vrot.slane %v984, 2
    %v988 = vmul.f32 %v986, 2.0
    %v989 = vsub.f32 %v988, 1.0
    %v990 = vmul.f32 %v984, %v858
    %v991 = vmul.f32 %v984, %v989
    %993 = vrot.lane.b32.xlu0 %v991, 64
    %v994 = vpop.permute.xlu0 %993
    %v996 = vadd.f32 %v990, %v994
    %v997 = vtanh.pop %v996
    %998 = vrot.lane.b32.xlu0 %v984, 64
    %v999 = vpop.permute.xlu0 %998
    %v1000 = vrot.slane %v999, 2
    %1003 = vrot.lane.b32.xlu0 %v997, 64
    %v1004 = vpop.permute.xlu0 %1003
    %v1006 = vmul.f32 %v1000, %v1004
    %1007 = vst.msk [vmem:[%s313] sm:$0x3] %vm170, %v1006
    %1008 = vst.msk [vmem:[%s311] sm:$0x3] %vm173, %v1006
    %s1009 = scalar_lea.vmem %s0, 14
    %v1010 = vld [vmem:[%s1009] sm:$0x3]
    %v1011 = vunpack.c.l.bf16 %v1010
    %v1012 = vpack.c.bf16 %v1006, %v1006
    %v1013 = vld [vmem:[%s1] sm:$0xff]
    %v1014 = vld [vmem:[%s1 + $0x8] sm:$0xff]
    %v1015 = vld [vmem:[%s1 + $0x10] sm:$0xff]
    %v1016 = vld [vmem:[%s1 + $0x18] sm:$0xff]
    %v1017 = vld [vmem:[%s1 + $0x20] sm:$0xff]
    %v1018 = vld [vmem:[%s1 + $0x28] sm:$0xff]
    %v1019 = vld [vmem:[%s1 + $0x30] sm:$0xff]
    %v1020 = vld [vmem:[%s1 + $0x38] sm:$0xff]
    %v1029 = vunpack.c.l.b16 %v1013
    %v1030 = vunpack.c.h.b16 %v1013
    %v1031 = vunpack.c.l.b16 %v1014
    %v1032 = vunpack.c.h.b16 %v1014
    %v1033 = vunpack.c.l.b16 %v1015
    %v1034 = vunpack.c.h.b16 %v1015
    %v1035 = vunpack.c.l.b16 %v1016
    %v1036 = vunpack.c.h.b16 %v1016
    %v1037 = vunpack.c.l.b16 %v1017
    %v1038 = vunpack.c.h.b16 %v1017
    %v1039 = vunpack.c.l.b16 %v1018
    %v1040 = vunpack.c.h.b16 %v1018
    %v1041 = vunpack.c.l.b16 %v1019
    %v1042 = vunpack.c.h.b16 %v1019
    %v1043 = vunpack.c.l.b16 %v1020
    %v1044 = vunpack.c.h.b16 %v1020
    %v1045 = vpack.c.b16 %v1031, %v1029
    %v1046 = vpack.c.b16 %v1032, %v1030
    %v1047 = vpack.c.b16 %v1035, %v1033
    %v1048 = vpack.c.b16 %v1036, %v1034
    %v1049 = vpack.c.b16 %v1039, %v1037
    %v1050 = vpack.c.b16 %v1040, %v1038
    %v1051 = vpack.c.b16 %v1043, %v1041
    %v1052 = vpack.c.b16 %v1044, %v1042
    %v1062 = vsel %vm74, %v1012, 0
    %1064 = vmatprep.subr.bf16.mxu0 %v1046
    %1065 = vmatpush1.bf16.msra.mxu0 %v1045
    %1066 = vmatprep.subr.bf16.mxu0 %v1048
    %1067 = vmatpush1.bf16.msra.mxu0 %v1047
    %1068 = vmatprep.subr.bf16.mxu0 %v1050
    %1069 = vmatpush1.bf16.msra.mxu0 %v1049
    %1070 = vmatprep.subr.bf16.mxu0 %v1052
    %1071 = vmatpush1.bf16.msra.mxu0 %v1051
    %1072 = vmatprep.subr.bf16.mxu0 0
    %1073 = vmatpush1.bf16.msra.mxu0 0
    %1074 = vmatprep.subr.bf16.mxu0 0
    %1075 = vmatpush1.bf16.msra.mxu0 0
    %1076 = vmatprep.subr.bf16.mxu0 0
    %1077 = vmatpush1.bf16.msra.mxu0 0
    %1078 = vmatprep.subr.bf16.mxu0 0
    %1079 = vmatpush1.bf16.msra.mxu0 0
    %1080 = vmatprep.subr.bf16.mxu0 0
    %1081 = vmatpush1.bf16.msra.mxu0 0
    %1082 = vmatprep.subr.bf16.mxu0 0
    %1083 = vmatpush1.bf16.msra.mxu0 0
    %1084 = vmatprep.subr.bf16.mxu0 0
    %1085 = vmatpush1.bf16.msra.mxu0 0
    %1086 = vmatprep.subr.bf16.mxu0 0
    %1087 = vmatpush1.bf16.msra.mxu0 0
    %1088 = vmatprep.subr.bf16.mxu0 0
    %1089 = vmatpush1.bf16.msra.mxu0 0
    %1090 = vmatprep.subr.bf16.mxu0 0
    %1091 = vmatpush1.bf16.msra.mxu0 0
    %1092 = vmatprep.subr.bf16.mxu0 0
    %1093 = vmatpush1.bf16.msra.mxu0 0
    %1094 = vmatprep.subr.bf16.mxu0 0
    %1095 = vmatpush1.bf16.msra.mxu0 0
    %1096 = vmatprep.mubr.bf16.mxu0 0
    %1097 = vmatmul.mubr.bf16.gmra.mrb[0].mxu0 %v1062
    %v1098 = vpop.f32.mrb[0].mxu0
    %v1099 = vadd.f32 0.0, %v1098
    %v1100 = vpop.f32.mrb[0].mxu0
    %v1101 = vadd.f32 0.0, %v1100
    %v1102 = vpop.f32.mrb[0].mxu0
    %v1103 = vpop.f32.mrb[0].mxu0
    %1104 = vdwg.mxu0
    %v1107 = vcombine.low %v1099, %v1101
    %v1109 = vunpack.c.l.s4 1983009808
    %v1110 = vunpack.c.0.s8 %v1109
    %v1111 = vlaneseq
    %v1112 = vshrl.u32 %v1111, 7
    %v1113 = vsub.s32 %v1110, %v1112
    %v1114 = vrot.slane %v1107, %v1113
    %v1116 = vadd.f32 %v1011, %v1114
    %v1117 = vxor.u32 %v1116, 2147483648
    %v1118 = vmul.f32 %v1117, 1.442695
    %v1119 = vpow.pop %v1118
    %v1120 = vadd.f32 %v1119, 1.0
    %v1121 = vrcp.pop %v1120
    %v1122 = vmul.f32 1.0, %v1121
    %v1124 = vrot.slane %v1122, 2
    %v1126 = vmul.f32 %v1124, 2.0
    %v1127 = vsub.f32 %v1126, 1.0
    %v1128 = vmul.f32 %v1122, %v996
    %v1129 = vmul.f32 %v1122, %v1127
    %1131 = vrot.lane.b32.xlu0 %v1129, 64
    %v1132 = vpop.permute.xlu0 %1131
    %v1134 = vadd.f32 %v1128, %v1132
    %v1135 = vtanh.pop %v1134
    %1136 = vrot.lane.b32.xlu0 %v1122, 64
    %v1137 = vpop.permute.xlu0 %1136
    %v1138 = vrot.slane %v1137, 2
    %1141 = vrot.lane.b32.xlu0 %v1135, 64
    %v1142 = vpop.permute.xlu0 %1141
    %v1144 = vmul.f32 %v1138, %v1142
    %1145 = vst.msk [vmem:[%s172] sm:$0x3] %vm170, %v1144
    %1146 = vst.msk [vmem:[%s4] sm:$0x3] %vm173, %v1144
    %vm1147 = vcmask 517120
    %1148 = vst.msk [vmem:[#allocation2] sm:$0x3] %vm1147, %v1144
    // Predicated region
    $region18: #{lstm_cell_forward.2} parent=1 // pred_check
      _
    $region19: #{lstm_cell_forward.2} parent=1 // pred_check_branch
      %1150 = sbr.rel (0) target = $region21
    $region20: #{lstm_cell_forward.2} parent=1 // pred_region
      _
    $region21: #{lstm_cell_forward.2} parent=1 // pred_fallthru
      _
    // Predicated region
    $region22: #{lstm_cell_forward.2} parent=1 // pred_check
      _
    $region23: #{lstm_cell_forward.2} parent=1 // pred_check_branch
      %1152 = sbr.rel (0) target = $region25
    $region24: #{lstm_cell_forward.2} parent=1 // pred_region
      %s1154 = ssub.s32 32, 32
      %1155 = vsyncadd [#allocation3], %s1154
      %s1157 = sshll.u32 [#allocation2], 4
      %s1158 = int_to_ptr.vmem [resolvable:$true] %s1157
      %1160 = dma.vmem_to_hbm [thread:$0]  %s1158, 32, %s5, [#allocation3]
    $region25: #{lstm_cell_forward.2} parent=1 // pred_fallthru
      _
    // Predicated region
    $region26: #{lstm_cell_forward.2} parent=1 // pred_check
      _
    $region27: #{lstm_cell_forward.2} parent=1 // pred_check_branch
      %1162 = sbr.rel (0) target = $region29
    $region28: #{lstm_cell_forward.2} parent=1 // pred_region
      _
    $region29: #{lstm_cell_forward.2} parent=1 // pred_fallthru
      _
    // Predicated region
    $region30: #{lstm_cell_forward.2} parent=1 // pred_check
      _
    $region31: #{lstm_cell_forward.2} parent=1 // pred_check_branch
      %1164 = sbr.rel (0) target = $region33
    $region32: #{lstm_cell_forward.2} parent=1 // pred_region
      %1165 = dma.done [#allocation3], 32
    $region33: #{lstm_cell_forward.2} parent=1 // pred_fallthru
      _
    %1166 = vsyncpa [#allocation3], 1

</llo_original>
